<compile_context>
chip_gen: v5e
topology: v5e:2x2
jax: 0.10.0
libtpu: 0.0.40
codegen_flags: <defaults>
</compile_context>

<pallas_src>
import math

import jax
import jax.numpy as jnp
from jax.experimental import pallas as pl
from jax.experimental.pallas import tpu as pltpu


ALPHA = 0.2  # LeakyReLU negative slope (module uses nn.LeakyReLU(0.2))


# ----------------------------------------------------------------------------
# Fused full-forward kernel (encode -> reparameterize -> decode)
# ----------------------------------------------------------------------------
def _make_vae_kernel(n_stages, num_res, o_lv, latent_dim, compute_dtype):
    """Refs: x, eps, w_slab (L,D,D), b_slab (L,1,D), out (Bblk,D)."""

    def kernel(x_ref, eps_ref, w_ref, b_ref, out_ref):
        cursor = [0]

        def lin(h, leaky):
            i = cursor[0]
            cursor[0] = i + 1
            y = jnp.dot(h.astype(compute_dtype), w_ref[i],
                        preferred_element_type=jnp.float32) + b_ref[i]
            if leaky:
                y = jnp.where(y >= 0.0, y, ALPHA * y)
            return y

        def trunk(h):
            for _ in range(n_stages):
                h = lin(h, True)                    # dimension_change (+BN+LReLU)
                for _ in range(num_res):
                    t = lin(h, True)                # res block l1 (+BN+LReLU)
                    h = h + lin(t, False)           # res block l2 (+BN) + skip
            return h

        # ---------------- encode ----------------
        h = trunk(lin(x_ref[...], True))            # encoder_input + stages
        heads = lin(h, False)                       # fused mu|log_var head
        lane = jax.lax.broadcasted_iota(jnp.int32, heads.shape, dimension=1)
        lv_mask = (lane >= o_lv) & (lane < o_lv + latent_dim)
        # clamp only the log_var lanes
        heads = jnp.where(lv_mask, jnp.clip(heads, -100.0, 100.0), heads)

        # ---------------- reparameterize ----------------
        # std is only consumed on the lv lanes; eps_ref is zero elsewhere.
        std = jnp.exp(0.5 * heads)
        # z_pre: mu at the mu lanes, eps*std at the lv lanes, zero elsewhere.
        # The decoder-input weight has its rows duplicated at BOTH lane groups,
        # so dot(z_pre, W_dec_in) == dot(mu + eps*std, W_dec_in).
        z = jnp.where(lv_mask, eps_ref[...] * std, heads)

        # ---------------- decode ----------------
        h = trunk(lin(z, True))                     # decoder_input + stages
        # fused metab|pathway head is zero on the mu/lv lanes, `heads` is zero
        # on the metab/pathway lanes -> one lane-dense packed output store.
        out_ref[...] = lin(h, False) + heads

        assert cursor[0] == w_ref.shape[0]          # trace-time structure check

    return kernel


# ----------------------------------------------------------------------------
# Host-side wrapper: single pallas_call, weight slabs resident, packed output
# ----------------------------------------------------------------------------
def vae_forward(params, x, eps, selected_idxs):
    B, d_in = x.shape
    d_pad = params['d_pad']
    latent = params['latent_dim']
    n_sel = params['n_selected']
    pathway_dim = params['pathway_dim']
    o_mu, o_lv = params['o_mu'], params['o_lv']
    w_slab, b_slab = params['w_slab'], params['b_slab']
    n_layers = w_slab.shape[0]

    # Batch tiling: big tiles to fill MXU rows; >=2 grid steps once the batch is
    # large enough so v7x's second TensorCore gets a share of the parallel axis.
    if B <= 512:
        block_batch = B
    else:
        block_batch = min(1024, -(-B // 2))
    block_batch = max(8, -(-block_batch // 8) * 8)
    grid_steps = -(-B // block_batch)
    b_pad = grid_steps * block_batch

    # Lane-dense, batch-padded input slabs.  eps sits at the log_var lanes.
    x_pad = jnp.zeros((b_pad, d_pad), jnp.float32).at[:B, :d_in].set(x)
    eps_full = (jnp.zeros((b_pad, d_pad), jnp.float32)
                .at[:B, o_lv:o_lv + latent].set(eps))

    kernel = _make_vae_kernel(params['n_stages'], params['num_res'],
                              o_lv, latent, params['compute_dtype'])

    flops = 2 * b_pad * n_layers * d_pad * d_pad
    bytes_acc = (int(w_slab.nbytes) + int(b_slab.nbytes) + int(x_pad.nbytes)
                 + int(eps_full.nbytes) + b_pad * d_pad * 4)
    vmem_limit = int(min(64 * 1024 * 1024,
                         max(8 * 1024 * 1024,
                             4 * (int(w_slab.nbytes) + int(b_slab.nbytes)
                                  + 3 * block_batch * d_pad * 4))))

    def run(weight_pipeline_mode):
        def const_spec(shape):
            if weight_pipeline_mode is None:
                return pl.BlockSpec(shape, lambda i: (0,) * len(shape))
            return pl.BlockSpec(shape, lambda i: (0,) * len(shape),
                                pipeline_mode=weight_pipeline_mode)

        batch_spec = pl.BlockSpec((block_batch, d_pad), lambda i: (i, 0))
        out = pl.pallas_call(
            kernel,
            out_shape=jax.ShapeDtypeStruct((b_pad, d_pad), jnp.float32),
            grid=(grid_steps,),
            in_specs=[batch_spec, batch_spec,
                      const_spec(w_slab.shape), const_spec(b_slab.shape)],
            out_specs=pl.BlockSpec((block_batch, d_pad), lambda i: (i, 0)),
            compiler_params=pltpu.CompilerParams(
                dimension_semantics=("parallel",),
                vmem_limit_bytes=vmem_limit),
            cost_estimate=pl.CostEstimate(
                flops=flops, transcendentals=b_pad * d_pad,
                bytes_accessed=bytes_acc),
        )(x_pad, eps_full, w_slab, b_slab)
        return jax.block_until_ready(out)

    try:
        # Grid-constant weight slabs: a single VMEM buffer is enough.
        out = run(pl.Buffered(1))
    except Exception:
        # Fallback if this jax version rejects Buffered(1) on pallas_call specs.
        out = run(None)

    out = out[:B]
    return {
        'metabolites_true': x[:, jnp.asarray(selected_idxs)],
        'metabolites_pred': out[:, :n_sel],
        'pathways_pred': out[:, n_sel:n_sel + pathway_dim],
        'mu': out[:, o_mu:o_mu + latent],
        'log_var': out[:, o_lv:o_lv + latent],
    }


# ----------------------------------------------------------------------------
# Deterministic parameter init + eval-mode BatchNorm folding + slab packing
# ----------------------------------------------------------------------------
def _init_linear(key, din, dout):
    kw, kb = jax.random.split(key)
    bound = 1.0 / math.sqrt(din)
    w = jax.random.uniform(kw, (din, dout), jnp.float32, -bound, bound)
    b = jax.random.uniform(kb, (dout,), jnp.float32, -bound, bound)
    return w, b


def _bn_eval_affine(dim, eps=1e-5):
    gamma = jnp.ones((dim,), jnp.float32)
    beta = jnp.zeros((dim,), jnp.float32)
    running_mean = jnp.zeros((dim,), jnp.float32)
    running_var = jnp.ones((dim,), jnp.float32)
    scale = gamma / jnp.sqrt(running_var + eps)
    shift = beta - running_mean * scale
    return scale, shift


def _fold(w, b, out_bn=None, in_bn=None):
    # y = ((x*s_in + t_in) @ W + b) * s_out + t_out  ==  x @ W' + b'
    if out_bn is not None:
        s, t = out_bn
        w = w * s[None, :]
        b = b * s + t
    if in_bn is not None:
        s, t = in_bn
        b = b + t @ w
        w = w * s[:, None]
    return w, b


def build_params(key, metabolite_dim, pathway_dim, hidden_dims, latent_dim,
                 n_selected, num_residual_blocks, d_pad=128,
                 weight_dtype=jnp.bfloat16):
    assert max(metabolite_dim, pathway_dim, latent_dim, n_selected,
               *hidden_dims) <= d_pad
    o_mu = n_selected + pathway_dim
    o_lv = o_mu + latent_dim
    assert o_lv + latent_dim <= d_pad, "packed output layout must fit 128 lanes"

    n_stages = len(hidden_dims) - 1
    n_layers = 2 * n_stages * (1 + 2 * num_residual_blocks) + 4
    keys = iter(jax.random.split(key, 4 * max(n_layers, 4)))

    Ws, Bs = [], []

    def new_layer():
        Ws.append(jnp.zeros((d_pad, d_pad), jnp.float32))
        Bs.append(jnp.zeros((d_pad,), jnp.float32))

    def place_w(w, row_off, col_off):
        Ws[-1] = Ws[-1].at[row_off:row_off + w.shape[0],
                           col_off:col_off + w.shape[1]].set(w)

    def place_b(b, col_off):
        Bs[-1] = Bs[-1].at[col_off:col_off + b.shape[0]].set(b)

    def make_linear(din, dout, out_bn=False, in_bn=None):
        w, b = _init_linear(next(keys), din, dout)
        return _fold(w, b,
                     out_bn=_bn_eval_affine(dout) if out_bn else None,
                     in_bn=in_bn)

    def add_simple(din, dout, out_bn=False, in_bn=None):
        w, b = make_linear(din, dout, out_bn, in_bn)
        new_layer()
        place_w(w, 0, 0)
        place_b(b, 0)

    def trunk(dims):
        for i in range(len(dims) - 1):
            add_simple(dims[i], dims[i + 1], out_bn=True)       # dimension_change
            for _ in range(num_residual_blocks):
                add_simple(dims[i + 1], dims[i + 1], out_bn=True)  # res l1
                add_simple(dims[i + 1], dims[i + 1], out_bn=True)  # res l2

    # encoder_input: BN(input) -> Linear -> BN -> LeakyReLU -> Dropout
    add_simple(metabolite_dim, hidden_dims[0], out_bn=True,
               in_bn=_bn_eval_affine(metabolite_dim))
    trunk(hidden_dims)

    # fused mu | log_var heads, columns placed at their packed-output lanes
    w_mu, b_mu = make_linear(hidden_dims[-1], latent_dim)
    w_lv, b_lv = make_linear(hidden_dims[-1], latent_dim)
    new_layer()
    place_w(w_mu, 0, o_mu); place_b(b_mu, o_mu)
    place_w(w_lv, 0, o_lv); place_b(b_lv, o_lv)

    # decoder_input: rows duplicated at the mu AND lv lane groups so that
    # dot(z_pre, W) == dot(mu + eps*std, W) without any in-kernel lane shuffle.
    dec_dims = hidden_dims[::-1]
    w_di, b_di = make_linear(latent_dim, dec_dims[0], out_bn=True)
    new_layer()
    place_w(w_di, o_mu, 0)
    place_w(w_di, o_lv, 0)
    place_b(b_di, 0)
    trunk(dec_dims)

    # fused metabolite | pathway output heads
    w_m, b_m = make_linear(dec_dims[-1], n_selected)
    w_p, b_p = make_linear(dec_dims[-1], pathway_dim)
    new_layer()
    place_w(w_m, 0, 0); place_b(b_m, 0)
    place_w(w_p, 0, n_selected); place_b(b_p, n_selected)

    assert len(Ws) == n_layers

    w_slab = jnp.stack(Ws).astype(weight_dtype)        # (L, D, D) bf16
    b_slab = jnp.stack(Bs)[:, None, :]                 # (L, 1, D) f32

    return {
        'w_slab': w_slab,
        'b_slab': b_slab,
        'n_stages': n_stages,
        'num_res': num_residual_blocks,
        'latent_dim': latent_dim,
        'n_selected': n_selected,
        'pathway_dim': pathway_dim,
        'd_pad': d_pad,
        'o_mu': o_mu,
        'o_lv': o_lv,
        'compute_dtype': weight_dtype,
    }


# ----------------------------------------------------------------------------
if __name__ == "__main__":
    # Small deterministic configuration consistent with the module's __init__.
    B = 8
    metabolite_dim = 24
    pathway_dim = 8
    hidden_dims = [64, 48, 32]
    latent_dim = 16
    num_residual_blocks = 2

    metabolite_names = [f"m{i}" for i in range(metabolite_dim)]
    pathway_metabolites_columns = [f"m{i}" for i in range(0, metabolite_dim, 2)]
    selected_idxs = [metabolite_names.index(f) for f in pathway_metabolites_columns]
    n_selected = len(selected_idxs)

    root = jax.random.PRNGKey(0)
    k_params, k_x, k_eps = jax.random.split(root, 3)

    params = build_params(k_params, metabolite_dim, pathway_dim, hidden_dims,
                          latent_dim, n_selected, num_residual_blocks)
    x = jax.random.normal(k_x, (B, metabolite_dim), jnp.float32)
    eps = jax.random.normal(k_eps, (B, latent_dim), jnp.float32)

    out = vae_forward(params, x, eps, selected_idxs)
    out = jax.block_until_ready(out)

    # sanity on shapes / values
    assert out['metabolites_true'].shape == (B, n_selected)
    assert out['metabolites_pred'].shape == (B, n_selected)
    assert out['pathways_pred'].shape == (B, pathway_dim)
    assert out['mu'].shape == (B, latent_dim)
    assert out['log_var'].shape == (B, latent_dim)
    for k in ('metabolites_pred', 'pathways_pred', 'mu', 'log_var'):
        assert bool(jnp.all(jnp.isfinite(out[k]))), k

    print("KERNEL_OK")
</pallas_src>

<mosaic_0001>
module attributes {stable_mosaic.version = 11 : i64} {
  func.func @kernel(%arg0: i32, %arg1: memref<8x128xf32, #tpu.memory_space<vmem>>, %arg2: memref<8x128xf32, #tpu.memory_space<vmem>>, %arg3: memref<24x128x128xbf16, #tpu.memory_space<vmem>>, %arg4: memref<24x1x128xf32, #tpu.memory_space<vmem>>, %arg5: memref<8x128xf32, #tpu.memory_space<vmem>>) attributes {dimension_semantics = [#tpu.dimension_semantics<parallel>], iteration_bounds = array<i64: 1>, scalar_prefetch = 0 : i64, scratch_operands = 0 : i64, tpu.core_type = #tpu.core_type<tc>, window_params = [{transform_indices = @transform_0, window_bounds = array<i64: 8, 128>}, {transform_indices = @transform_1, window_bounds = array<i64: 8, 128>}, {pipeline_mode = #tpu.pipeline_mode<synchronous>, transform_indices = @transform_2, window_bounds = array<i64: 24, 128, 128>}, {pipeline_mode = #tpu.pipeline_mode<synchronous>, transform_indices = @transform_3, window_bounds = array<i64: 24, 1, 128>}, {transform_indices = @transform_4, window_bounds = array<i64: 8, 128>}]} {
    %c0 = arith.constant 0 : index
    %c0_0 = arith.constant 0 : index
    %0 = vector.load %arg1[%c0, %c0_0] : memref<8x128xf32, #tpu.memory_space<vmem>>, vector<8x128xf32>
    %1 = arith.truncf %0 : vector<8x128xf32> to vector<8x128xbf16>
    %c0_1 = arith.constant 0 : index
    %c0_2 = arith.constant 0 : index
    %c0_3 = arith.constant 0 : index
    %2 = vector.load %arg3[%c0_1, %c0_2, %c0_3] : memref<24x128x128xbf16, #tpu.memory_space<vmem>>, vector<1x128x128xbf16>
    %3 = vector.shape_cast %2 : vector<1x128x128xbf16> to vector<128x128xbf16>
    %cst = arith.constant dense<0.000000e+00> : vector<8x128xf32>
    %4 = tpu.matmul %1, %3, %cst {dimension_numbers = #tpu.dot_dimension_numbers<[1], [0], [0], [1], [0, 0, 1, 1], [], []>} : vector<8x128xbf16>, vector<128x128xbf16>, vector<8x128xf32> -> vector<8x128xf32>
    %c0_4 = arith.constant 0 : index
    %c0_5 = arith.constant 0 : index
    %c0_6 = arith.constant 0 : index
    %5 = vector.load %arg4[%c0_4, %c0_5, %c0_6] : memref<24x1x128xf32, #tpu.memory_space<vmem>>, vector<1x1x128xf32>
    %6 = vector.shape_cast %5 : vector<1x1x128xf32> to vector<1x128xf32>
    %7 = vector.broadcast %6 : vector<1x128xf32> to vector<8x128xf32>
    %8 = arith.addf %4, %7 : vector<8x128xf32>
    %cst_7 = arith.constant 0.000000e+00 : f32
    %9 = vector.broadcast %cst_7 : f32 to vector<8x128xf32>
    %10 = arith.cmpf oge, %8, %9 : vector<8x128xf32>
    %cst_8 = arith.constant 2.000000e-01 : f32
    %11 = vector.broadcast %cst_8 : f32 to vector<8x128xf32>
    %12 = arith.mulf %11, %8 : vector<8x128xf32>
    %13 = arith.select %10, %8, %12 : vector<8x128xi1>, vector<8x128xf32>
    %14 = arith.truncf %13 : vector<8x128xf32> to vector<8x128xbf16>
    %c1 = arith.constant 1 : index
    %c0_9 = arith.constant 0 : index
    %c0_10 = arith.constant 0 : index
    %15 = vector.load %arg3[%c1, %c0_9, %c0_10] : memref<24x128x128xbf16, #tpu.memory_space<vmem>>, vector<1x128x128xbf16>
    %16 = vector.shape_cast %15 : vector<1x128x128xbf16> to vector<128x128xbf16>
    %cst_11 = arith.constant dense<0.000000e+00> : vector<8x128xf32>
    %17 = tpu.matmul %14, %16, %cst_11 {dimension_numbers = #tpu.dot_dimension_numbers<[1], [0], [0], [1], [0, 0, 1, 1], [], []>} : vector<8x128xbf16>, vector<128x128xbf16>, vector<8x128xf32> -> vector<8x128xf32>
    %c1_12 = arith.constant 1 : index
    %c0_13 = arith.constant 0 : index
    %c0_14 = arith.constant 0 : index
    %18 = vector.load %arg4[%c1_12, %c0_13, %c0_14] : memref<24x1x128xf32, #tpu.memory_space<vmem>>, vector<1x1x128xf32>
    %19 = vector.shape_cast %18 : vector<1x1x128xf32> to vector<1x128xf32>
    %20 = vector.broadcast %19 : vector<1x128xf32> to vector<8x128xf32>
    %21 = arith.addf %17, %20 : vector<8x128xf32>
    %cst_15 = arith.constant 0.000000e+00 : f32
    %22 = vector.broadcast %cst_15 : f32 to vector<8x128xf32>
    %23 = arith.cmpf oge, %21, %22 : vector<8x128xf32>
    %cst_16 = arith.constant 2.000000e-01 : f32
    %24 = vector.broadcast %cst_16 : f32 to vector<8x128xf32>
    %25 = arith.mulf %24, %21 : vector<8x128xf32>
    %26 = arith.select %23, %21, %25 : vector<8x128xi1>, vector<8x128xf32>
    %27 = arith.truncf %26 : vector<8x128xf32> to vector<8x128xbf16>
    %c2 = arith.constant 2 : index
    %c0_17 = arith.constant 0 : index
    %c0_18 = arith.constant 0 : index
    %28 = vector.load %arg3[%c2, %c0_17, %c0_18] : memref<24x128x128xbf16, #tpu.memory_space<vmem>>, vector<1x128x128xbf16>
    %29 = vector.shape_cast %28 : vector<1x128x128xbf16> to vector<128x128xbf16>
    %cst_19 = arith.constant dense<0.000000e+00> : vector<8x128xf32>
    %30 = tpu.matmul %27, %29, %cst_19 {dimension_numbers = #tpu.dot_dimension_numbers<[1], [0], [0], [1], [0, 0, 1, 1], [], []>} : vector<8x128xbf16>, vector<128x128xbf16>, vector<8x128xf32> -> vector<8x128xf32>
    %c2_20 = arith.constant 2 : index
    %c0_21 = arith.constant 0 : index
    %c0_22 = arith.constant 0 : index
    %31 = vector.load %arg4[%c2_20, %c0_21, %c0_22] : memref<24x1x128xf32, #tpu.memory_space<vmem>>, vector<1x1x128xf32>
    %32 = vector.shape_cast %31 : vector<1x1x128xf32> to vector<1x128xf32>
    %33 = vector.broadcast %32 : vector<1x128xf32> to vector<8x128xf32>
    %34 = arith.addf %30, %33 : vector<8x128xf32>
    %cst_23 = arith.constant 0.000000e+00 : f32
    %35 = vector.broadcast %cst_23 : f32 to vector<8x128xf32>
    %36 = arith.cmpf oge, %34, %35 : vector<8x128xf32>
    %cst_24 = arith.constant 2.000000e-01 : f32
    %37 = vector.broadcast %cst_24 : f32 to vector<8x128xf32>
    %38 = arith.mulf %37, %34 : vector<8x128xf32>
    %39 = arith.select %36, %34, %38 : vector<8x128xi1>, vector<8x128xf32>
    %40 = arith.truncf %39 : vector<8x128xf32> to vector<8x128xbf16>
    %c3 = arith.constant 3 : index
    %c0_25 = arith.constant 0 : index
    %c0_26 = arith.constant 0 : index
    %41 = vector.load %arg3[%c3, %c0_25, %c0_26] : memref<24x128x128xbf16, #tpu.memory_space<vmem>>, vector<1x128x128xbf16>
    %42 = vector.shape_cast %41 : vector<1x128x128xbf16> to vector<128x128xbf16>
    %cst_27 = arith.constant dense<0.000000e+00> : vector<8x128xf32>
    %43 = tpu.matmul %40, %42, %cst_27 {dimension_numbers = #tpu.dot_dimension_numbers<[1], [0], [0], [1], [0, 0, 1, 1], [], []>} : vector<8x128xbf16>, vector<128x128xbf16>, vector<8x128xf32> -> vector<8x128xf32>
    %c3_28 = arith.constant 3 : index
    %c0_29 = arith.constant 0 : index
    %c0_30 = arith.constant 0 : index
    %44 = vector.load %arg4[%c3_28, %c0_29, %c0_30] : memref<24x1x128xf32, #tpu.memory_space<vmem>>, vector<1x1x128xf32>
    %45 = vector.shape_cast %44 : vector<1x1x128xf32> to vector<1x128xf32>
    %46 = vector.broadcast %45 : vector<1x128xf32> to vector<8x128xf32>
    %47 = arith.addf %43, %46 : vector<8x128xf32>
    %48 = arith.addf %26, %47 : vector<8x128xf32>
    %49 = arith.truncf %48 : vector<8x128xf32> to vector<8x128xbf16>
    %c4 = arith.constant 4 : index
    %c0_31 = arith.constant 0 : index
    %c0_32 = arith.constant 0 : index
    %50 = vector.load %arg3[%c4, %c0_31, %c0_32] : memref<24x128x128xbf16, #tpu.memory_space<vmem>>, vector<1x128x128xbf16>
    %51 = vector.shape_cast %50 : vector<1x128x128xbf16> to vector<128x128xbf16>
    %cst_33 = arith.constant dense<0.000000e+00> : vector<8x128xf32>
    %52 = tpu.matmul %49, %51, %cst_33 {dimension_numbers = #tpu.dot_dimension_numbers<[1], [0], [0], [1], [0, 0, 1, 1], [], []>} : vector<8x128xbf16>, vector<128x128xbf16>, vector<8x128xf32> -> vector<8x128xf32>
    %c4_34 = arith.constant 4 : index
    %c0_35 = arith.constant 0 : index
    %c0_36 = arith.constant 0 : index
    %53 = vector.load %arg4[%c4_34, %c0_35, %c0_36] : memref<24x1x128xf32, #tpu.memory_space<vmem>>, vector<1x1x128xf32>
    %54 = vector.shape_cast %53 : vector<1x1x128xf32> to vector<1x128xf32>
    %55 = vector.broadcast %54 : vector<1x128xf32> to vector<8x128xf32>
    %56 = arith.addf %52, %55 : vector<8x128xf32>
    %cst_37 = arith.constant 0.000000e+00 : f32
    %57 = vector.broadcast %cst_37 : f32 to vector<8x128xf32>
    %58 = arith.cmpf oge, %56, %57 : vector<8x128xf32>
    %cst_38 = arith.constant 2.000000e-01 : f32
    %59 = vector.broadcast %cst_38 : f32 to vector<8x128xf32>
    %60 = arith.mulf %59, %56 : vector<8x128xf32>
    %61 = arith.select %58, %56, %60 : vector<8x128xi1>, vector<8x128xf32>
    %62 = arith.truncf %61 : vector<8x128xf32> to vector<8x128xbf16>
    %c5 = arith.constant 5 : index
    %c0_39 = arith.constant 0 : index
    %c0_40 = arith.constant 0 : index
    %63 = vector.load %arg3[%c5, %c0_39, %c0_40] : memref<24x128x128xbf16, #tpu.memory_space<vmem>>, vector<1x128x128xbf16>
    %64 = vector.shape_cast %63 : vector<1x128x128xbf16> to vector<128x128xbf16>
    %cst_41 = arith.constant dense<0.000000e+00> : vector<8x128xf32>
    %65 = tpu.matmul %62, %64, %cst_41 {dimension_numbers = #tpu.dot_dimension_numbers<[1], [0], [0], [1], [0, 0, 1, 1], [], []>} : vector<8x128xbf16>, vector<128x128xbf16>, vector<8x128xf32> -> vector<8x128xf32>
    %c5_42 = arith.constant 5 : index
    %c0_43 = arith.constant 0 : index
    %c0_44 = arith.constant 0 : index
    %66 = vector.load %arg4[%c5_42, %c0_43, %c0_44] : memref<24x1x128xf32, #tpu.memory_space<vmem>>, vector<1x1x128xf32>
    %67 = vector.shape_cast %66 : vector<1x1x128xf32> to vector<1x128xf32>
    %68 = vector.broadcast %67 : vector<1x128xf32> to vector<8x128xf32>
    %69 = arith.addf %65, %68 : vector<8x128xf32>
    %70 = arith.addf %48, %69 : vector<8x128xf32>
    %71 = arith.truncf %70 : vector<8x128xf32> to vector<8x128xbf16>
    %c6 = arith.constant 6 : index
    %c0_45 = arith.constant 0 : index
    %c0_46 = arith.constant 0 : index
    %72 = vector.load %arg3[%c6, %c0_45, %c0_46] : memref<24x128x128xbf16, #tpu.memory_space<vmem>>, vector<1x128x128xbf16>
    %73 = vector.shape_cast %72 : vector<1x128x128xbf16> to vector<128x128xbf16>
    %cst_47 = arith.constant dense<0.000000e+00> : vector<8x128xf32>
    %74 = tpu.matmul %71, %73, %cst_47 {dimension_numbers = #tpu.dot_dimension_numbers<[1], [0], [0], [1], [0, 0, 1, 1], [], []>} : vector<8x128xbf16>, vector<128x128xbf16>, vector<8x128xf32> -> vector<8x128xf32>
    %c6_48 = arith.constant 6 : index
    %c0_49 = arith.constant 0 : index
    %c0_50 = arith.constant 0 : index
    %75 = vector.load %arg4[%c6_48, %c0_49, %c0_50] : memref<24x1x128xf32, #tpu.memory_space<vmem>>, vector<1x1x128xf32>
    %76 = vector.shape_cast %75 : vector<1x1x128xf32> to vector<1x128xf32>
    %77 = vector.broadcast %76 : vector<1x128xf32> to vector<8x128xf32>
    %78 = arith.addf %74, %77 : vector<8x128xf32>
    %cst_51 = arith.constant 0.000000e+00 : f32
    %79 = vector.broadcast %cst_51 : f32 to vector<8x128xf32>
    %80 = arith.cmpf oge, %78, %79 : vector<8x128xf32>
    %cst_52 = arith.constant 2.000000e-01 : f32
    %81 = vector.broadcast %cst_52 : f32 to vector<8x128xf32>
    %82 = arith.mulf %81, %78 : vector<8x128xf32>
    %83 = arith.select %80, %78, %82 : vector<8x128xi1>, vector<8x128xf32>
    %84 = arith.truncf %83 : vector<8x128xf32> to vector<8x128xbf16>
    %c7 = arith.constant 7 : index
    %c0_53 = arith.constant 0 : index
    %c0_54 = arith.constant 0 : index
    %85 = vector.load %arg3[%c7, %c0_53, %c0_54] : memref<24x128x128xbf16, #tpu.memory_space<vmem>>, vector<1x128x128xbf16>
    %86 = vector.shape_cast %85 : vector<1x128x128xbf16> to vector<128x128xbf16>
    %cst_55 = arith.constant dense<0.000000e+00> : vector<8x128xf32>
    %87 = tpu.matmul %84, %86, %cst_55 {dimension_numbers = #tpu.dot_dimension_numbers<[1], [0], [0], [1], [0, 0, 1, 1], [], []>} : vector<8x128xbf16>, vector<128x128xbf16>, vector<8x128xf32> -> vector<8x128xf32>
    %c7_56 = arith.constant 7 : index
    %c0_57 = arith.constant 0 : index
    %c0_58 = arith.constant 0 : index
    %88 = vector.load %arg4[%c7_56, %c0_57, %c0_58] : memref<24x1x128xf32, #tpu.memory_space<vmem>>, vector<1x1x128xf32>
    %89 = vector.shape_cast %88 : vector<1x1x128xf32> to vector<1x128xf32>
    %90 = vector.broadcast %89 : vector<1x128xf32> to vector<8x128xf32>
    %91 = arith.addf %87, %90 : vector<8x128xf32>
    %cst_59 = arith.constant 0.000000e+00 : f32
    %92 = vector.broadcast %cst_59 : f32 to vector<8x128xf32>
    %93 = arith.cmpf oge, %91, %92 : vector<8x128xf32>
    %cst_60 = arith.constant 2.000000e-01 : f32
    %94 = vector.broadcast %cst_60 : f32 to vector<8x128xf32>
    %95 = arith.mulf %94, %91 : vector<8x128xf32>
    %96 = arith.select %93, %91, %95 : vector<8x128xi1>, vector<8x128xf32>
    %97 = arith.truncf %96 : vector<8x128xf32> to vector<8x128xbf16>
    %c8 = arith.constant 8 : index
    %c0_61 = arith.constant 0 : index
    %c0_62 = arith.constant 0 : index
    %98 = vector.load %arg3[%c8, %c0_61, %c0_62] : memref<24x128x128xbf16, #tpu.memory_space<vmem>>, vector<1x128x128xbf16>
    %99 = vector.shape_cast %98 : vector<1x128x128xbf16> to vector<128x128xbf16>
    %cst_63 = arith.constant dense<0.000000e+00> : vector<8x128xf32>
    %100 = tpu.matmul %97, %99, %cst_63 {dimension_numbers = #tpu.dot_dimension_numbers<[1], [0], [0], [1], [0, 0, 1, 1], [], []>} : vector<8x128xbf16>, vector<128x128xbf16>, vector<8x128xf32> -> vector<8x128xf32>
    %c8_64 = arith.constant 8 : index
    %c0_65 = arith.constant 0 : index
    %c0_66 = arith.constant 0 : index
    %101 = vector.load %arg4[%c8_64, %c0_65, %c0_66] : memref<24x1x128xf32, #tpu.memory_space<vmem>>, vector<1x1x128xf32>
    %102 = vector.shape_cast %101 : vector<1x1x128xf32> to vector<1x128xf32>
    %103 = vector.broadcast %102 : vector<1x128xf32> to vector<8x128xf32>
    %104 = arith.addf %100, %103 : vector<8x128xf32>
    %105 = arith.addf %83, %104 : vector<8x128xf32>
    %106 = arith.truncf %105 : vector<8x128xf32> to vector<8x128xbf16>
    %c9 = arith.constant 9 : index
    %c0_67 = arith.constant 0 : index
    %c0_68 = arith.constant 0 : index
    %107 = vector.load %arg3[%c9, %c0_67, %c0_68] : memref<24x128x128xbf16, #tpu.memory_space<vmem>>, vector<1x128x128xbf16>
    %108 = vector.shape_cast %107 : vector<1x128x128xbf16> to vector<128x128xbf16>
    %cst_69 = arith.constant dense<0.000000e+00> : vector<8x128xf32>
    %109 = tpu.matmul %106, %108, %cst_69 {dimension_numbers = #tpu.dot_dimension_numbers<[1], [0], [0], [1], [0, 0, 1, 1], [], []>} : vector<8x128xbf16>, vector<128x128xbf16>, vector<8x128xf32> -> vector<8x128xf32>
    %c9_70 = arith.constant 9 : index
    %c0_71 = arith.constant 0 : index
    %c0_72 = arith.constant 0 : index
    %110 = vector.load %arg4[%c9_70, %c0_71, %c0_72] : memref<24x1x128xf32, #tpu.memory_space<vmem>>, vector<1x1x128xf32>
    %111 = vector.shape_cast %110 : vector<1x1x128xf32> to vector<1x128xf32>
    %112 = vector.broadcast %111 : vector<1x128xf32> to vector<8x128xf32>
    %113 = arith.addf %109, %112 : vector<8x128xf32>
    %cst_73 = arith.constant 0.000000e+00 : f32
    %114 = vector.broadcast %cst_73 : f32 to vector<8x128xf32>
    %115 = arith.cmpf oge, %113, %114 : vector<8x128xf32>
    %cst_74 = arith.constant 2.000000e-01 : f32
    %116 = vector.broadcast %cst_74 : f32 to vector<8x128xf32>
    %117 = arith.mulf %116, %113 : vector<8x128xf32>
    %118 = arith.select %115, %113, %117 : vector<8x128xi1>, vector<8x128xf32>
    %119 = arith.truncf %118 : vector<8x128xf32> to vector<8x128xbf16>
    %c10 = arith.constant 10 : index
    %c0_75 = arith.constant 0 : index
    %c0_76 = arith.constant 0 : index
    %120 = vector.load %arg3[%c10, %c0_75, %c0_76] : memref<24x128x128xbf16, #tpu.memory_space<vmem>>, vector<1x128x128xbf16>
    %121 = vector.shape_cast %120 : vector<1x128x128xbf16> to vector<128x128xbf16>
    %cst_77 = arith.constant dense<0.000000e+00> : vector<8x128xf32>
    %122 = tpu.matmul %119, %121, %cst_77 {dimension_numbers = #tpu.dot_dimension_numbers<[1], [0], [0], [1], [0, 0, 1, 1], [], []>} : vector<8x128xbf16>, vector<128x128xbf16>, vector<8x128xf32> -> vector<8x128xf32>
    %c10_78 = arith.constant 10 : index
    %c0_79 = arith.constant 0 : index
    %c0_80 = arith.constant 0 : index
    %123 = vector.load %arg4[%c10_78, %c0_79, %c0_80] : memref<24x1x128xf32, #tpu.memory_space<vmem>>, vector<1x1x128xf32>
    %124 = vector.shape_cast %123 : vector<1x1x128xf32> to vector<1x128xf32>
    %125 = vector.broadcast %124 : vector<1x128xf32> to vector<8x128xf32>
    %126 = arith.addf %122, %125 : vector<8x128xf32>
    %127 = arith.addf %105, %126 : vector<8x128xf32>
    %128 = arith.truncf %127 : vector<8x128xf32> to vector<8x128xbf16>
    %c11 = arith.constant 11 : index
    %c0_81 = arith.constant 0 : index
    %c0_82 = arith.constant 0 : index
    %129 = vector.load %arg3[%c11, %c0_81, %c0_82] : memref<24x128x128xbf16, #tpu.memory_space<vmem>>, vector<1x128x128xbf16>
    %130 = vector.shape_cast %129 : vector<1x128x128xbf16> to vector<128x128xbf16>
    %cst_83 = arith.constant dense<0.000000e+00> : vector<8x128xf32>
    %131 = tpu.matmul %128, %130, %cst_83 {dimension_numbers = #tpu.dot_dimension_numbers<[1], [0], [0], [1], [0, 0, 1, 1], [], []>} : vector<8x128xbf16>, vector<128x128xbf16>, vector<8x128xf32> -> vector<8x128xf32>
    %c11_84 = arith.constant 11 : index
    %c0_85 = arith.constant 0 : index
    %c0_86 = arith.constant 0 : index
    %132 = vector.load %arg4[%c11_84, %c0_85, %c0_86] : memref<24x1x128xf32, #tpu.memory_space<vmem>>, vector<1x1x128xf32>
    %133 = vector.shape_cast %132 : vector<1x1x128xf32> to vector<1x128xf32>
    %134 = vector.broadcast %133 : vector<1x128xf32> to vector<8x128xf32>
    %135 = arith.addf %131, %134 : vector<8x128xf32>
    %136 = tpu.iota {dimensions = array<i32: 1>} : vector<8x128xi32>
    %c36_i32 = arith.constant 36 : i32
    %137 = vector.broadcast %c36_i32 : i32 to vector<8x128xi32>
    %138 = arith.cmpi sge, %136, %137 : vector<8x128xi32>
    %c52_i32 = arith.constant 52 : i32
    %139 = vector.broadcast %c52_i32 : i32 to vector<8x128xi32>
    %140 = arith.cmpi slt, %136, %139 : vector<8x128xi32>
    %141 = arith.andi %138, %140 : vector<8x128xi1>
    %cst_87 = arith.constant -1.000000e+02 : f32
    %cst_88 = arith.constant 1.000000e+02 : f32
    %142 = vector.broadcast %cst_87 : f32 to vector<8x128xf32>
    %143 = arith.maximumf %142, %135 : vector<8x128xf32>
    %144 = vector.broadcast %cst_88 : f32 to vector<8x128xf32>
    %145 = arith.minimumf %144, %143 : vector<8x128xf32>
    %146 = arith.select %141, %145, %135 : vector<8x128xi1>, vector<8x128xf32>
    %cst_89 = arith.constant 5.000000e-01 : f32
    %147 = vector.broadcast %cst_89 : f32 to vector<8x128xf32>
    %148 = arith.mulf %147, %146 : vector<8x128xf32>
    %149 = math.exp %148 : vector<8x128xf32>
    %c0_90 = arith.constant 0 : index
    %c0_91 = arith.constant 0 : index
    %150 = vector.load %arg2[%c0_90, %c0_91] : memref<8x128xf32, #tpu.memory_space<vmem>>, vector<8x128xf32>
    %151 = arith.mulf %150, %149 : vector<8x128xf32>
    %152 = arith.select %141, %151, %146 : vector<8x128xi1>, vector<8x128xf32>
    %153 = arith.truncf %152 : vector<8x128xf32> to vector<8x128xbf16>
    %c12 = arith.constant 12 : index
    %c0_92 = arith.constant 0 : index
    %c0_93 = arith.constant 0 : index
    %154 = vector.load %arg3[%c12, %c0_92, %c0_93] : memref<24x128x128xbf16, #tpu.memory_space<vmem>>, vector<1x128x128xbf16>
    %155 = vector.shape_cast %154 : vector<1x128x128xbf16> to vector<128x128xbf16>
    %cst_94 = arith.constant dense<0.000000e+00> : vector<8x128xf32>
    %156 = tpu.matmul %153, %155, %cst_94 {dimension_numbers = #tpu.dot_dimension_numbers<[1], [0], [0], [1], [0, 0, 1, 1], [], []>} : vector<8x128xbf16>, vector<128x128xbf16>, vector<8x128xf32> -> vector<8x128xf32>
    %c12_95 = arith.constant 12 : index
    %c0_96 = arith.constant 0 : index
    %c0_97 = arith.constant 0 : index
    %157 = vector.load %arg4[%c12_95, %c0_96, %c0_97] : memref<24x1x128xf32, #tpu.memory_space<vmem>>, vector<1x1x128xf32>
    %158 = vector.shape_cast %157 : vector<1x1x128xf32> to vector<1x128xf32>
    %159 = vector.broadcast %158 : vector<1x128xf32> to vector<8x128xf32>
    %160 = arith.addf %156, %159 : vector<8x128xf32>
    %cst_98 = arith.constant 0.000000e+00 : f32
    %161 = vector.broadcast %cst_98 : f32 to vector<8x128xf32>
    %162 = arith.cmpf oge, %160, %161 : vector<8x128xf32>
    %cst_99 = arith.constant 2.000000e-01 : f32
    %163 = vector.broadcast %cst_99 : f32 to vector<8x128xf32>
    %164 = arith.mulf %163, %160 : vector<8x128xf32>
    %165 = arith.select %162, %160, %164 : vector<8x128xi1>, vector<8x128xf32>
    %166 = arith.truncf %165 : vector<8x128xf32> to vector<8x128xbf16>
    %c13 = arith.constant 13 : index
    %c0_100 = arith.constant 0 : index
    %c0_101 = arith.constant 0 : index
    %167 = vector.load %arg3[%c13, %c0_100, %c0_101] : memref<24x128x128xbf16, #tpu.memory_space<vmem>>, vector<1x128x128xbf16>
    %168 = vector.shape_cast %167 : vector<1x128x128xbf16> to vector<128x128xbf16>
    %cst_102 = arith.constant dense<0.000000e+00> : vector<8x128xf32>
    %169 = tpu.matmul %166, %168, %cst_102 {dimension_numbers = #tpu.dot_dimension_numbers<[1], [0], [0], [1], [0, 0, 1, 1], [], []>} : vector<8x128xbf16>, vector<128x128xbf16>, vector<8x128xf32> -> vector<8x128xf32>
    %c13_103 = arith.constant 13 : index
    %c0_104 = arith.constant 0 : index
    %c0_105 = arith.constant 0 : index
    %170 = vector.load %arg4[%c13_103, %c0_104, %c0_105] : memref<24x1x128xf32, #tpu.memory_space<vmem>>, vector<1x1x128xf32>
    %171 = vector.shape_cast %170 : vector<1x1x128xf32> to vector<1x128xf32>
    %172 = vector.broadcast %171 : vector<1x128xf32> to vector<8x128xf32>
    %173 = arith.addf %169, %172 : vector<8x128xf32>
    %cst_106 = arith.constant 0.000000e+00 : f32
    %174 = vector.broadcast %cst_106 : f32 to vector<8x128xf32>
    %175 = arith.cmpf oge, %173, %174 : vector<8x128xf32>
    %cst_107 = arith.constant 2.000000e-01 : f32
    %176 = vector.broadcast %cst_107 : f32 to vector<8x128xf32>
    %177 = arith.mulf %176, %173 : vector<8x128xf32>
    %178 = arith.select %175, %173, %177 : vector<8x128xi1>, vector<8x128xf32>
    %179 = arith.truncf %178 : vector<8x128xf32> to vector<8x128xbf16>
    %c14 = arith.constant 14 : index
    %c0_108 = arith.constant 0 : index
    %c0_109 = arith.constant 0 : index
    %180 = vector.load %arg3[%c14, %c0_108, %c0_109] : memref<24x128x128xbf16, #tpu.memory_space<vmem>>, vector<1x128x128xbf16>
    %181 = vector.shape_cast %180 : vector<1x128x128xbf16> to vector<128x128xbf16>
    %cst_110 = arith.constant dense<0.000000e+00> : vector<8x128xf32>
    %182 = tpu.matmul %179, %181, %cst_110 {dimension_numbers = #tpu.dot_dimension_numbers<[1], [0], [0], [1], [0, 0, 1, 1], [], []>} : vector<8x128xbf16>, vector<128x128xbf16>, vector<8x128xf32> -> vector<8x128xf32>
    %c14_111 = arith.constant 14 : index
    %c0_112 = arith.constant 0 : index
    %c0_113 = arith.constant 0 : index
    %183 = vector.load %arg4[%c14_111, %c0_112, %c0_113] : memref<24x1x128xf32, #tpu.memory_space<vmem>>, vector<1x1x128xf32>
    %184 = vector.shape_cast %183 : vector<1x1x128xf32> to vector<1x128xf32>
    %185 = vector.broadcast %184 : vector<1x128xf32> to vector<8x128xf32>
    %186 = arith.addf %182, %185 : vector<8x128xf32>
    %cst_114 = arith.constant 0.000000e+00 : f32
    %187 = vector.broadcast %cst_114 : f32 to vector<8x128xf32>
    %188 = arith.cmpf oge, %186, %187 : vector<8x128xf32>
    %cst_115 = arith.constant 2.000000e-01 : f32
    %189 = vector.broadcast %cst_115 : f32 to vector<8x128xf32>
    %190 = arith.mulf %189, %186 : vector<8x128xf32>
    %191 = arith.select %188, %186, %190 : vector<8x128xi1>, vector<8x128xf32>
    %192 = arith.truncf %191 : vector<8x128xf32> to vector<8x128xbf16>
    %c15 = arith.constant 15 : index
    %c0_116 = arith.constant 0 : index
    %c0_117 = arith.constant 0 : index
    %193 = vector.load %arg3[%c15, %c0_116, %c0_117] : memref<24x128x128xbf16, #tpu.memory_space<vmem>>, vector<1x128x128xbf16>
    %194 = vector.shape_cast %193 : vector<1x128x128xbf16> to vector<128x128xbf16>
    %cst_118 = arith.constant dense<0.000000e+00> : vector<8x128xf32>
    %195 = tpu.matmul %192, %194, %cst_118 {dimension_numbers = #tpu.dot_dimension_numbers<[1], [0], [0], [1], [0, 0, 1, 1], [], []>} : vector<8x128xbf16>, vector<128x128xbf16>, vector<8x128xf32> -> vector<8x128xf32>
    %c15_119 = arith.constant 15 : index
    %c0_120 = arith.constant 0 : index
    %c0_121 = arith.constant 0 : index
    %196 = vector.load %arg4[%c15_119, %c0_120, %c0_121] : memref<24x1x128xf32, #tpu.memory_space<vmem>>, vector<1x1x128xf32>
    %197 = vector.shape_cast %196 : vector<1x1x128xf32> to vector<1x128xf32>
    %198 = vector.broadcast %197 : vector<1x128xf32> to vector<8x128xf32>
    %199 = arith.addf %195, %198 : vector<8x128xf32>
    %200 = arith.addf %178, %199 : vector<8x128xf32>
    %201 = arith.truncf %200 : vector<8x128xf32> to vector<8x128xbf16>
    %c16 = arith.constant 16 : index
    %c0_122 = arith.constant 0 : index
    %c0_123 = arith.constant 0 : index
    %202 = vector.load %arg3[%c16, %c0_122, %c0_123] : memref<24x128x128xbf16, #tpu.memory_space<vmem>>, vector<1x128x128xbf16>
    %203 = vector.shape_cast %202 : vector<1x128x128xbf16> to vector<128x128xbf16>
    %cst_124 = arith.constant dense<0.000000e+00> : vector<8x128xf32>
    %204 = tpu.matmul %201, %203, %cst_124 {dimension_numbers = #tpu.dot_dimension_numbers<[1], [0], [0], [1], [0, 0, 1, 1], [], []>} : vector<8x128xbf16>, vector<128x128xbf16>, vector<8x128xf32> -> vector<8x128xf32>
    %c16_125 = arith.constant 16 : index
    %c0_126 = arith.constant 0 : index
    %c0_127 = arith.constant 0 : index
    %205 = vector.load %arg4[%c16_125, %c0_126, %c0_127] : memref<24x1x128xf32, #tpu.memory_space<vmem>>, vector<1x1x128xf32>
    %206 = vector.shape_cast %205 : vector<1x1x128xf32> to vector<1x128xf32>
    %207 = vector.broadcast %206 : vector<1x128xf32> to vector<8x128xf32>
    %208 = arith.addf %204, %207 : vector<8x128xf32>
    %cst_128 = arith.constant 0.000000e+00 : f32
    %209 = vector.broadcast %cst_128 : f32 to vector<8x128xf32>
    %210 = arith.cmpf oge, %208, %209 : vector<8x128xf32>
    %cst_129 = arith.constant 2.000000e-01 : f32
    %211 = vector.broadcast %cst_129 : f32 to vector<8x128xf32>
    %212 = arith.mulf %211, %208 : vector<8x128xf32>
    %213 = arith.select %210, %208, %212 : vector<8x128xi1>, vector<8x128xf32>
    %214 = arith.truncf %213 : vector<8x128xf32> to vector<8x128xbf16>
    %c17 = arith.constant 17 : index
    %c0_130 = arith.constant 0 : index
    %c0_131 = arith.constant 0 : index
    %215 = vector.load %arg3[%c17, %c0_130, %c0_131] : memref<24x128x128xbf16, #tpu.memory_space<vmem>>, vector<1x128x128xbf16>
    %216 = vector.shape_cast %215 : vector<1x128x128xbf16> to vector<128x128xbf16>
    %cst_132 = arith.constant dense<0.000000e+00> : vector<8x128xf32>
    %217 = tpu.matmul %214, %216, %cst_132 {dimension_numbers = #tpu.dot_dimension_numbers<[1], [0], [0], [1], [0, 0, 1, 1], [], []>} : vector<8x128xbf16>, vector<128x128xbf16>, vector<8x128xf32> -> vector<8x128xf32>
    %c17_133 = arith.constant 17 : index
    %c0_134 = arith.constant 0 : index
    %c0_135 = arith.constant 0 : index
    %218 = vector.load %arg4[%c17_133, %c0_134, %c0_135] : memref<24x1x128xf32, #tpu.memory_space<vmem>>, vector<1x1x128xf32>
    %219 = vector.shape_cast %218 : vector<1x1x128xf32> to vector<1x128xf32>
    %220 = vector.broadcast %219 : vector<1x128xf32> to vector<8x128xf32>
    %221 = arith.addf %217, %220 : vector<8x128xf32>
    %222 = arith.addf %200, %221 : vector<8x128xf32>
    %223 = arith.truncf %222 : vector<8x128xf32> to vector<8x128xbf16>
    %c18 = arith.constant 18 : index
    %c0_136 = arith.constant 0 : index
    %c0_137 = arith.constant 0 : index
    %224 = vector.load %arg3[%c18, %c0_136, %c0_137] : memref<24x128x128xbf16, #tpu.memory_space<vmem>>, vector<1x128x128xbf16>
    %225 = vector.shape_cast %224 : vector<1x128x128xbf16> to vector<128x128xbf16>
    %cst_138 = arith.constant dense<0.000000e+00> : vector<8x128xf32>
    %226 = tpu.matmul %223, %225, %cst_138 {dimension_numbers = #tpu.dot_dimension_numbers<[1], [0], [0], [1], [0, 0, 1, 1], [], []>} : vector<8x128xbf16>, vector<128x128xbf16>, vector<8x128xf32> -> vector<8x128xf32>
    %c18_139 = arith.constant 18 : index
    %c0_140 = arith.constant 0 : index
    %c0_141 = arith.constant 0 : index
    %227 = vector.load %arg4[%c18_139, %c0_140, %c0_141] : memref<24x1x128xf32, #tpu.memory_space<vmem>>, vector<1x1x128xf32>
    %228 = vector.shape_cast %227 : vector<1x1x128xf32> to vector<1x128xf32>
    %229 = vector.broadcast %228 : vector<1x128xf32> to vector<8x128xf32>
    %230 = arith.addf %226, %229 : vector<8x128xf32>
    %cst_142 = arith.constant 0.000000e+00 : f32
    %231 = vector.broadcast %cst_142 : f32 to vector<8x128xf32>
    %232 = arith.cmpf oge, %230, %231 : vector<8x128xf32>
    %cst_143 = arith.constant 2.000000e-01 : f32
    %233 = vector.broadcast %cst_143 : f32 to vector<8x128xf32>
    %234 = arith.mulf %233, %230 : vector<8x128xf32>
    %235 = arith.select %232, %230, %234 : vector<8x128xi1>, vector<8x128xf32>
    %236 = arith.truncf %235 : vector<8x128xf32> to vector<8x128xbf16>
    %c19 = arith.constant 19 : index
    %c0_144 = arith.constant 0 : index
    %c0_145 = arith.constant 0 : index
    %237 = vector.load %arg3[%c19, %c0_144, %c0_145] : memref<24x128x128xbf16, #tpu.memory_space<vmem>>, vector<1x128x128xbf16>
    %238 = vector.shape_cast %237 : vector<1x128x128xbf16> to vector<128x128xbf16>
    %cst_146 = arith.constant dense<0.000000e+00> : vector<8x128xf32>
    %239 = tpu.matmul %236, %238, %cst_146 {dimension_numbers = #tpu.dot_dimension_numbers<[1], [0], [0], [1], [0, 0, 1, 1], [], []>} : vector<8x128xbf16>, vector<128x128xbf16>, vector<8x128xf32> -> vector<8x128xf32>
    %c19_147 = arith.constant 19 : index
    %c0_148 = arith.constant 0 : index
    %c0_149 = arith.constant 0 : index
    %240 = vector.load %arg4[%c19_147, %c0_148, %c0_149] : memref<24x1x128xf32, #tpu.memory_space<vmem>>, vector<1x1x128xf32>
    %241 = vector.shape_cast %240 : vector<1x1x128xf32> to vector<1x128xf32>
    %242 = vector.broadcast %241 : vector<1x128xf32> to vector<8x128xf32>
    %243 = arith.addf %239, %242 : vector<8x128xf32>
    %cst_150 = arith.constant 0.000000e+00 : f32
    %244 = vector.broadcast %cst_150 : f32 to vector<8x128xf32>
    %245 = arith.cmpf oge, %243, %244 : vector<8x128xf32>
    %cst_151 = arith.constant 2.000000e-01 : f32
    %246 = vector.broadcast %cst_151 : f32 to vector<8x128xf32>
    %247 = arith.mulf %246, %243 : vector<8x128xf32>
    %248 = arith.select %245, %243, %247 : vector<8x128xi1>, vector<8x128xf32>
    %249 = arith.truncf %248 : vector<8x128xf32> to vector<8x128xbf16>
    %c20 = arith.constant 20 : index
    %c0_152 = arith.constant 0 : index
    %c0_153 = arith.constant 0 : index
    %250 = vector.load %arg3[%c20, %c0_152, %c0_153] : memref<24x128x128xbf16, #tpu.memory_space<vmem>>, vector<1x128x128xbf16>
    %251 = vector.shape_cast %250 : vector<1x128x128xbf16> to vector<128x128xbf16>
    %cst_154 = arith.constant dense<0.000000e+00> : vector<8x128xf32>
    %252 = tpu.matmul %249, %251, %cst_154 {dimension_numbers = #tpu.dot_dimension_numbers<[1], [0], [0], [1], [0, 0, 1, 1], [], []>} : vector<8x128xbf16>, vector<128x128xbf16>, vector<8x128xf32> -> vector<8x128xf32>
    %c20_155 = arith.constant 20 : index
    %c0_156 = arith.constant 0 : index
    %c0_157 = arith.constant 0 : index
    %253 = vector.load %arg4[%c20_155, %c0_156, %c0_157] : memref<24x1x128xf32, #tpu.memory_space<vmem>>, vector<1x1x128xf32>
    %254 = vector.shape_cast %253 : vector<1x1x128xf32> to vector<1x128xf32>
    %255 = vector.broadcast %254 : vector<1x128xf32> to vector<8x128xf32>
    %256 = arith.addf %252, %255 : vector<8x128xf32>
    %257 = arith.addf %235, %256 : vector<8x128xf32>
    %258 = arith.truncf %257 : vector<8x128xf32> to vector<8x128xbf16>
    %c21 = arith.constant 21 : index
    %c0_158 = arith.constant 0 : index
    %c0_159 = arith.constant 0 : index
    %259 = vector.load %arg3[%c21, %c0_158, %c0_159] : memref<24x128x128xbf16, #tpu.memory_space<vmem>>, vector<1x128x128xbf16>
    %260 = vector.shape_cast %259 : vector<1x128x128xbf16> to vector<128x128xbf16>
    %cst_160 = arith.constant dense<0.000000e+00> : vector<8x128xf32>
    %261 = tpu.matmul %258, %260, %cst_160 {dimension_numbers = #tpu.dot_dimension_numbers<[1], [0], [0], [1], [0, 0, 1, 1], [], []>} : vector<8x128xbf16>, vector<128x128xbf16>, vector<8x128xf32> -> vector<8x128xf32>
    %c21_161 = arith.constant 21 : index
    %c0_162 = arith.constant 0 : index
    %c0_163 = arith.constant 0 : index
    %262 = vector.load %arg4[%c21_161, %c0_162, %c0_163] : memref<24x1x128xf32, #tpu.memory_space<vmem>>, vector<1x1x128xf32>
    %263 = vector.shape_cast %262 : vector<1x1x128xf32> to vector<1x128xf32>
    %264 = vector.broadcast %263 : vector<1x128xf32> to vector<8x128xf32>
    %265 = arith.addf %261, %264 : vector<8x128xf32>
    %cst_164 = arith.constant 0.000000e+00 : f32
    %266 = vector.broadcast %cst_164 : f32 to vector<8x128xf32>
    %267 = arith.cmpf oge, %265, %266 : vector<8x128xf32>
    %cst_165 = arith.constant 2.000000e-01 : f32
    %268 = vector.broadcast %cst_165 : f32 to vector<8x128xf32>
    %269 = arith.mulf %268, %265 : vector<8x128xf32>
    %270 = arith.select %267, %265, %269 : vector<8x128xi1>, vector<8x128xf32>
    %271 = arith.truncf %270 : vector<8x128xf32> to vector<8x128xbf16>
    %c22 = arith.constant 22 : index
    %c0_166 = arith.constant 0 : index
    %c0_167 = arith.constant 0 : index
    %272 = vector.load %arg3[%c22, %c0_166, %c0_167] : memref<24x128x128xbf16, #tpu.memory_space<vmem>>, vector<1x128x128xbf16>
    %273 = vector.shape_cast %272 : vector<1x128x128xbf16> to vector<128x128xbf16>
    %cst_168 = arith.constant dense<0.000000e+00> : vector<8x128xf32>
    %274 = tpu.matmul %271, %273, %cst_168 {dimension_numbers = #tpu.dot_dimension_numbers<[1], [0], [0], [1], [0, 0, 1, 1], [], []>} : vector<8x128xbf16>, vector<128x128xbf16>, vector<8x128xf32> -> vector<8x128xf32>
    %c22_169 = arith.constant 22 : index
    %c0_170 = arith.constant 0 : index
    %c0_171 = arith.constant 0 : index
    %275 = vector.load %arg4[%c22_169, %c0_170, %c0_171] : memref<24x1x128xf32, #tpu.memory_space<vmem>>, vector<1x1x128xf32>
    %276 = vector.shape_cast %275 : vector<1x1x128xf32> to vector<1x128xf32>
    %277 = vector.broadcast %276 : vector<1x128xf32> to vector<8x128xf32>
    %278 = arith.addf %274, %277 : vector<8x128xf32>
    %279 = arith.addf %257, %278 : vector<8x128xf32>
    %280 = arith.truncf %279 : vector<8x128xf32> to vector<8x128xbf16>
    %c23 = arith.constant 23 : index
    %c0_172 = arith.constant 0 : index
    %c0_173 = arith.constant 0 : index
    %281 = vector.load %arg3[%c23, %c0_172, %c0_173] : memref<24x128x128xbf16, #tpu.memory_space<vmem>>, vector<1x128x128xbf16>
    %282 = vector.shape_cast %281 : vector<1x128x128xbf16> to vector<128x128xbf16>
    %cst_174 = arith.constant dense<0.000000e+00> : vector<8x128xf32>
    %283 = tpu.matmul %280, %282, %cst_174 {dimension_numbers = #tpu.dot_dimension_numbers<[1], [0], [0], [1], [0, 0, 1, 1], [], []>} : vector<8x128xbf16>, vector<128x128xbf16>, vector<8x128xf32> -> vector<8x128xf32>
    %c23_175 = arith.constant 23 : index
    %c0_176 = arith.constant 0 : index
    %c0_177 = arith.constant 0 : index
    %284 = vector.load %arg4[%c23_175, %c0_176, %c0_177] : memref<24x1x128xf32, #tpu.memory_space<vmem>>, vector<1x1x128xf32>
    %285 = vector.shape_cast %284 : vector<1x1x128xf32> to vector<1x128xf32>
    %286 = vector.broadcast %285 : vector<1x128xf32> to vector<8x128xf32>
    %287 = arith.addf %283, %286 : vector<8x128xf32>
    %288 = arith.addf %287, %146 : vector<8x128xf32>
    %c0_178 = arith.constant 0 : index
    %c0_179 = arith.constant 0 : index
    %289 = vector.load %arg5[%c0_178, %c0_179] : memref<8x128xf32, #tpu.memory_space<vmem>>, vector<8x128xf32>
    tpu.vector_store %arg5[%c0_178, %c0_179], %288 {strides = array<i32>} : memref<8x128xf32, #tpu.memory_space<vmem>>, vector<8x128xf32>,
    return
  }
  func.func @transform_0(%arg0: i32) -> (i32, i32) {
    %c0_i32 = arith.constant 0 : i32
    %c0_i32_0 = arith.constant 0 : i32
    return %arg0, %c0_i32 : i32, i32
  }
  func.func @transform_1(%arg0: i32) -> (i32, i32) {
    %c0_i32 = arith.constant 0 : i32
    %c0_i32_0 = arith.constant 0 : i32
    return %arg0, %c0_i32 : i32, i32
  }
  func.func @transform_2(%arg0: i32) -> (i32, i32, i32) {
    %c0_i32 = arith.constant 0 : i32
    %c0_i32_0 = arith.constant 0 : i32
    %c0_i32_1 = arith.constant 0 : i32
    %c0_i32_2 = arith.constant 0 : i32
    return %c0_i32, %c0_i32_0, %c0_i32_1 : i32, i32, i32
  }
  func.func @transform_3(%arg0: i32) -> (i32, i32, i32) {
    %c0_i32 = arith.constant 0 : i32
    %c0_i32_0 = arith.constant 0 : i32
    %c0_i32_1 = arith.constant 0 : i32
    %c0_i32_2 = arith.constant 0 : i32
    return %c0_i32, %c0_i32_0, %c0_i32_1 : i32, i32, i32
  }
  func.func @transform_4(%arg0: i32) -> (i32, i32) {
    %c0_i32 = arith.constant 0 : i32
    %c0_i32_0 = arith.constant 0 : i32
    return %arg0, %c0_i32 : i32, i32
  }
}

module attributes {stable_mosaic.version = 11 : i64} {
  func.func @kernel(%arg0: i32, %arg1: memref<8x128xf32, #tpu.memory_space<vmem>>, %arg2: memref<8x128xf32, #tpu.memory_space<vmem>>, %arg3: memref<24x128x128xbf16, #tpu.memory_space<vmem>>, %arg4: memref<24x1x128xf32, #tpu.memory_space<vmem>>, %arg5: memref<8x128xf32, #tpu.memory_space<vmem>>) attributes {dimension_semantics = [#tpu.dimension_semantics<parallel>], iteration_bounds = array<i64: 1>, scalar_prefetch = 0 : i64, scratch_operands = 0 : i64, tpu.core_type = #tpu.core_type<tc>, window_params = [{transform_indices = @transform_0, window_bounds = array<i64: 8, 128>}, {transform_indices = @transform_1, window_bounds = array<i64: 8, 128>}, {pipeline_mode = #tpu.pipeline_mode<synchronous>, transform_indices = @transform_2, window_bounds = array<i64: 24, 128, 128>}, {pipeline_mode = #tpu.pipeline_mode<synchronous>, transform_indices = @transform_3, window_bounds = array<i64: 24, 1, 128>}, {transform_indices = @transform_4, window_bounds = array<i64: 8, 128>}]} {
    %c0 = arith.constant 0 : index
    %c0_0 = arith.constant 0 : index
    %0 = vector.load %arg1[%c0, %c0_0] : memref<8x128xf32, #tpu.memory_space<vmem>>, vector<8x128xf32>
    %1 = arith.truncf %0 : vector<8x128xf32> to vector<8x128xbf16>
    %c0_1 = arith.constant 0 : index
    %c0_2 = arith.constant 0 : index
    %c0_3 = arith.constant 0 : index
    %2 = vector.load %arg3[%c0_1, %c0_2, %c0_3] : memref<24x128x128xbf16, #tpu.memory_space<vmem>>, vector<1x128x128xbf16>
    %3 = vector.shape_cast %2 : vector<1x128x128xbf16> to vector<128x128xbf16>
    %cst = arith.constant dense<0.000000e+00> : vector<8x128xf32>
    %4 = tpu.matmul %1, %3, %cst {dimension_numbers = #tpu.dot_dimension_numbers<[1], [0], [0], [1], [0, 0, 1, 1], [], []>} : vector<8x128xbf16>, vector<128x128xbf16>, vector<8x128xf32> -> vector<8x128xf32>
    %c0_4 = arith.constant 0 : index
    %c0_5 = arith.constant 0 : index
    %c0_6 = arith.constant 0 : index
    %5 = vector.load %arg4[%c0_4, %c0_5, %c0_6] : memref<24x1x128xf32, #tpu.memory_space<vmem>>, vector<1x1x128xf32>
    %6 = vector.shape_cast %5 : vector<1x1x128xf32> to vector<1x128xf32>
    %7 = vector.broadcast %6 : vector<1x128xf32> to vector<8x128xf32>
    %8 = arith.addf %4, %7 : vector<8x128xf32>
    %cst_7 = arith.constant 0.000000e+00 : f32
    %9 = vector.broadcast %cst_7 : f32 to vector<8x128xf32>
    %10 = arith.cmpf oge, %8, %9 : vector<8x128xf32>
    %cst_8 = arith.constant 2.000000e-01 : f32
    %11 = vector.broadcast %cst_8 : f32 to vector<8x128xf32>
    %12 = arith.mulf %11, %8 : vector<8x128xf32>
    %13 = arith.select %10, %8, %12 : vector<8x128xi1>, vector<8x128xf32>
    %14 = arith.truncf %13 : vector<8x128xf32> to vector<8x128xbf16>
    %c1 = arith.constant 1 : index
    %c0_9 = arith.constant 0 : index
    %c0_10 = arith.constant 0 : index
    %15 = vector.load %arg3[%c1, %c0_9, %c0_10] : memref<24x128x128xbf16, #tpu.memory_space<vmem>>, vector<1x128x128xbf16>
    %16 = vector.shape_cast %15 : vector<1x128x128xbf16> to vector<128x128xbf16>
    %cst_11 = arith.constant dense<0.000000e+00> : vector<8x128xf32>
    %17 = tpu.matmul %14, %16, %cst_11 {dimension_numbers = #tpu.dot_dimension_numbers<[1], [0], [0], [1], [0, 0, 1, 1], [], []>} : vector<8x128xbf16>, vector<128x128xbf16>, vector<8x128xf32> -> vector<8x128xf32>
    %c1_12 = arith.constant 1 : index
    %c0_13 = arith.constant 0 : index
    %c0_14 = arith.constant 0 : index
    %18 = vector.load %arg4[%c1_12, %c0_13, %c0_14] : memref<24x1x128xf32, #tpu.memory_space<vmem>>, vector<1x1x128xf32>
    %19 = vector.shape_cast %18 : vector<1x1x128xf32> to vector<1x128xf32>
    %20 = vector.broadcast %19 : vector<1x128xf32> to vector<8x128xf32>
    %21 = arith.addf %17, %20 : vector<8x128xf32>
    %cst_15 = arith.constant 0.000000e+00 : f32
    %22 = vector.broadcast %cst_15 : f32 to vector<8x128xf32>
    %23 = arith.cmpf oge, %21, %22 : vector<8x128xf32>
    %cst_16 = arith.constant 2.000000e-01 : f32
    %24 = vector.broadcast %cst_16 : f32 to vector<8x128xf32>
    %25 = arith.mulf %24, %21 : vector<8x128xf32>
    %26 = arith.select %23, %21, %25 : vector<8x128xi1>, vector<8x128xf32>
    %27 = arith.truncf %26 : vector<8x128xf32> to vector<8x128xbf16>
    %c2 = arith.constant 2 : index
    %c0_17 = arith.constant 0 : index
    %c0_18 = arith.constant 0 : index
    %28 = vector.load %arg3[%c2, %c0_17, %c0_18] : memref<24x128x128xbf16, #tpu.memory_space<vmem>>, vector<1x128x128xbf16>
    %29 = vector.shape_cast %28 : vector<1x128x128xbf16> to vector<128x128xbf16>
    %cst_19 = arith.constant dense<0.000000e+00> : vector<8x128xf32>
    %30 = tpu.matmul %27, %29, %cst_19 {dimension_numbers = #tpu.dot_dimension_numbers<[1], [0], [0], [1], [0, 0, 1, 1], [], []>} : vector<8x128xbf16>, vector<128x128xbf16>, vector<8x128xf32> -> vector<8x128xf32>
    %c2_20 = arith.constant 2 : index
    %c0_21 = arith.constant 0 : index
    %c0_22 = arith.constant 0 : index
    %31 = vector.load %arg4[%c2_20, %c0_21, %c0_22] : memref<24x1x128xf32, #tpu.memory_space<vmem>>, vector<1x1x128xf32>
    %32 = vector.shape_cast %31 : vector<1x1x128xf32> to vector<1x128xf32>
    %33 = vector.broadcast %32 : vector<1x128xf32> to vector<8x128xf32>
    %34 = arith.addf %30, %33 : vector<8x128xf32>
    %cst_23 = arith.constant 0.000000e+00 : f32
    %35 = vector.broadcast %cst_23 : f32 to vector<8x128xf32>
    %36 = arith.cmpf oge, %34, %35 : vector<8x128xf32>
    %cst_24 = arith.constant 2.000000e-01 : f32
    %37 = vector.broadcast %cst_24 : f32 to vector<8x128xf32>
    %38 = arith.mulf %37, %34 : vector<8x128xf32>
    %39 = arith.select %36, %34, %38 : vector<8x128xi1>, vector<8x128xf32>
    %40 = arith.truncf %39 : vector<8x128xf32> to vector<8x128xbf16>
    %c3 = arith.constant 3 : index
    %c0_25 = arith.constant 0 : index
    %c0_26 = arith.constant 0 : index
    %41 = vector.load %arg3[%c3, %c0_25, %c0_26] : memref<24x128x128xbf16, #tpu.memory_space<vmem>>, vector<1x128x128xbf16>
    %42 = vector.shape_cast %41 : vector<1x128x128xbf16> to vector<128x128xbf16>
    %cst_27 = arith.constant dense<0.000000e+00> : vector<8x128xf32>
    %43 = tpu.matmul %40, %42, %cst_27 {dimension_numbers = #tpu.dot_dimension_numbers<[1], [0], [0], [1], [0, 0, 1, 1], [], []>} : vector<8x128xbf16>, vector<128x128xbf16>, vector<8x128xf32> -> vector<8x128xf32>
    %c3_28 = arith.constant 3 : index
    %c0_29 = arith.constant 0 : index
    %c0_30 = arith.constant 0 : index
    %44 = vector.load %arg4[%c3_28, %c0_29, %c0_30] : memref<24x1x128xf32, #tpu.memory_space<vmem>>, vector<1x1x128xf32>
    %45 = vector.shape_cast %44 : vector<1x1x128xf32> to vector<1x128xf32>
    %46 = vector.broadcast %45 : vector<1x128xf32> to vector<8x128xf32>
    %47 = arith.addf %43, %46 : vector<8x128xf32>
    %48 = arith.addf %26, %47 : vector<8x128xf32>
    %49 = arith.truncf %48 : vector<8x128xf32> to vector<8x128xbf16>
    %c4 = arith.constant 4 : index
    %c0_31 = arith.constant 0 : index
    %c0_32 = arith.constant 0 : index
    %50 = vector.load %arg3[%c4, %c0_31, %c0_32] : memref<24x128x128xbf16, #tpu.memory_space<vmem>>, vector<1x128x128xbf16>
    %51 = vector.shape_cast %50 : vector<1x128x128xbf16> to vector<128x128xbf16>
    %cst_33 = arith.constant dense<0.000000e+00> : vector<8x128xf32>
    %52 = tpu.matmul %49, %51, %cst_33 {dimension_numbers = #tpu.dot_dimension_numbers<[1], [0], [0], [1], [0, 0, 1, 1], [], []>} : vector<8x128xbf16>, vector<128x128xbf16>, vector<8x128xf32> -> vector<8x128xf32>
    %c4_34 = arith.constant 4 : index
    %c0_35 = arith.constant 0 : index
    %c0_36 = arith.constant 0 : index
    %53 = vector.load %arg4[%c4_34, %c0_35, %c0_36] : memref<24x1x128xf32, #tpu.memory_space<vmem>>, vector<1x1x128xf32>
    %54 = vector.shape_cast %53 : vector<1x1x128xf32> to vector<1x128xf32>
    %55 = vector.broadcast %54 : vector<1x128xf32> to vector<8x128xf32>
    %56 = arith.addf %52, %55 : vector<8x128xf32>
    %cst_37 = arith.constant 0.000000e+00 : f32
    %57 = vector.broadcast %cst_37 : f32 to vector<8x128xf32>
    %58 = arith.cmpf oge, %56, %57 : vector<8x128xf32>
    %cst_38 = arith.constant 2.000000e-01 : f32
    %59 = vector.broadcast %cst_38 : f32 to vector<8x128xf32>
    %60 = arith.mulf %59, %56 : vector<8x128xf32>
    %61 = arith.select %58, %56, %60 : vector<8x128xi1>, vector<8x128xf32>
    %62 = arith.truncf %61 : vector<8x128xf32> to vector<8x128xbf16>
    %c5 = arith.constant 5 : index
    %c0_39 = arith.constant 0 : index
    %c0_40 = arith.constant 0 : index
    %63 = vector.load %arg3[%c5, %c0_39, %c0_40] : memref<24x128x128xbf16, #tpu.memory_space<vmem>>, vector<1x128x128xbf16>
    %64 = vector.shape_cast %63 : vector<1x128x128xbf16> to vector<128x128xbf16>
    %cst_41 = arith.constant dense<0.000000e+00> : vector<8x128xf32>
    %65 = tpu.matmul %62, %64, %cst_41 {dimension_numbers = #tpu.dot_dimension_numbers<[1], [0], [0], [1], [0, 0, 1, 1], [], []>} : vector<8x128xbf16>, vector<128x128xbf16>, vector<8x128xf32> -> vector<8x128xf32>
    %c5_42 = arith.constant 5 : index
    %c0_43 = arith.constant 0 : index
    %c0_44 = arith.constant 0 : index
    %66 = vector.load %arg4[%c5_42, %c0_43, %c0_44] : memref<24x1x128xf32, #tpu.memory_space<vmem>>, vector<1x1x128xf32>
    %67 = vector.shape_cast %66 : vector<1x1x128xf32> to vector<1x128xf32>
    %68 = vector.broadcast %67 : vector<1x128xf32> to vector<8x128xf32>
    %69 = arith.addf %65, %68 : vector<8x128xf32>
    %70 = arith.addf %48, %69 : vector<8x128xf32>
    %71 = arith.truncf %70 : vector<8x128xf32> to vector<8x128xbf16>
    %c6 = arith.constant 6 : index
    %c0_45 = arith.constant 0 : index
    %c0_46 = arith.constant 0 : index
    %72 = vector.load %arg3[%c6, %c0_45, %c0_46] : memref<24x128x128xbf16, #tpu.memory_space<vmem>>, vector<1x128x128xbf16>
    %73 = vector.shape_cast %72 : vector<1x128x128xbf16> to vector<128x128xbf16>
    %cst_47 = arith.constant dense<0.000000e+00> : vector<8x128xf32>
    %74 = tpu.matmul %71, %73, %cst_47 {dimension_numbers = #tpu.dot_dimension_numbers<[1], [0], [0], [1], [0, 0, 1, 1], [], []>} : vector<8x128xbf16>, vector<128x128xbf16>, vector<8x128xf32> -> vector<8x128xf32>
    %c6_48 = arith.constant 6 : index
    %c0_49 = arith.constant 0 : index
    %c0_50 = arith.constant 0 : index
    %75 = vector.load %arg4[%c6_48, %c0_49, %c0_50] : memref<24x1x128xf32, #tpu.memory_space<vmem>>, vector<1x1x128xf32>
    %76 = vector.shape_cast %75 : vector<1x1x128xf32> to vector<1x128xf32>
    %77 = vector.broadcast %76 : vector<1x128xf32> to vector<8x128xf32>
    %78 = arith.addf %74, %77 : vector<8x128xf32>
    %cst_51 = arith.constant 0.000000e+00 : f32
    %79 = vector.broadcast %cst_51 : f32 to vector<8x128xf32>
    %80 = arith.cmpf oge, %78, %79 : vector<8x128xf32>
    %cst_52 = arith.constant 2.000000e-01 : f32
    %81 = vector.broadcast %cst_52 : f32 to vector<8x128xf32>
    %82 = arith.mulf %81, %78 : vector<8x128xf32>
    %83 = arith.select %80, %78, %82 : vector<8x128xi1>, vector<8x128xf32>
    %84 = arith.truncf %83 : vector<8x128xf32> to vector<8x128xbf16>
    %c7 = arith.constant 7 : index
    %c0_53 = arith.constant 0 : index
    %c0_54 = arith.constant 0 : index
    %85 = vector.load %arg3[%c7, %c0_53, %c0_54] : memref<24x128x128xbf16, #tpu.memory_space<vmem>>, vector<1x128x128xbf16>
    %86 = vector.shape_cast %85 : vector<1x128x128xbf16> to vector<128x128xbf16>
    %cst_55 = arith.constant dense<0.000000e+00> : vector<8x128xf32>
    %87 = tpu.matmul %84, %86, %cst_55 {dimension_numbers = #tpu.dot_dimension_numbers<[1], [0], [0], [1], [0, 0, 1, 1], [], []>} : vector<8x128xbf16>, vector<128x128xbf16>, vector<8x128xf32> -> vector<8x128xf32>
    %c7_56 = arith.constant 7 : index
    %c0_57 = arith.constant 0 : index
    %c0_58 = arith.constant 0 : index
    %88 = vector.load %arg4[%c7_56, %c0_57, %c0_58] : memref<24x1x128xf32, #tpu.memory_space<vmem>>, vector<1x1x128xf32>
    %89 = vector.shape_cast %88 : vector<1x1x128xf32> to vector<1x128xf32>
    %90 = vector.broadcast %89 : vector<1x128xf32> to vector<8x128xf32>
    %91 = arith.addf %87, %90 : vector<8x128xf32>
    %cst_59 = arith.constant 0.000000e+00 : f32
    %92 = vector.broadcast %cst_59 : f32 to vector<8x128xf32>
    %93 = arith.cmpf oge, %91, %92 : vector<8x128xf32>
    %cst_60 = arith.constant 2.000000e-01 : f32
    %94 = vector.broadcast %cst_60 : f32 to vector<8x128xf32>
    %95 = arith.mulf %94, %91 : vector<8x128xf32>
    %96 = arith.select %93, %91, %95 : vector<8x128xi1>, vector<8x128xf32>
    %97 = arith.truncf %96 : vector<8x128xf32> to vector<8x128xbf16>
    %c8 = arith.constant 8 : index
    %c0_61 = arith.constant 0 : index
    %c0_62 = arith.constant 0 : index
    %98 = vector.load %arg3[%c8, %c0_61, %c0_62] : memref<24x128x128xbf16, #tpu.memory_space<vmem>>, vector<1x128x128xbf16>
    %99 = vector.shape_cast %98 : vector<1x128x128xbf16> to vector<128x128xbf16>
    %cst_63 = arith.constant dense<0.000000e+00> : vector<8x128xf32>
    %100 = tpu.matmul %97, %99, %cst_63 {dimension_numbers = #tpu.dot_dimension_numbers<[1], [0], [0], [1], [0, 0, 1, 1], [], []>} : vector<8x128xbf16>, vector<128x128xbf16>, vector<8x128xf32> -> vector<8x128xf32>
    %c8_64 = arith.constant 8 : index
    %c0_65 = arith.constant 0 : index
    %c0_66 = arith.constant 0 : index
    %101 = vector.load %arg4[%c8_64, %c0_65, %c0_66] : memref<24x1x128xf32, #tpu.memory_space<vmem>>, vector<1x1x128xf32>
    %102 = vector.shape_cast %101 : vector<1x1x128xf32> to vector<1x128xf32>
    %103 = vector.broadcast %102 : vector<1x128xf32> to vector<8x128xf32>
    %104 = arith.addf %100, %103 : vector<8x128xf32>
    %105 = arith.addf %83, %104 : vector<8x128xf32>
    %106 = arith.truncf %105 : vector<8x128xf32> to vector<8x128xbf16>
    %c9 = arith.constant 9 : index
    %c0_67 = arith.constant 0 : index
    %c0_68 = arith.constant 0 : index
    %107 = vector.load %arg3[%c9, %c0_67, %c0_68] : memref<24x128x128xbf16, #tpu.memory_space<vmem>>, vector<1x128x128xbf16>
    %108 = vector.shape_cast %107 : vector<1x128x128xbf16> to vector<128x128xbf16>
    %cst_69 = arith.constant dense<0.000000e+00> : vector<8x128xf32>
    %109 = tpu.matmul %106, %108, %cst_69 {dimension_numbers = #tpu.dot_dimension_numbers<[1], [0], [0], [1], [0, 0, 1, 1], [], []>} : vector<8x128xbf16>, vector<128x128xbf16>, vector<8x128xf32> -> vector<8x128xf32>
    %c9_70 = arith.constant 9 : index
    %c0_71 = arith.constant 0 : index
    %c0_72 = arith.constant 0 : index
    %110 = vector.load %arg4[%c9_70, %c0_71, %c0_72] : memref<24x1x128xf32, #tpu.memory_space<vmem>>, vector<1x1x128xf32>
    %111 = vector.shape_cast %110 : vector<1x1x128xf32> to vector<1x128xf32>
    %112 = vector.broadcast %111 : vector<1x128xf32> to vector<8x128xf32>
    %113 = arith.addf %109, %112 : vector<8x128xf32>
    %cst_73 = arith.constant 0.000000e+00 : f32
    %114 = vector.broadcast %cst_73 : f32 to vector<8x128xf32>
    %115 = arith.cmpf oge, %113, %114 : vector<8x128xf32>
    %cst_74 = arith.constant 2.000000e-01 : f32
    %116 = vector.broadcast %cst_74 : f32 to vector<8x128xf32>
    %117 = arith.mulf %116, %113 : vector<8x128xf32>
    %118 = arith.select %115, %113, %117 : vector<8x128xi1>, vector<8x128xf32>
    %119 = arith.truncf %118 : vector<8x128xf32> to vector<8x128xbf16>
    %c10 = arith.constant 10 : index
    %c0_75 = arith.constant 0 : index
    %c0_76 = arith.constant 0 : index
    %120 = vector.load %arg3[%c10, %c0_75, %c0_76] : memref<24x128x128xbf16, #tpu.memory_space<vmem>>, vector<1x128x128xbf16>
    %121 = vector.shape_cast %120 : vector<1x128x128xbf16> to vector<128x128xbf16>
    %cst_77 = arith.constant dense<0.000000e+00> : vector<8x128xf32>
    %122 = tpu.matmul %119, %121, %cst_77 {dimension_numbers = #tpu.dot_dimension_numbers<[1], [0], [0], [1], [0, 0, 1, 1], [], []>} : vector<8x128xbf16>, vector<128x128xbf16>, vector<8x128xf32> -> vector<8x128xf32>
    %c10_78 = arith.constant 10 : index
    %c0_79 = arith.constant 0 : index
    %c0_80 = arith.constant 0 : index
    %123 = vector.load %arg4[%c10_78, %c0_79, %c0_80] : memref<24x1x128xf32, #tpu.memory_space<vmem>>, vector<1x1x128xf32>
    %124 = vector.shape_cast %123 : vector<1x1x128xf32> to vector<1x128xf32>
    %125 = vector.broadcast %124 : vector<1x128xf32> to vector<8x128xf32>
    %126 = arith.addf %122, %125 : vector<8x128xf32>
    %127 = arith.addf %105, %126 : vector<8x128xf32>
    %128 = arith.truncf %127 : vector<8x128xf32> to vector<8x128xbf16>
    %c11 = arith.constant 11 : index
    %c0_81 = arith.constant 0 : index
    %c0_82 = arith.constant 0 : index
    %129 = vector.load %arg3[%c11, %c0_81, %c0_82] : memref<24x128x128xbf16, #tpu.memory_space<vmem>>, vector<1x128x128xbf16>
    %130 = vector.shape_cast %129 : vector<1x128x128xbf16> to vector<128x128xbf16>
    %cst_83 = arith.constant dense<0.000000e+00> : vector<8x128xf32>
    %131 = tpu.matmul %128, %130, %cst_83 {dimension_numbers = #tpu.dot_dimension_numbers<[1], [0], [0], [1], [0, 0, 1, 1], [], []>} : vector<8x128xbf16>, vector<128x128xbf16>, vector<8x128xf32> -> vector<8x128xf32>
    %c11_84 = arith.constant 11 : index
    %c0_85 = arith.constant 0 : index
    %c0_86 = arith.constant 0 : index
    %132 = vector.load %arg4[%c11_84, %c0_85, %c0_86] : memref<24x1x128xf32, #tpu.memory_space<vmem>>, vector<1x1x128xf32>
    %133 = vector.shape_cast %132 : vector<1x1x128xf32> to vector<1x128xf32>
    %134 = vector.broadcast %133 : vector<1x128xf32> to vector<8x128xf32>
    %135 = arith.addf %131, %134 : vector<8x128xf32>
    %136 = tpu.iota {dimensions = array<i32: 1>} : vector<8x128xi32>
    %c36_i32 = arith.constant 36 : i32
    %137 = vector.broadcast %c36_i32 : i32 to vector<8x128xi32>
    %138 = arith.cmpi sge, %136, %137 : vector<8x128xi32>
    %c52_i32 = arith.constant 52 : i32
    %139 = vector.broadcast %c52_i32 : i32 to vector<8x128xi32>
    %140 = arith.cmpi slt, %136, %139 : vector<8x128xi32>
    %141 = arith.andi %138, %140 : vector<8x128xi1>
    %cst_87 = arith.constant -1.000000e+02 : f32
    %cst_88 = arith.constant 1.000000e+02 : f32
    %142 = vector.broadcast %cst_87 : f32 to vector<8x128xf32>
    %143 = arith.maximumf %142, %135 : vector<8x128xf32>
    %144 = vector.broadcast %cst_88 : f32 to vector<8x128xf32>
    %145 = arith.minimumf %144, %143 : vector<8x128xf32>
    %146 = arith.select %141, %145, %135 : vector<8x128xi1>, vector<8x128xf32>
    %cst_89 = arith.constant 5.000000e-01 : f32
    %147 = vector.broadcast %cst_89 : f32 to vector<8x128xf32>
    %148 = arith.mulf %147, %146 : vector<8x128xf32>
    %149 = math.exp %148 : vector<8x128xf32>
    %c0_90 = arith.constant 0 : index
    %c0_91 = arith.constant 0 : index
    %150 = vector.load %arg2[%c0_90, %c0_91] : memref<8x128xf32, #tpu.memory_space<vmem>>, vector<8x128xf32>
    %151 = arith.mulf %150, %149 : vector<8x128xf32>
    %152 = arith.select %141, %151, %146 : vector<8x128xi1>, vector<8x128xf32>
    %153 = arith.truncf %152 : vector<8x128xf32> to vector<8x128xbf16>
    %c12 = arith.constant 12 : index
    %c0_92 = arith.constant 0 : index
    %c0_93 = arith.constant 0 : index
    %154 = vector.load %arg3[%c12, %c0_92, %c0_93] : memref<24x128x128xbf16, #tpu.memory_space<vmem>>, vector<1x128x128xbf16>
    %155 = vector.shape_cast %154 : vector<1x128x128xbf16> to vector<128x128xbf16>
    %cst_94 = arith.constant dense<0.000000e+00> : vector<8x128xf32>
    %156 = tpu.matmul %153, %155, %cst_94 {dimension_numbers = #tpu.dot_dimension_numbers<[1], [0], [0], [1], [0, 0, 1, 1], [], []>} : vector<8x128xbf16>, vector<128x128xbf16>, vector<8x128xf32> -> vector<8x128xf32>
    %c12_95 = arith.constant 12 : index
    %c0_96 = arith.constant 0 : index
    %c0_97 = arith.constant 0 : index
    %157 = vector.load %arg4[%c12_95, %c0_96, %c0_97] : memref<24x1x128xf32, #tpu.memory_space<vmem>>, vector<1x1x128xf32>
    %158 = vector.shape_cast %157 : vector<1x1x128xf32> to vector<1x128xf32>
    %159 = vector.broadcast %158 : vector<1x128xf32> to vector<8x128xf32>
    %160 = arith.addf %156, %159 : vector<8x128xf32>
    %cst_98 = arith.constant 0.000000e+00 : f32
    %161 = vector.broadcast %cst_98 : f32 to vector<8x128xf32>
    %162 = arith.cmpf oge, %160, %161 : vector<8x128xf32>
    %cst_99 = arith.constant 2.000000e-01 : f32
    %163 = vector.broadcast %cst_99 : f32 to vector<8x128xf32>
    %164 = arith.mulf %163, %160 : vector<8x128xf32>
    %165 = arith.select %162, %160, %164 : vector<8x128xi1>, vector<8x128xf32>
    %166 = arith.truncf %165 : vector<8x128xf32> to vector<8x128xbf16>
    %c13 = arith.constant 13 : index
    %c0_100 = arith.constant 0 : index
    %c0_101 = arith.constant 0 : index
    %167 = vector.load %arg3[%c13, %c0_100, %c0_101] : memref<24x128x128xbf16, #tpu.memory_space<vmem>>, vector<1x128x128xbf16>
    %168 = vector.shape_cast %167 : vector<1x128x128xbf16> to vector<128x128xbf16>
    %cst_102 = arith.constant dense<0.000000e+00> : vector<8x128xf32>
    %169 = tpu.matmul %166, %168, %cst_102 {dimension_numbers = #tpu.dot_dimension_numbers<[1], [0], [0], [1], [0, 0, 1, 1], [], []>} : vector<8x128xbf16>, vector<128x128xbf16>, vector<8x128xf32> -> vector<8x128xf32>
    %c13_103 = arith.constant 13 : index
    %c0_104 = arith.constant 0 : index
    %c0_105 = arith.constant 0 : index
    %170 = vector.load %arg4[%c13_103, %c0_104, %c0_105] : memref<24x1x128xf32, #tpu.memory_space<vmem>>, vector<1x1x128xf32>
    %171 = vector.shape_cast %170 : vector<1x1x128xf32> to vector<1x128xf32>
    %172 = vector.broadcast %171 : vector<1x128xf32> to vector<8x128xf32>
    %173 = arith.addf %169, %172 : vector<8x128xf32>
    %cst_106 = arith.constant 0.000000e+00 : f32
    %174 = vector.broadcast %cst_106 : f32 to vector<8x128xf32>
    %175 = arith.cmpf oge, %173, %174 : vector<8x128xf32>
    %cst_107 = arith.constant 2.000000e-01 : f32
    %176 = vector.broadcast %cst_107 : f32 to vector<8x128xf32>
    %177 = arith.mulf %176, %173 : vector<8x128xf32>
    %178 = arith.select %175, %173, %177 : vector<8x128xi1>, vector<8x128xf32>
    %179 = arith.truncf %178 : vector<8x128xf32> to vector<8x128xbf16>
    %c14 = arith.constant 14 : index
    %c0_108 = arith.constant 0 : index
    %c0_109 = arith.constant 0 : index
    %180 = vector.load %arg3[%c14, %c0_108, %c0_109] : memref<24x128x128xbf16, #tpu.memory_space<vmem>>, vector<1x128x128xbf16>
    %181 = vector.shape_cast %180 : vector<1x128x128xbf16> to vector<128x128xbf16>
    %cst_110 = arith.constant dense<0.000000e+00> : vector<8x128xf32>
    %182 = tpu.matmul %179, %181, %cst_110 {dimension_numbers = #tpu.dot_dimension_numbers<[1], [0], [0], [1], [0, 0, 1, 1], [], []>} : vector<8x128xbf16>, vector<128x128xbf16>, vector<8x128xf32> -> vector<8x128xf32>
    %c14_111 = arith.constant 14 : index
    %c0_112 = arith.constant 0 : index
    %c0_113 = arith.constant 0 : index
    %183 = vector.load %arg4[%c14_111, %c0_112, %c0_113] : memref<24x1x128xf32, #tpu.memory_space<vmem>>, vector<1x1x128xf32>
    %184 = vector.shape_cast %183 : vector<1x1x128xf32> to vector<1x128xf32>
    %185 = vector.broadcast %184 : vector<1x128xf32> to vector<8x128xf32>
    %186 = arith.addf %182, %185 : vector<8x128xf32>
    %cst_114 = arith.constant 0.000000e+00 : f32
    %187 = vector.broadcast %cst_114 : f32 to vector<8x128xf32>
    %188 = arith.cmpf oge, %186, %187 : vector<8x128xf32>
    %cst_115 = arith.constant 2.000000e-01 : f32
    %189 = vector.broadcast %cst_115 : f32 to vector<8x128xf32>
    %190 = arith.mulf %189, %186 : vector<8x128xf32>
    %191 = arith.select %188, %186, %190 : vector<8x128xi1>, vector<8x128xf32>
    %192 = arith.truncf %191 : vector<8x128xf32> to vector<8x128xbf16>
    %c15 = arith.constant 15 : index
    %c0_116 = arith.constant 0 : index
    %c0_117 = arith.constant 0 : index
    %193 = vector.load %arg3[%c15, %c0_116, %c0_117] : memref<24x128x128xbf16, #tpu.memory_space<vmem>>, vector<1x128x128xbf16>
    %194 = vector.shape_cast %193 : vector<1x128x128xbf16> to vector<128x128xbf16>
    %cst_118 = arith.constant dense<0.000000e+00> : vector<8x128xf32>
    %195 = tpu.matmul %192, %194, %cst_118 {dimension_numbers = #tpu.dot_dimension_numbers<[1], [0], [0], [1], [0, 0, 1, 1], [], []>} : vector<8x128xbf16>, vector<128x128xbf16>, vector<8x128xf32> -> vector<8x128xf32>
    %c15_119 = arith.constant 15 : index
    %c0_120 = arith.constant 0 : index
    %c0_121 = arith.constant 0 : index
    %196 = vector.load %arg4[%c15_119, %c0_120, %c0_121] : memref<24x1x128xf32, #tpu.memory_space<vmem>>, vector<1x1x128xf32>
    %197 = vector.shape_cast %196 : vector<1x1x128xf32> to vector<1x128xf32>
    %198 = vector.broadcast %197 : vector<1x128xf32> to vector<8x128xf32>
    %199 = arith.addf %195, %198 : vector<8x128xf32>
    %200 = arith.addf %178, %199 : vector<8x128xf32>
    %201 = arith.truncf %200 : vector<8x128xf32> to vector<8x128xbf16>
    %c16 = arith.constant 16 : index
    %c0_122 = arith.constant 0 : index
    %c0_123 = arith.constant 0 : index
    %202 = vector.load %arg3[%c16, %c0_122, %c0_123] : memref<24x128x128xbf16, #tpu.memory_space<vmem>>, vector<1x128x128xbf16>
    %203 = vector.shape_cast %202 : vector<1x128x128xbf16> to vector<128x128xbf16>
    %cst_124 = arith.constant dense<0.000000e+00> : vector<8x128xf32>
    %204 = tpu.matmul %201, %203, %cst_124 {dimension_numbers = #tpu.dot_dimension_numbers<[1], [0], [0], [1], [0, 0, 1, 1], [], []>} : vector<8x128xbf16>, vector<128x128xbf16>, vector<8x128xf32> -> vector<8x128xf32>
    %c16_125 = arith.constant 16 : index
    %c0_126 = arith.constant 0 : index
    %c0_127 = arith.constant 0 : index
    %205 = vector.load %arg4[%c16_125, %c0_126, %c0_127] : memref<24x1x128xf32, #tpu.memory_space<vmem>>, vector<1x1x128xf32>
    %206 = vector.shape_cast %205 : vector<1x1x128xf32> to vector<1x128xf32>
    %207 = vector.broadcast %206 : vector<1x128xf32> to vector<8x128xf32>
    %208 = arith.addf %204, %207 : vector<8x128xf32>
    %cst_128 = arith.constant 0.000000e+00 : f32
    %209 = vector.broadcast %cst_128 : f32 to vector<8x128xf32>
    %210 = arith.cmpf oge, %208, %209 : vector<8x128xf32>
    %cst_129 = arith.constant 2.000000e-01 : f32
    %211 = vector.broadcast %cst_129 : f32 to vector<8x128xf32>
    %212 = arith.mulf %211, %208 : vector<8x128xf32>
    %213 = arith.select %210, %208, %212 : vector<8x128xi1>, vector<8x128xf32>
    %214 = arith.truncf %213 : vector<8x128xf32> to vector<8x128xbf16>
    %c17 = arith.constant 17 : index
    %c0_130 = arith.constant 0 : index
    %c0_131 = arith.constant 0 : index
    %215 = vector.load %arg3[%c17, %c0_130, %c0_131] : memref<24x128x128xbf16, #tpu.memory_space<vmem>>, vector<1x128x128xbf16>
    %216 = vector.shape_cast %215 : vector<1x128x128xbf16> to vector<128x128xbf16>
    %cst_132 = arith.constant dense<0.000000e+00> : vector<8x128xf32>
    %217 = tpu.matmul %214, %216, %cst_132 {dimension_numbers = #tpu.dot_dimension_numbers<[1], [0], [0], [1], [0, 0, 1, 1], [], []>} : vector<8x128xbf16>, vector<128x128xbf16>, vector<8x128xf32> -> vector<8x128xf32>
    %c17_133 = arith.constant 17 : index
    %c0_134 = arith.constant 0 : index
    %c0_135 = arith.constant 0 : index
    %218 = vector.load %arg4[%c17_133, %c0_134, %c0_135] : memref<24x1x128xf32, #tpu.memory_space<vmem>>, vector<1x1x128xf32>
    %219 = vector.shape_cast %218 : vector<1x1x128xf32> to vector<1x128xf32>
    %220 = vector.broadcast %219 : vector<1x128xf32> to vector<8x128xf32>
    %221 = arith.addf %217, %220 : vector<8x128xf32>
    %222 = arith.addf %200, %221 : vector<8x128xf32>
    %223 = arith.truncf %222 : vector<8x128xf32> to vector<8x128xbf16>
    %c18 = arith.constant 18 : index
    %c0_136 = arith.constant 0 : index
    %c0_137 = arith.constant 0 : index
    %224 = vector.load %arg3[%c18, %c0_136, %c0_137] : memref<24x128x128xbf16, #tpu.memory_space<vmem>>, vector<1x128x128xbf16>
    %225 = vector.shape_cast %224 : vector<1x128x128xbf16> to vector<128x128xbf16>
    %cst_138 = arith.constant dense<0.000000e+00> : vector<8x128xf32>
    %226 = tpu.matmul %223, %225, %cst_138 {dimension_numbers = #tpu.dot_dimension_numbers<[1], [0], [0], [1], [0, 0, 1, 1], [], []>} : vector<8x128xbf16>, vector<128x128xbf16>, vector<8x128xf32> -> vector<8x128xf32>
    %c18_139 = arith.constant 18 : index
    %c0_140 = arith.constant 0 : index
    %c0_141 = arith.constant 0 : index
    %227 = vector.load %arg4[%c18_139, %c0_140, %c0_141] : memref<24x1x128xf32, #tpu.memory_space<vmem>>, vector<1x1x128xf32>
    %228 = vector.shape_cast %227 : vector<1x1x128xf32> to vector<1x128xf32>
    %229 = vector.broadcast %228 : vector<1x128xf32> to vector<8x128xf32>
    %230 = arith.addf %226, %229 : vector<8x128xf32>
    %cst_142 = arith.constant 0.000000e+00 : f32
    %231 = vector.broadcast %cst_142 : f32 to vector<8x128xf32>
    %232 = arith.cmpf oge, %230, %231 : vector<8x128xf32>
    %cst_143 = arith.constant 2.000000e-01 : f32
    %233 = vector.broadcast %cst_143 : f32 to vector<8x128xf32>
    %234 = arith.mulf %233, %230 : vector<8x128xf32>
    %235 = arith.select %232, %230, %234 : vector<8x128xi1>, vector<8x128xf32>
    %236 = arith.truncf %235 : vector<8x128xf32> to vector<8x128xbf16>
    %c19 = arith.constant 19 : index
    %c0_144 = arith.constant 0 : index
    %c0_145 = arith.constant 0 : index
    %237 = vector.load %arg3[%c19, %c0_144, %c0_145] : memref<24x128x128xbf16, #tpu.memory_space<vmem>>, vector<1x128x128xbf16>
    %238 = vector.shape_cast %237 : vector<1x128x128xbf16> to vector<128x128xbf16>
    %cst_146 = arith.constant dense<0.000000e+00> : vector<8x128xf32>
    %239 = tpu.matmul %236, %238, %cst_146 {dimension_numbers = #tpu.dot_dimension_numbers<[1], [0], [0], [1], [0, 0, 1, 1], [], []>} : vector<8x128xbf16>, vector<128x128xbf16>, vector<8x128xf32> -> vector<8x128xf32>
    %c19_147 = arith.constant 19 : index
    %c0_148 = arith.constant 0 : index
    %c0_149 = arith.constant 0 : index
    %240 = vector.load %arg4[%c19_147, %c0_148, %c0_149] : memref<24x1x128xf32, #tpu.memory_space<vmem>>, vector<1x1x128xf32>
    %241 = vector.shape_cast %240 : vector<1x1x128xf32> to vector<1x128xf32>
    %242 = vector.broadcast %241 : vector<1x128xf32> to vector<8x128xf32>
    %243 = arith.addf %239, %242 : vector<8x128xf32>
    %cst_150 = arith.constant 0.000000e+00 : f32
    %244 = vector.broadcast %cst_150 : f32 to vector<8x128xf32>
    %245 = arith.cmpf oge, %243, %244 : vector<8x128xf32>
    %cst_151 = arith.constant 2.000000e-01 : f32
    %246 = vector.broadcast %cst_151 : f32 to vector<8x128xf32>
    %247 = arith.mulf %246, %243 : vector<8x128xf32>
    %248 = arith.select %245, %243, %247 : vector<8x128xi1>, vector<8x128xf32>
    %249 = arith.truncf %248 : vector<8x128xf32> to vector<8x128xbf16>
    %c20 = arith.constant 20 : index
    %c0_152 = arith.constant 0 : index
    %c0_153 = arith.constant 0 : index
    %250 = vector.load %arg3[%c20, %c0_152, %c0_153] : memref<24x128x128xbf16, #tpu.memory_space<vmem>>, vector<1x128x128xbf16>
    %251 = vector.shape_cast %250 : vector<1x128x128xbf16> to vector<128x128xbf16>
    %cst_154 = arith.constant dense<0.000000e+00> : vector<8x128xf32>
    %252 = tpu.matmul %249, %251, %cst_154 {dimension_numbers = #tpu.dot_dimension_numbers<[1], [0], [0], [1], [0, 0, 1, 1], [], []>} : vector<8x128xbf16>, vector<128x128xbf16>, vector<8x128xf32> -> vector<8x128xf32>
    %c20_155 = arith.constant 20 : index
    %c0_156 = arith.constant 0 : index
    %c0_157 = arith.constant 0 : index
    %253 = vector.load %arg4[%c20_155, %c0_156, %c0_157] : memref<24x1x128xf32, #tpu.memory_space<vmem>>, vector<1x1x128xf32>
    %254 = vector.shape_cast %253 : vector<1x1x128xf32> to vector<1x128xf32>
    %255 = vector.broadcast %254 : vector<1x128xf32> to vector<8x128xf32>
    %256 = arith.addf %252, %255 : vector<8x128xf32>
    %257 = arith.addf %235, %256 : vector<8x128xf32>
    %258 = arith.truncf %257 : vector<8x128xf32> to vector<8x128xbf16>
    %c21 = arith.constant 21 : index
    %c0_158 = arith.constant 0 : index
    %c0_159 = arith.constant 0 : index
    %259 = vector.load %arg3[%c21, %c0_158, %c0_159] : memref<24x128x128xbf16, #tpu.memory_space<vmem>>, vector<1x128x128xbf16>
    %260 = vector.shape_cast %259 : vector<1x128x128xbf16> to vector<128x128xbf16>
    %cst_160 = arith.constant dense<0.000000e+00> : vector<8x128xf32>
    %261 = tpu.matmul %258, %260, %cst_160 {dimension_numbers = #tpu.dot_dimension_numbers<[1], [0], [0], [1], [0, 0, 1, 1], [], []>} : vector<8x128xbf16>, vector<128x128xbf16>, vector<8x128xf32> -> vector<8x128xf32>
    %c21_161 = arith.constant 21 : index
    %c0_162 = arith.constant 0 : index
    %c0_163 = arith.constant 0 : index
    %262 = vector.load %arg4[%c21_161, %c0_162, %c0_163] : memref<24x1x128xf32, #tpu.memory_space<vmem>>, vector<1x1x128xf32>
    %263 = vector.shape_cast %262 : vector<1x1x128xf32> to vector<1x128xf32>
    %264 = vector.broadcast %263 : vector<1x128xf32> to vector<8x128xf32>
    %265 = arith.addf %261, %264 : vector<8x128xf32>
    %cst_164 = arith.constant 0.000000e+00 : f32
    %266 = vector.broadcast %cst_164 : f32 to vector<8x128xf32>
    %267 = arith.cmpf oge, %265, %266 : vector<8x128xf32>
    %cst_165 = arith.constant 2.000000e-01 : f32
    %268 = vector.broadcast %cst_165 : f32 to vector<8x128xf32>
    %269 = arith.mulf %268, %265 : vector<8x128xf32>
    %270 = arith.select %267, %265, %269 : vector<8x128xi1>, vector<8x128xf32>
    %271 = arith.truncf %270 : vector<8x128xf32> to vector<8x128xbf16>
    %c22 = arith.constant 22 : index
    %c0_166 = arith.constant 0 : index
    %c0_167 = arith.constant 0 : index
    %272 = vector.load %arg3[%c22, %c0_166, %c0_167] : memref<24x128x128xbf16, #tpu.memory_space<vmem>>, vector<1x128x128xbf16>
    %273 = vector.shape_cast %272 : vector<1x128x128xbf16> to vector<128x128xbf16>
    %cst_168 = arith.constant dense<0.000000e+00> : vector<8x128xf32>
    %274 = tpu.matmul %271, %273, %cst_168 {dimension_numbers = #tpu.dot_dimension_numbers<[1], [0], [0], [1], [0, 0, 1, 1], [], []>} : vector<8x128xbf16>, vector<128x128xbf16>, vector<8x128xf32> -> vector<8x128xf32>
    %c22_169 = arith.constant 22 : index
    %c0_170 = arith.constant 0 : index
    %c0_171 = arith.constant 0 : index
    %275 = vector.load %arg4[%c22_169, %c0_170, %c0_171] : memref<24x1x128xf32, #tpu.memory_space<vmem>>, vector<1x1x128xf32>
    %276 = vector.shape_cast %275 : vector<1x1x128xf32> to vector<1x128xf32>
    %277 = vector.broadcast %276 : vector<1x128xf32> to vector<8x128xf32>
    %278 = arith.addf %274, %277 : vector<8x128xf32>
    %279 = arith.addf %257, %278 : vector<8x128xf32>
    %280 = arith.truncf %279 : vector<8x128xf32> to vector<8x128xbf16>
    %c23 = arith.constant 23 : index
    %c0_172 = arith.constant 0 : index
    %c0_173 = arith.constant 0 : index
    %281 = vector.load %arg3[%c23, %c0_172, %c0_173] : memref<24x128x128xbf16, #tpu.memory_space<vmem>>, vector<1x128x128xbf16>
    %282 = vector.shape_cast %281 : vector<1x128x128xbf16> to vector<128x128xbf16>
    %cst_174 = arith.constant dense<0.000000e+00> : vector<8x128xf32>
    %283 = tpu.matmul %280, %282, %cst_174 {dimension_numbers = #tpu.dot_dimension_numbers<[1], [0], [0], [1], [0, 0, 1, 1], [], []>} : vector<8x128xbf16>, vector<128x128xbf16>, vector<8x128xf32> -> vector<8x128xf32>
    %c23_175 = arith.constant 23 : index
    %c0_176 = arith.constant 0 : index
    %c0_177 = arith.constant 0 : index
    %284 = vector.load %arg4[%c23_175, %c0_176, %c0_177] : memref<24x1x128xf32, #tpu.memory_space<vmem>>, vector<1x1x128xf32>
    %285 = vector.shape_cast %284 : vector<1x1x128xf32> to vector<1x128xf32>
    %286 = vector.broadcast %285 : vector<1x128xf32> to vector<8x128xf32>
    %287 = arith.addf %283, %286 : vector<8x128xf32>
    %288 = arith.addf %287, %146 : vector<8x128xf32>
    %c0_178 = arith.constant 0 : index
    %c0_179 = arith.constant 0 : index
    %289 = vector.load %arg5[%c0_178, %c0_179] : memref<8x128xf32, #tpu.memory_space<vmem>>, vector<8x128xf32>
    tpu.vector_store %arg5[%c0_178, %c0_179], %288 {strides = array<i32>} : memref<8x128xf32, #tpu.memory_space<vmem>>, vector<8x128xf32>,
    return
  }
  func.func @transform_0(%arg0: i32) -> (i32, i32) {
    %c0_i32 = arith.constant 0 : i32
    %c0_i32_0 = arith.constant 0 : i32
    return %arg0, %c0_i32 : i32, i32
  }
  func.func @transform_1(%arg0: i32) -> (i32, i32) {
    %c0_i32 = arith.constant 0 : i32
    %c0_i32_0 = arith.constant 0 : i32
    return %arg0, %c0_i32 : i32, i32
  }
  func.func @transform_2(%arg0: i32) -> (i32, i32, i32) {
    %c0_i32 = arith.constant 0 : i32
    %c0_i32_0 = arith.constant 0 : i32
    %c0_i32_1 = arith.constant 0 : i32
    %c0_i32_2 = arith.constant 0 : i32
    return %c0_i32, %c0_i32_0, %c0_i32_1 : i32, i32, i32
  }
  func.func @transform_3(%arg0: i32) -> (i32, i32, i32) {
    %c0_i32 = arith.constant 0 : i32
    %c0_i32_0 = arith.constant 0 : i32
    %c0_i32_1 = arith.constant 0 : i32
    %c0_i32_2 = arith.constant 0 : i32
    return %c0_i32, %c0_i32_0, %c0_i32_1 : i32, i32, i32
  }
  func.func @transform_4(%arg0: i32) -> (i32, i32) {
    %c0_i32 = arith.constant 0 : i32
    %c0_i32_0 = arith.constant 0 : i32
    return %arg0, %c0_i32 : i32, i32
  }
}

</mosaic_0001>

<llo_original>
// kernel: tpu_custom_call.1
$region0: #{tpu_custom_call.1}
  #allocation0 [shape = 'u32[]', space=smem, size = 0x4, offset = 0x4, fixed_abs, tag = 'smem constant byte address 0x4 - core index']
  #allocation1 [shape = 'u32[72,128]{1,0:T(1,128)}', space=vmem, size = 0x9000, scoped, tag = 'internal scratch']
  %s0 = inlined_call_operand.hbm [shape: f32[8,128], index: 0, kind: input, shape index: {}]
  %s1 = inlined_call_operand.hbm [shape: f32[8,128], index: 1, kind: input, shape index: {}]
  %s2 = inlined_call_operand.hbm [shape: bf16[24,128,128], index: 2, kind: input, shape index: {}]
  %s3 = inlined_call_operand.hbm [shape: f32[24,1,128], index: 3, kind: input, shape index: {}]
  %s4 = inlined_call_operand.hbm [shape: f32[8,128], index: 4, kind: output, shape index: {}]
  %s5 = sld [smem:[#allocation0]]
  $region42: #{tpu_custom_call.1} parent=0
    _
  %s7 = ssub.s32 1, %s5
  %s8 = scalar_select 0, %s7, %s5
  $region1: #{tpu_custom_call.1} parent=0
    #allocation2 [shape = 'u8[4096]{0}', space=vmem, size = 0x1000, scoped, tag = 'input window, operand 0, single buffered']
    #allocation3 [shape = 's32[1]{0}', space=sflag, size = 0x4, scoped, tag = 'scoped memory for tpu_custom_call.1']
    #allocation4 [shape = 's32[1]{0}', space=sflag, size = 0x4, scoped, tag = 'scoped memory for tpu_custom_call.1']
    #allocation5 [shape = 'u8[4096]{0}', space=vmem, size = 0x1000, scoped, tag = 'input window, operand 1, single buffered']
    #allocation6 [shape = 's32[1]{0}', space=sflag, size = 0x4, scoped, tag = 'scoped memory for tpu_custom_call.1']
    #allocation7 [shape = 'u8[786432]{0}', space=vmem, size = 0xc0000, scoped, tag = 'input window, operand 2, single buffered']
    #allocation8 [shape = 'u8[12288]{0}', space=vmem, size = 0x3000, scoped, tag = 'input window, operand 3, single buffered']
    #allocation9 [shape = 's32[1]{0}', space=sflag, size = 0x4, scoped, tag = 'scoped memory for tpu_custom_call.1']
    #allocation10 [shape = 'u8[4096]{0}', space=vmem, size = 0x1000, scoped, tag = 'output window, operand 0, single buffered']
    %9 = vsyncpa [#allocation3], 0
    %10 = vsyncpa [#allocation6], 0
    %11 = vsyncpa [#allocation9], 0
    %12 = vsyncpa [#allocation4], 0
    // Predicated region
    $region2: #{tpu_custom_call.1} parent=1 // pred_check
      _
    $region3: #{tpu_custom_call.1} parent=1 // pred_check_branch
      %14 = sbr.rel (0) target = $region5
    $region4: #{tpu_custom_call.1} parent=1 // pred_region
      %16 = vsyncadd [#allocation3], 0
      %s18 = sshll.u32 %s0, 4
      %s19 = int_to_ptr.hbm [resolvable:$true] %s18
      %s20 = sshll.u32 [#allocation2], 4
      %s21 = int_to_ptr.vmem [resolvable:$true] %s20
      %23 = dma.hbm_to_vmem [thread:$0]  %s19, 128, %s21, [#allocation3]
    $region5: #{tpu_custom_call.1} parent=1 // pred_fallthru
      _
    // Predicated region
    $region6: #{tpu_custom_call.1} parent=1 // pred_check
      _
    $region7: #{tpu_custom_call.1} parent=1 // pred_check_branch
      %25 = sbr.rel (0) target = $region9
    $region8: #{tpu_custom_call.1} parent=1 // pred_region
      %27 = vsyncadd [#allocation6], 0
      %s29 = sshll.u32 %s1, 4
      %s30 = int_to_ptr.hbm [resolvable:$true] %s29
      %s31 = sshll.u32 [#allocation5], 4
      %s32 = int_to_ptr.vmem [resolvable:$true] %s31
      %34 = dma.hbm_to_vmem [thread:$0]  %s30, 128, %s32, [#allocation6]
    $region9: #{tpu_custom_call.1} parent=1 // pred_fallthru
      _
    // Predicated region
    $region10: #{tpu_custom_call.1} parent=1 // pred_check
      _
    $region11: #{tpu_custom_call.1} parent=1 // pred_check_branch
      %36 = sbr.rel (0) target = $region13
    $region12: #{tpu_custom_call.1} parent=1 // pred_region
      %38 = vsyncadd [#allocation6], 0
      %s39 = sshll.u32 %s2, 4
      %s40 = int_to_ptr.hbm [resolvable:$true] %s39
      %s41 = sshll.u32 [#allocation7], 4
      %s42 = int_to_ptr.vmem [resolvable:$true] %s41
      %47 = dma.hbm_to_vmem [thread:$0]  %s40, 24576, %s42, [#allocation6], 64, 64, 4
    $region13: #{tpu_custom_call.1} parent=1 // pred_fallthru
      _
    // Predicated region
    $region14: #{tpu_custom_call.1} parent=1 // pred_check
      _
    $region15: #{tpu_custom_call.1} parent=1 // pred_check_branch
      %49 = sbr.rel (0) target = $region17
    $region16: #{tpu_custom_call.1} parent=1 // pred_region
      %51 = vsyncadd [#allocation9], 0
      %s52 = sshll.u32 %s3, 4
      %s53 = int_to_ptr.hbm [resolvable:$true] %s52
      %s54 = sshll.u32 [#allocation8], 4
      %s55 = int_to_ptr.vmem [resolvable:$true] %s54
      %60 = dma.hbm_to_vmem [thread:$0]  %s53, 384, %s55, [#allocation9], 16, 16, 1
    $region17: #{tpu_custom_call.1} parent=1 // pred_fallthru
      _
    // Predicated region
    $region18: #{tpu_custom_call.1} parent=1 // pred_check
      _
    $region19: #{tpu_custom_call.1} parent=1 // pred_check_branch
      %62 = sbr.rel (0) target = $region21
    $region20: #{tpu_custom_call.1} parent=1 // pred_region
      %64 = dma.done [#allocation3], 128
    $region21: #{tpu_custom_call.1} parent=1 // pred_fallthru
      _
    // Predicated region
    $region22: #{tpu_custom_call.1} parent=1 // pred_check
      _
    $region23: #{tpu_custom_call.1} parent=1 // pred_check_branch
      %66 = sbr.rel (0) target = $region25
    $region24: #{tpu_custom_call.1} parent=1 // pred_region
      %68 = dma.done [#allocation6], 128
    $region25: #{tpu_custom_call.1} parent=1 // pred_fallthru
      _
    // Predicated region
    $region26: #{tpu_custom_call.1} parent=1 // pred_check
      _
    $region27: #{tpu_custom_call.1} parent=1 // pred_check_branch
      %70 = sbr.rel (0) target = $region29
    $region28: #{tpu_custom_call.1} parent=1 // pred_region
      %72 = dma.done [#allocation6], 24576
    $region29: #{tpu_custom_call.1} parent=1 // pred_fallthru
      _
    // Predicated region
    $region30: #{tpu_custom_call.1} parent=1 // pred_check
      _
    $region31: #{tpu_custom_call.1} parent=1 // pred_check_branch
      %74 = sbr.rel (0) target = $region33
    $region32: #{tpu_custom_call.1} parent=1 // pred_region
      %76 = dma.done [#allocation9], 384
    $region33: #{tpu_custom_call.1} parent=1 // pred_fallthru
      _
    %v77 = vld [vmem:[#allocation2] sm:$0xff]
    %v78 = vpack.c.bf16 %v77, %v77
    %v79 = vld [vmem:[#allocation7] sm:$0xf]
    %v80 = vld [vmem:[#allocation7 + $0x4] sm:$0xf]
    %v81 = vld [vmem:[#allocation7 + $0x8] sm:$0xf]
    %v82 = vld [vmem:[#allocation7 + $0xc] sm:$0xf]
    %v83 = vld [vmem:[#allocation7 + $0x10] sm:$0xf]
    %v84 = vld [vmem:[#allocation7 + $0x14] sm:$0xf]
    %v85 = vld [vmem:[#allocation7 + $0x18] sm:$0xf]
    %v86 = vld [vmem:[#allocation7 + $0x1c] sm:$0xf]
    %v87 = vld [vmem:[#allocation7 + $0x20] sm:$0xf]
    %v88 = vld [vmem:[#allocation7 + $0x24] sm:$0xf]
    %v89 = vld [vmem:[#allocation7 + $0x28] sm:$0xf]
    %v90 = vld [vmem:[#allocation7 + $0x2c] sm:$0xf]
    %v91 = vld [vmem:[#allocation7 + $0x30] sm:$0xf]
    %v92 = vld [vmem:[#allocation7 + $0x34] sm:$0xf]
    %v93 = vld [vmem:[#allocation7 + $0x38] sm:$0xf]
    %v94 = vld [vmem:[#allocation7 + $0x3c] sm:$0xf]
    %v95 = vld [vmem:[#allocation8] sm:$0x1]
    %v97 = vperm.slane %v95, 0
    %v115 = vunpack.c.l.b16 %v79
    %v116 = vunpack.c.l.b16 %v80
    %v117 = vunpack.c.l.b16 %v81
    %v118 = vunpack.c.l.b16 %v82
    %v119 = vunpack.c.l.b16 %v83
    %v120 = vunpack.c.l.b16 %v84
    %v121 = vunpack.c.l.b16 %v85
    %v122 = vunpack.c.l.b16 %v86
    %v123 = vunpack.c.l.b16 %v87
    %v124 = vunpack.c.l.b16 %v88
    %v125 = vunpack.c.l.b16 %v89
    %v126 = vunpack.c.l.b16 %v90
    %v127 = vunpack.c.l.b16 %v91
    %v128 = vunpack.c.l.b16 %v92
    %v129 = vunpack.c.l.b16 %v93
    %v130 = vunpack.c.l.b16 %v94
    %v131 = vpack.c.b16 %v116, %v115
    %v132 = vpack.c.b16 %v118, %v117
    %v133 = vpack.c.b16 %v120, %v119
    %v134 = vpack.c.b16 %v122, %v121
    %v135 = vpack.c.b16 %v124, %v123
    %v136 = vpack.c.b16 %v126, %v125
    %v137 = vpack.c.b16 %v128, %v127
    %v138 = vpack.c.b16 %v130, %v129
    %147 = vmatpush.bf16.msra.mxu0 %v138
    %148 = vmatpush.bf16.msra.mxu0 %v137
    %149 = vmatpush.bf16.msra.mxu0 %v136
    %150 = vmatpush.bf16.msra.mxu0 %v135
    %151 = vmatpush.bf16.msra.mxu0 %v134
    %152 = vmatpush.bf16.msra.mxu0 %v133
    %153 = vmatpush.bf16.msra.mxu0 %v132
    %154 = vmatpush.bf16.msra.mxu0 %v131
    %155 = vmatmul.bf16.gmra.mxu0 %v78
    %v156 = vpop.f32.mrf.mxu0
    %v157 = vadd.f32 %v97, %v156
    %v158 = vpop.f32.mrf.mxu0
    %159 = vdwg.mxu0
    %vm160 = vcmp.ge.f32.partialorder %v157, 0.0
    %v161 = vmul.f32 %v157, 0.2
    %v162 = vsel %vm160, %v157, %v161
    %v163 = vpack.c.bf16 %v162, %v162
    %s164 = scalar_lea.vmem [#allocation7], 64
    %v165 = vld [vmem:[%s164] sm:$0xf]
    %v166 = vld [vmem:[%s164 + $0x4] sm:$0xf]
    %v167 = vld [vmem:[%s164 + $0x8] sm:$0xf]
    %v168 = vld [vmem:[%s164 + $0xc] sm:$0xf]
    %v169 = vld [vmem:[%s164 + $0x10] sm:$0xf]
    %v170 = vld [vmem:[%s164 + $0x14] sm:$0xf]
    %v171 = vld [vmem:[%s164 + $0x18] sm:$0xf]
    %v172 = vld [vmem:[%s164 + $0x1c] sm:$0xf]
    %v173 = vld [vmem:[%s164 + $0x20] sm:$0xf]
    %v174 = vld [vmem:[%s164 + $0x24] sm:$0xf]
    %v175 = vld [vmem:[%s164 + $0x28] sm:$0xf]
    %v176 = vld [vmem:[%s164 + $0x2c] sm:$0xf]
    %v177 = vld [vmem:[%s164 + $0x30] sm:$0xf]
    %v178 = vld [vmem:[%s164 + $0x34] sm:$0xf]
    %v179 = vld [vmem:[%s164 + $0x38] sm:$0xf]
    %v180 = vld [vmem:[%s164 + $0x3c] sm:$0xf]
    %s181 = scalar_lea.vmem [#allocation8], 1
    %v182 = vld [vmem:[%s181] sm:$0x1]
    %v184 = vperm.slane %v182, 0
    %v202 = vunpack.c.l.b16 %v165
    %v203 = vunpack.c.l.b16 %v166
    %v204 = vunpack.c.l.b16 %v167
    %v205 = vunpack.c.l.b16 %v168
    %v206 = vunpack.c.l.b16 %v169
    %v207 = vunpack.c.l.b16 %v170
    %v208 = vunpack.c.l.b16 %v171
    %v209 = vunpack.c.l.b16 %v172
    %v210 = vunpack.c.l.b16 %v173
    %v211 = vunpack.c.l.b16 %v174
    %v212 = vunpack.c.l.b16 %v175
    %v213 = vunpack.c.l.b16 %v176
    %v214 = vunpack.c.l.b16 %v177
    %v215 = vunpack.c.l.b16 %v178
    %v216 = vunpack.c.l.b16 %v179
    %v217 = vunpack.c.l.b16 %v180
    %v218 = vpack.c.b16 %v203, %v202
    %v219 = vpack.c.b16 %v205, %v204
    %v220 = vpack.c.b16 %v207, %v206
    %v221 = vpack.c.b16 %v209, %v208
    %v222 = vpack.c.b16 %v211, %v210
    %v223 = vpack.c.b16 %v213, %v212
    %v224 = vpack.c.b16 %v215, %v214
    %v225 = vpack.c.b16 %v217, %v216
    %234 = vmatpush.bf16.msra.mxu0 %v225
    %235 = vmatpush.bf16.msra.mxu0 %v224
    %236 = vmatpush.bf16.msra.mxu0 %v223
    %237 = vmatpush.bf16.msra.mxu0 %v222
    %238 = vmatpush.bf16.msra.mxu0 %v221
    %239 = vmatpush.bf16.msra.mxu0 %v220
    %240 = vmatpush.bf16.msra.mxu0 %v219
    %241 = vmatpush.bf16.msra.mxu0 %v218
    %242 = vmatmul.bf16.gmra.mxu0 %v163
    %v243 = vpop.f32.mrf.mxu0
    %v244 = vadd.f32 %v184, %v243
    %v245 = vpop.f32.mrf.mxu0
    %246 = vdwg.mxu0
    %vm247 = vcmp.ge.f32.partialorder %v244, 0.0
    %v248 = vmul.f32 %v244, 0.2
    %v249 = vsel %vm247, %v244, %v248
    %v250 = vpack.c.bf16 %v249, %v249
    %s251 = scalar_lea.vmem [#allocation7], 128
    %v252 = vld [vmem:[%s251] sm:$0xf]
    %v253 = vld [vmem:[%s251 + $0x4] sm:$0xf]
    %v254 = vld [vmem:[%s251 + $0x8] sm:$0xf]
    %v255 = vld [vmem:[%s251 + $0xc] sm:$0xf]
    %v256 = vld [vmem:[%s251 + $0x10] sm:$0xf]
    %v257 = vld [vmem:[%s251 + $0x14] sm:$0xf]
    %v258 = vld [vmem:[%s251 + $0x18] sm:$0xf]
    %v259 = vld [vmem:[%s251 + $0x1c] sm:$0xf]
    %v260 = vld [vmem:[%s251 + $0x20] sm:$0xf]
    %v261 = vld [vmem:[%s251 + $0x24] sm:$0xf]
    %v262 = vld [vmem:[%s251 + $0x28] sm:$0xf]
    %v263 = vld [vmem:[%s251 + $0x2c] sm:$0xf]
    %v264 = vld [vmem:[%s251 + $0x30] sm:$0xf]
    %v265 = vld [vmem:[%s251 + $0x34] sm:$0xf]
    %v266 = vld [vmem:[%s251 + $0x38] sm:$0xf]
    %v267 = vld [vmem:[%s251 + $0x3c] sm:$0xf]
    %s268 = scalar_lea.vmem [#allocation8], 2
    %v269 = vld [vmem:[%s268] sm:$0x1]
    %v271 = vperm.slane %v269, 0
    %v289 = vunpack.c.l.b16 %v252
    %v290 = vunpack.c.l.b16 %v253
    %v291 = vunpack.c.l.b16 %v254
    %v292 = vunpack.c.l.b16 %v255
    %v293 = vunpack.c.l.b16 %v256
    %v294 = vunpack.c.l.b16 %v257
    %v295 = vunpack.c.l.b16 %v258
    %v296 = vunpack.c.l.b16 %v259
    %v297 = vunpack.c.l.b16 %v260
    %v298 = vunpack.c.l.b16 %v261
    %v299 = vunpack.c.l.b16 %v262
    %v300 = vunpack.c.l.b16 %v263
    %v301 = vunpack.c.l.b16 %v264
    %v302 = vunpack.c.l.b16 %v265
    %v303 = vunpack.c.l.b16 %v266
    %v304 = vunpack.c.l.b16 %v267
    %v305 = vpack.c.b16 %v290, %v289
    %v306 = vpack.c.b16 %v292, %v291
    %v307 = vpack.c.b16 %v294, %v293
    %v308 = vpack.c.b16 %v296, %v295
    %v309 = vpack.c.b16 %v298, %v297
    %v310 = vpack.c.b16 %v300, %v299
    %v311 = vpack.c.b16 %v302, %v301
    %v312 = vpack.c.b16 %v304, %v303
    %321 = vmatpush.bf16.msra.mxu0 %v312
    %322 = vmatpush.bf16.msra.mxu0 %v311
    %323 = vmatpush.bf16.msra.mxu0 %v310
    %324 = vmatpush.bf16.msra.mxu0 %v309
    %325 = vmatpush.bf16.msra.mxu0 %v308
    %326 = vmatpush.bf16.msra.mxu0 %v307
    %327 = vmatpush.bf16.msra.mxu0 %v306
    %328 = vmatpush.bf16.msra.mxu0 %v305
    %329 = vmatmul.bf16.gmra.mxu0 %v250
    %v330 = vpop.f32.mrf.mxu0
    %v331 = vadd.f32 %v271, %v330
    %v332 = vpop.f32.mrf.mxu0
    %333 = vdwg.mxu0
    %vm334 = vcmp.ge.f32.partialorder %v331, 0.0
    %v335 = vmul.f32 %v331, 0.2
    %v336 = vsel %vm334, %v331, %v335
    %v337 = vpack.c.bf16 %v336, %v336
    %s338 = scalar_lea.vmem [#allocation7], 192
    %v339 = vld [vmem:[%s338] sm:$0xf]
    %v340 = vld [vmem:[%s338 + $0x4] sm:$0xf]
    %v341 = vld [vmem:[%s338 + $0x8] sm:$0xf]
    %v342 = vld [vmem:[%s338 + $0xc] sm:$0xf]
    %v343 = vld [vmem:[%s338 + $0x10] sm:$0xf]
    %v344 = vld [vmem:[%s338 + $0x14] sm:$0xf]
    %v345 = vld [vmem:[%s338 + $0x18] sm:$0xf]
    %v346 = vld [vmem:[%s338 + $0x1c] sm:$0xf]
    %v347 = vld [vmem:[%s338 + $0x20] sm:$0xf]
    %v348 = vld [vmem:[%s338 + $0x24] sm:$0xf]
    %v349 = vld [vmem:[%s338 + $0x28] sm:$0xf]
    %v350 = vld [vmem:[%s338 + $0x2c] sm:$0xf]
    %v351 = vld [vmem:[%s338 + $0x30] sm:$0xf]
    %v352 = vld [vmem:[%s338 + $0x34] sm:$0xf]
    %v353 = vld [vmem:[%s338 + $0x38] sm:$0xf]
    %v354 = vld [vmem:[%s338 + $0x3c] sm:$0xf]
    %s355 = scalar_lea.vmem [#allocation8], 3
    %v356 = vld [vmem:[%s355] sm:$0x1]
    %v358 = vperm.slane %v356, 0
    %v376 = vunpack.c.l.b16 %v339
    %v377 = vunpack.c.l.b16 %v340
    %v378 = vunpack.c.l.b16 %v341
    %v379 = vunpack.c.l.b16 %v342
    %v380 = vunpack.c.l.b16 %v343
    %v381 = vunpack.c.l.b16 %v344
    %v382 = vunpack.c.l.b16 %v345
    %v383 = vunpack.c.l.b16 %v346
    %v384 = vunpack.c.l.b16 %v347
    %v385 = vunpack.c.l.b16 %v348
    %v386 = vunpack.c.l.b16 %v349
    %v387 = vunpack.c.l.b16 %v350
    %v388 = vunpack.c.l.b16 %v351
    %v389 = vunpack.c.l.b16 %v352
    %v390 = vunpack.c.l.b16 %v353
    %v391 = vunpack.c.l.b16 %v354
    %v392 = vpack.c.b16 %v377, %v376
    %v393 = vpack.c.b16 %v379, %v378
    %v394 = vpack.c.b16 %v381, %v380
    %v395 = vpack.c.b16 %v383, %v382
    %v396 = vpack.c.b16 %v385, %v384
    %v397 = vpack.c.b16 %v387, %v386
    %v398 = vpack.c.b16 %v389, %v388
    %v399 = vpack.c.b16 %v391, %v390
    %408 = vmatpush.bf16.msra.mxu0 %v399
    %409 = vmatpush.bf16.msra.mxu0 %v398
    %410 = vmatpush.bf16.msra.mxu0 %v397
    %411 = vmatpush.bf16.msra.mxu0 %v396
    %412 = vmatpush.bf16.msra.mxu0 %v395
    %413 = vmatpush.bf16.msra.mxu0 %v394
    %414 = vmatpush.bf16.msra.mxu0 %v393
    %415 = vmatpush.bf16.msra.mxu0 %v392
    %416 = vmatmul.bf16.gmra.mxu0 %v337
    %v417 = vpop.f32.mrf.mxu0
    %v418 = vadd.f32 %v358, %v417
    %v419 = vpop.f32.mrf.mxu0
    %420 = vdwg.mxu0
    %v421 = vadd.f32 %v249, %v418
    %v422 = vpack.c.bf16 %v421, %v421
    %s423 = scalar_lea.vmem [#allocation7], 256
    %v424 = vld [vmem:[%s423] sm:$0xf]
    %v425 = vld [vmem:[%s423 + $0x4] sm:$0xf]
    %v426 = vld [vmem:[%s423 + $0x8] sm:$0xf]
    %v427 = vld [vmem:[%s423 + $0xc] sm:$0xf]
    %v428 = vld [vmem:[%s423 + $0x10] sm:$0xf]
    %v429 = vld [vmem:[%s423 + $0x14] sm:$0xf]
    %v430 = vld [vmem:[%s423 + $0x18] sm:$0xf]
    %v431 = vld [vmem:[%s423 + $0x1c] sm:$0xf]
    %v432 = vld [vmem:[%s423 + $0x20] sm:$0xf]
    %v433 = vld [vmem:[%s423 + $0x24] sm:$0xf]
    %v434 = vld [vmem:[%s423 + $0x28] sm:$0xf]
    %v435 = vld [vmem:[%s423 + $0x2c] sm:$0xf]
    %v436 = vld [vmem:[%s423 + $0x30] sm:$0xf]
    %v437 = vld [vmem:[%s423 + $0x34] sm:$0xf]
    %v438 = vld [vmem:[%s423 + $0x38] sm:$0xf]
    %v439 = vld [vmem:[%s423 + $0x3c] sm:$0xf]
    %s440 = scalar_lea.vmem [#allocation8], 4
    %v441 = vld [vmem:[%s440] sm:$0x1]
    %v443 = vperm.slane %v441, 0
    %v461 = vunpack.c.l.b16 %v424
    %v462 = vunpack.c.l.b16 %v425
    %v463 = vunpack.c.l.b16 %v426
    %v464 = vunpack.c.l.b16 %v427
    %v465 = vunpack.c.l.b16 %v428
    %v466 = vunpack.c.l.b16 %v429
    %v467 = vunpack.c.l.b16 %v430
    %v468 = vunpack.c.l.b16 %v431
    %v469 = vunpack.c.l.b16 %v432
    %v470 = vunpack.c.l.b16 %v433
    %v471 = vunpack.c.l.b16 %v434
    %v472 = vunpack.c.l.b16 %v435
    %v473 = vunpack.c.l.b16 %v436
    %v474 = vunpack.c.l.b16 %v437
    %v475 = vunpack.c.l.b16 %v438
    %v476 = vunpack.c.l.b16 %v439
    %v477 = vpack.c.b16 %v462, %v461
    %v478 = vpack.c.b16 %v464, %v463
    %v479 = vpack.c.b16 %v466, %v465
    %v480 = vpack.c.b16 %v468, %v467
    %v481 = vpack.c.b16 %v470, %v469
    %v482 = vpack.c.b16 %v472, %v471
    %v483 = vpack.c.b16 %v474, %v473
    %v484 = vpack.c.b16 %v476, %v475
    %493 = vmatpush.bf16.msra.mxu0 %v484
    %494 = vmatpush.bf16.msra.mxu0 %v483
    %495 = vmatpush.bf16.msra.mxu0 %v482
    %496 = vmatpush.bf16.msra.mxu0 %v481
    %497 = vmatpush.bf16.msra.mxu0 %v480
    %498 = vmatpush.bf16.msra.mxu0 %v479
    %499 = vmatpush.bf16.msra.mxu0 %v478
    %500 = vmatpush.bf16.msra.mxu0 %v477
    %501 = vmatmul.bf16.gmra.mxu0 %v422
    %v502 = vpop.f32.mrf.mxu0
    %v503 = vadd.f32 %v443, %v502
    %v504 = vpop.f32.mrf.mxu0
    %505 = vdwg.mxu0
    %vm506 = vcmp.ge.f32.partialorder %v503, 0.0
    %v507 = vmul.f32 %v503, 0.2
    %v508 = vsel %vm506, %v503, %v507
    %v509 = vpack.c.bf16 %v508, %v508
    %s510 = scalar_lea.vmem [#allocation7], 320
    %v511 = vld [vmem:[%s510] sm:$0xf]
    %v512 = vld [vmem:[%s510 + $0x4] sm:$0xf]
    %v513 = vld [vmem:[%s510 + $0x8] sm:$0xf]
    %v514 = vld [vmem:[%s510 + $0xc] sm:$0xf]
    %v515 = vld [vmem:[%s510 + $0x10] sm:$0xf]
    %v516 = vld [vmem:[%s510 + $0x14] sm:$0xf]
    %v517 = vld [vmem:[%s510 + $0x18] sm:$0xf]
    %v518 = vld [vmem:[%s510 + $0x1c] sm:$0xf]
    %v519 = vld [vmem:[%s510 + $0x20] sm:$0xf]
    %v520 = vld [vmem:[%s510 + $0x24] sm:$0xf]
    %v521 = vld [vmem:[%s510 + $0x28] sm:$0xf]
    %v522 = vld [vmem:[%s510 + $0x2c] sm:$0xf]
    %v523 = vld [vmem:[%s510 + $0x30] sm:$0xf]
    %v524 = vld [vmem:[%s510 + $0x34] sm:$0xf]
    %v525 = vld [vmem:[%s510 + $0x38] sm:$0xf]
    %v526 = vld [vmem:[%s510 + $0x3c] sm:$0xf]
    %s527 = scalar_lea.vmem [#allocation8], 5
    %v528 = vld [vmem:[%s527] sm:$0x1]
    %v530 = vperm.slane %v528, 0
    %v548 = vunpack.c.l.b16 %v511
    %v549 = vunpack.c.l.b16 %v512
    %v550 = vunpack.c.l.b16 %v513
    %v551 = vunpack.c.l.b16 %v514
    %v552 = vunpack.c.l.b16 %v515
    %v553 = vunpack.c.l.b16 %v516
    %v554 = vunpack.c.l.b16 %v517
    %v555 = vunpack.c.l.b16 %v518
    %v556 = vunpack.c.l.b16 %v519
    %v557 = vunpack.c.l.b16 %v520
    %v558 = vunpack.c.l.b16 %v521
    %v559 = vunpack.c.l.b16 %v522
    %v560 = vunpack.c.l.b16 %v523
    %v561 = vunpack.c.l.b16 %v524
    %v562 = vunpack.c.l.b16 %v525
    %v563 = vunpack.c.l.b16 %v526
    %v564 = vpack.c.b16 %v549, %v548
    %v565 = vpack.c.b16 %v551, %v550
    %v566 = vpack.c.b16 %v553, %v552
    %v567 = vpack.c.b16 %v555, %v554
    %v568 = vpack.c.b16 %v557, %v556
    %v569 = vpack.c.b16 %v559, %v558
    %v570 = vpack.c.b16 %v561, %v560
    %v571 = vpack.c.b16 %v563, %v562
    %580 = vmatpush.bf16.msra.mxu0 %v571
    %581 = vmatpush.bf16.msra.mxu0 %v570
    %582 = vmatpush.bf16.msra.mxu0 %v569
    %583 = vmatpush.bf16.msra.mxu0 %v568
    %584 = vmatpush.bf16.msra.mxu0 %v567
    %585 = vmatpush.bf16.msra.mxu0 %v566
    %586 = vmatpush.bf16.msra.mxu0 %v565
    %587 = vmatpush.bf16.msra.mxu0 %v564
    %588 = vmatmul.bf16.gmra.mxu0 %v509
    %v589 = vpop.f32.mrf.mxu0
    %v590 = vadd.f32 %v530, %v589
    %v591 = vpop.f32.mrf.mxu0
    %592 = vdwg.mxu0
    %v593 = vadd.f32 %v421, %v590
    %v594 = vpack.c.bf16 %v593, %v593
    %s595 = scalar_lea.vmem [#allocation7], 384
    %v596 = vld [vmem:[%s595] sm:$0xf]
    %v597 = vld [vmem:[%s595 + $0x4] sm:$0xf]
    %v598 = vld [vmem:[%s595 + $0x8] sm:$0xf]
    %v599 = vld [vmem:[%s595 + $0xc] sm:$0xf]
    %v600 = vld [vmem:[%s595 + $0x10] sm:$0xf]
    %v601 = vld [vmem:[%s595 + $0x14] sm:$0xf]
    %v602 = vld [vmem:[%s595 + $0x18] sm:$0xf]
    %v603 = vld [vmem:[%s595 + $0x1c] sm:$0xf]
    %v604 = vld [vmem:[%s595 + $0x20] sm:$0xf]
    %v605 = vld [vmem:[%s595 + $0x24] sm:$0xf]
    %v606 = vld [vmem:[%s595 + $0x28] sm:$0xf]
    %v607 = vld [vmem:[%s595 + $0x2c] sm:$0xf]
    %v608 = vld [vmem:[%s595 + $0x30] sm:$0xf]
    %v609 = vld [vmem:[%s595 + $0x34] sm:$0xf]
    %v610 = vld [vmem:[%s595 + $0x38] sm:$0xf]
    %v611 = vld [vmem:[%s595 + $0x3c] sm:$0xf]
    %s612 = scalar_lea.vmem [#allocation8], 6
    %v613 = vld [vmem:[%s612] sm:$0x1]
    %v615 = vperm.slane %v613, 0
    %v633 = vunpack.c.l.b16 %v596
    %v634 = vunpack.c.l.b16 %v597
    %v635 = vunpack.c.l.b16 %v598
    %v636 = vunpack.c.l.b16 %v599
    %v637 = vunpack.c.l.b16 %v600
    %v638 = vunpack.c.l.b16 %v601
    %v639 = vunpack.c.l.b16 %v602
    %v640 = vunpack.c.l.b16 %v603
    %v641 = vunpack.c.l.b16 %v604
    %v642 = vunpack.c.l.b16 %v605
    %v643 = vunpack.c.l.b16 %v606
    %v644 = vunpack.c.l.b16 %v607
    %v645 = vunpack.c.l.b16 %v608
    %v646 = vunpack.c.l.b16 %v609
    %v647 = vunpack.c.l.b16 %v610
    %v648 = vunpack.c.l.b16 %v611
    %v649 = vpack.c.b16 %v634, %v633
    %v650 = vpack.c.b16 %v636, %v635
    %v651 = vpack.c.b16 %v638, %v637
    %v652 = vpack.c.b16 %v640, %v639
    %v653 = vpack.c.b16 %v642, %v641
    %v654 = vpack.c.b16 %v644, %v643
    %v655 = vpack.c.b16 %v646, %v645
    %v656 = vpack.c.b16 %v648, %v647
    %665 = vmatpush.bf16.msra.mxu0 %v656
    %666 = vmatpush.bf16.msra.mxu0 %v655
    %667 = vmatpush.bf16.msra.mxu0 %v654
    %668 = vmatpush.bf16.msra.mxu0 %v653
    %669 = vmatpush.bf16.msra.mxu0 %v652
    %670 = vmatpush.bf16.msra.mxu0 %v651
    %671 = vmatpush.bf16.msra.mxu0 %v650
    %672 = vmatpush.bf16.msra.mxu0 %v649
    %673 = vmatmul.bf16.gmra.mxu0 %v594
    %v674 = vpop.f32.mrf.mxu0
    %v675 = vadd.f32 %v615, %v674
    %v676 = vpop.f32.mrf.mxu0
    %677 = vdwg.mxu0
    %vm678 = vcmp.ge.f32.partialorder %v675, 0.0
    %v679 = vmul.f32 %v675, 0.2
    %v680 = vsel %vm678, %v675, %v679
    %v681 = vpack.c.bf16 %v680, %v680
    %s682 = scalar_lea.vmem [#allocation7], 448
    %v683 = vld [vmem:[%s682] sm:$0xf]
    %v684 = vld [vmem:[%s682 + $0x4] sm:$0xf]
    %v685 = vld [vmem:[%s682 + $0x8] sm:$0xf]
    %v686 = vld [vmem:[%s682 + $0xc] sm:$0xf]
    %v687 = vld [vmem:[%s682 + $0x10] sm:$0xf]
    %v688 = vld [vmem:[%s682 + $0x14] sm:$0xf]
    %v689 = vld [vmem:[%s682 + $0x18] sm:$0xf]
    %v690 = vld [vmem:[%s682 + $0x1c] sm:$0xf]
    %v691 = vld [vmem:[%s682 + $0x20] sm:$0xf]
    %v692 = vld [vmem:[%s682 + $0x24] sm:$0xf]
    %v693 = vld [vmem:[%s682 + $0x28] sm:$0xf]
    %v694 = vld [vmem:[%s682 + $0x2c] sm:$0xf]
    %v695 = vld [vmem:[%s682 + $0x30] sm:$0xf]
    %v696 = vld [vmem:[%s682 + $0x34] sm:$0xf]
    %v697 = vld [vmem:[%s682 + $0x38] sm:$0xf]
    %v698 = vld [vmem:[%s682 + $0x3c] sm:$0xf]
    %s699 = scalar_lea.vmem [#allocation8], 7
    %v700 = vld [vmem:[%s699] sm:$0x1]
    %v702 = vperm.slane %v700, 0
    %v720 = vunpack.c.l.b16 %v683
    %v721 = vunpack.c.l.b16 %v684
    %v722 = vunpack.c.l.b16 %v685
    %v723 = vunpack.c.l.b16 %v686
    %v724 = vunpack.c.l.b16 %v687
    %v725 = vunpack.c.l.b16 %v688
    %v726 = vunpack.c.l.b16 %v689
    %v727 = vunpack.c.l.b16 %v690
    %v728 = vunpack.c.l.b16 %v691
    %v729 = vunpack.c.l.b16 %v692
    %v730 = vunpack.c.l.b16 %v693
    %v731 = vunpack.c.l.b16 %v694
    %v732 = vunpack.c.l.b16 %v695
    %v733 = vunpack.c.l.b16 %v696
    %v734 = vunpack.c.l.b16 %v697
    %v735 = vunpack.c.l.b16 %v698
    %v736 = vpack.c.b16 %v721, %v720
    %v737 = vpack.c.b16 %v723, %v722
    %v738 = vpack.c.b16 %v725, %v724
    %v739 = vpack.c.b16 %v727, %v726
    %v740 = vpack.c.b16 %v729, %v728
    %v741 = vpack.c.b16 %v731, %v730
    %v742 = vpack.c.b16 %v733, %v732
    %v743 = vpack.c.b16 %v735, %v734
    %752 = vmatpush.bf16.msra.mxu0 %v743
    %753 = vmatpush.bf16.msra.mxu0 %v742
    %754 = vmatpush.bf16.msra.mxu0 %v741
    %755 = vmatpush.bf16.msra.mxu0 %v740
    %756 = vmatpush.bf16.msra.mxu0 %v739
    %757 = vmatpush.bf16.msra.mxu0 %v738
    %758 = vmatpush.bf16.msra.mxu0 %v737
    %759 = vmatpush.bf16.msra.mxu0 %v736
    %760 = vmatmul.bf16.gmra.mxu0 %v681
    %v761 = vpop.f32.mrf.mxu0
    %v762 = vadd.f32 %v702, %v761
    %v763 = vpop.f32.mrf.mxu0
    %764 = vdwg.mxu0
    %vm765 = vcmp.ge.f32.partialorder %v762, 0.0
    %v766 = vmul.f32 %v762, 0.2
    %v767 = vsel %vm765, %v762, %v766
    %v768 = vpack.c.bf16 %v767, %v767
    %s769 = scalar_lea.vmem [#allocation7], 512
    %v770 = vld [vmem:[%s769] sm:$0xf]
    %v771 = vld [vmem:[%s769 + $0x4] sm:$0xf]
    %v772 = vld [vmem:[%s769 + $0x8] sm:$0xf]
    %v773 = vld [vmem:[%s769 + $0xc] sm:$0xf]
    %v774 = vld [vmem:[%s769 + $0x10] sm:$0xf]
    %v775 = vld [vmem:[%s769 + $0x14] sm:$0xf]
    %v776 = vld [vmem:[%s769 + $0x18] sm:$0xf]
    %v777 = vld [vmem:[%s769 + $0x1c] sm:$0xf]
    %v778 = vld [vmem:[%s769 + $0x20] sm:$0xf]
    %v779 = vld [vmem:[%s769 + $0x24] sm:$0xf]
    %v780 = vld [vmem:[%s769 + $0x28] sm:$0xf]
    %v781 = vld [vmem:[%s769 + $0x2c] sm:$0xf]
    %v782 = vld [vmem:[%s769 + $0x30] sm:$0xf]
    %v783 = vld [vmem:[%s769 + $0x34] sm:$0xf]
    %v784 = vld [vmem:[%s769 + $0x38] sm:$0xf]
    %v785 = vld [vmem:[%s769 + $0x3c] sm:$0xf]
    %s786 = scalar_lea.vmem [#allocation8], 8
    %v787 = vld [vmem:[%s786] sm:$0x1]
    %v789 = vperm.slane %v787, 0
    %v807 = vunpack.c.l.b16 %v770
    %v808 = vunpack.c.l.b16 %v771
    %v809 = vunpack.c.l.b16 %v772
    %v810 = vunpack.c.l.b16 %v773
    %v811 = vunpack.c.l.b16 %v774
    %v812 = vunpack.c.l.b16 %v775
    %v813 = vunpack.c.l.b16 %v776
    %v814 = vunpack.c.l.b16 %v777
    %v815 = vunpack.c.l.b16 %v778
    %v816 = vunpack.c.l.b16 %v779
    %v817 = vunpack.c.l.b16 %v780
    %v818 = vunpack.c.l.b16 %v781
    %v819 = vunpack.c.l.b16 %v782
    %v820 = vunpack.c.l.b16 %v783
    %v821 = vunpack.c.l.b16 %v784
    %v822 = vunpack.c.l.b16 %v785
    %v823 = vpack.c.b16 %v808, %v807
    %v824 = vpack.c.b16 %v810, %v809
    %v825 = vpack.c.b16 %v812, %v811
    %v826 = vpack.c.b16 %v814, %v813
    %v827 = vpack.c.b16 %v816, %v815
    %v828 = vpack.c.b16 %v818, %v817
    %v829 = vpack.c.b16 %v820, %v819
    %v830 = vpack.c.b16 %v822, %v821
    %839 = vmatpush.bf16.msra.mxu0 %v830
    %840 = vmatpush.bf16.msra.mxu0 %v829
    %841 = vmatpush.bf16.msra.mxu0 %v828
    %842 = vmatpush.bf16.msra.mxu0 %v827
    %843 = vmatpush.bf16.msra.mxu0 %v826
    %844 = vmatpush.bf16.msra.mxu0 %v825
    %845 = vmatpush.bf16.msra.mxu0 %v824
    %846 = vmatpush.bf16.msra.mxu0 %v823
    %847 = vmatmul.bf16.gmra.mxu0 %v768
    %v848 = vpop.f32.mrf.mxu0
    %v849 = vadd.f32 %v789, %v848
    %v850 = vpop.f32.mrf.mxu0
    %851 = vdwg.mxu0
    %v852 = vadd.f32 %v680, %v849
    %v853 = vpack.c.bf16 %v852, %v852
    %s854 = scalar_lea.vmem [#allocation7], 576
    %v855 = vld [vmem:[%s854] sm:$0xf]
    %v856 = vld [vmem:[%s854 + $0x4] sm:$0xf]
    %v857 = vld [vmem:[%s854 + $0x8] sm:$0xf]
    %v858 = vld [vmem:[%s854 + $0xc] sm:$0xf]
    %v859 = vld [vmem:[%s854 + $0x10] sm:$0xf]
    %v860 = vld [vmem:[%s854 + $0x14] sm:$0xf]
    %v861 = vld [vmem:[%s854 + $0x18] sm:$0xf]
    %v862 = vld [vmem:[%s854 + $0x1c] sm:$0xf]
    %v863 = vld [vmem:[%s854 + $0x20] sm:$0xf]
    %v864 = vld [vmem:[%s854 + $0x24] sm:$0xf]
    %v865 = vld [vmem:[%s854 + $0x28] sm:$0xf]
    %v866 = vld [vmem:[%s854 + $0x2c] sm:$0xf]
    %v867 = vld [vmem:[%s854 + $0x30] sm:$0xf]
    %v868 = vld [vmem:[%s854 + $0x34] sm:$0xf]
    %v869 = vld [vmem:[%s854 + $0x38] sm:$0xf]
    %v870 = vld [vmem:[%s854 + $0x3c] sm:$0xf]
    %s871 = scalar_lea.vmem [#allocation8], 9
    %v872 = vld [vmem:[%s871] sm:$0x1]
    %v874 = vperm.slane %v872, 0
    %v892 = vunpack.c.l.b16 %v855
    %v893 = vunpack.c.l.b16 %v856
    %v894 = vunpack.c.l.b16 %v857
    %v895 = vunpack.c.l.b16 %v858
    %v896 = vunpack.c.l.b16 %v859
    %v897 = vunpack.c.l.b16 %v860
    %v898 = vunpack.c.l.b16 %v861
    %v899 = vunpack.c.l.b16 %v862
    %v900 = vunpack.c.l.b16 %v863
    %v901 = vunpack.c.l.b16 %v864
    %v902 = vunpack.c.l.b16 %v865
    %v903 = vunpack.c.l.b16 %v866
    %v904 = vunpack.c.l.b16 %v867
    %v905 = vunpack.c.l.b16 %v868
    %v906 = vunpack.c.l.b16 %v869
    %v907 = vunpack.c.l.b16 %v870
    %v908 = vpack.c.b16 %v893, %v892
    %v909 = vpack.c.b16 %v895, %v894
    %v910 = vpack.c.b16 %v897, %v896
    %v911 = vpack.c.b16 %v899, %v898
    %v912 = vpack.c.b16 %v901, %v900
    %v913 = vpack.c.b16 %v903, %v902
    %v914 = vpack.c.b16 %v905, %v904
    %v915 = vpack.c.b16 %v907, %v906
    %924 = vmatpush.bf16.msra.mxu0 %v915
    %925 = vmatpush.bf16.msra.mxu0 %v914
    %926 = vmatpush.bf16.msra.mxu0 %v913
    %927 = vmatpush.bf16.msra.mxu0 %v912
    %928 = vmatpush.bf16.msra.mxu0 %v911
    %929 = vmatpush.bf16.msra.mxu0 %v910
    %930 = vmatpush.bf16.msra.mxu0 %v909
    %931 = vmatpush.bf16.msra.mxu0 %v908
    %932 = vmatmul.bf16.gmra.mxu0 %v853
    %v933 = vpop.f32.mrf.mxu0
    %v934 = vadd.f32 %v874, %v933
    %v935 = vpop.f32.mrf.mxu0
    %936 = vdwg.mxu0
    %vm937 = vcmp.ge.f32.partialorder %v934, 0.0
    %v938 = vmul.f32 %v934, 0.2
    %v939 = vsel %vm937, %v934, %v938
    %v940 = vpack.c.bf16 %v939, %v939
    %s941 = scalar_lea.vmem [#allocation7], 640
    %v942 = vld [vmem:[%s941] sm:$0xf]
    %v943 = vld [vmem:[%s941 + $0x4] sm:$0xf]
    %v944 = vld [vmem:[%s941 + $0x8] sm:$0xf]
    %v945 = vld [vmem:[%s941 + $0xc] sm:$0xf]
    %v946 = vld [vmem:[%s941 + $0x10] sm:$0xf]
    %v947 = vld [vmem:[%s941 + $0x14] sm:$0xf]
    %v948 = vld [vmem:[%s941 + $0x18] sm:$0xf]
    %v949 = vld [vmem:[%s941 + $0x1c] sm:$0xf]
    %v950 = vld [vmem:[%s941 + $0x20] sm:$0xf]
    %v951 = vld [vmem:[%s941 + $0x24] sm:$0xf]
    %v952 = vld [vmem:[%s941 + $0x28] sm:$0xf]
    %v953 = vld [vmem:[%s941 + $0x2c] sm:$0xf]
    %v954 = vld [vmem:[%s941 + $0x30] sm:$0xf]
    %v955 = vld [vmem:[%s941 + $0x34] sm:$0xf]
    %v956 = vld [vmem:[%s941 + $0x38] sm:$0xf]
    %v957 = vld [vmem:[%s941 + $0x3c] sm:$0xf]
    %s958 = scalar_lea.vmem [#allocation8], 10
    %v959 = vld [vmem:[%s958] sm:$0x1]
    %v961 = vperm.slane %v959, 0
    %v979 = vunpack.c.l.b16 %v942
    %v980 = vunpack.c.l.b16 %v943
    %v981 = vunpack.c.l.b16 %v944
    %v982 = vunpack.c.l.b16 %v945
    %v983 = vunpack.c.l.b16 %v946
    %v984 = vunpack.c.l.b16 %v947
    %v985 = vunpack.c.l.b16 %v948
    %v986 = vunpack.c.l.b16 %v949
    %v987 = vunpack.c.l.b16 %v950
    %v988 = vunpack.c.l.b16 %v951
    %v989 = vunpack.c.l.b16 %v952
    %v990 = vunpack.c.l.b16 %v953
    %v991 = vunpack.c.l.b16 %v954
    %v992 = vunpack.c.l.b16 %v955
    %v993 = vunpack.c.l.b16 %v956
    %v994 = vunpack.c.l.b16 %v957
    %v995 = vpack.c.b16 %v980, %v979
    %v996 = vpack.c.b16 %v982, %v981
    %v997 = vpack.c.b16 %v984, %v983
    %v998 = vpack.c.b16 %v986, %v985
    %v999 = vpack.c.b16 %v988, %v987
    %v1000 = vpack.c.b16 %v990, %v989
    %v1001 = vpack.c.b16 %v992, %v991
    %v1002 = vpack.c.b16 %v994, %v993
    %1011 = vmatpush.bf16.msra.mxu0 %v1002
    %1012 = vmatpush.bf16.msra.mxu0 %v1001
    %1013 = vmatpush.bf16.msra.mxu0 %v1000
    %1014 = vmatpush.bf16.msra.mxu0 %v999
    %1015 = vmatpush.bf16.msra.mxu0 %v998
    %1016 = vmatpush.bf16.msra.mxu0 %v997
    %1017 = vmatpush.bf16.msra.mxu0 %v996
    %1018 = vmatpush.bf16.msra.mxu0 %v995
    %1019 = vmatmul.bf16.gmra.mxu0 %v940
    %v1020 = vpop.f32.mrf.mxu0
    %v1021 = vadd.f32 %v961, %v1020
    %v1022 = vpop.f32.mrf.mxu0
    %1023 = vdwg.mxu0
    %v1024 = vadd.f32 %v852, %v1021
    %v1025 = vpack.c.bf16 %v1024, %v1024
    %s1026 = scalar_lea.vmem [#allocation7], 704
    %v1027 = vld [vmem:[%s1026] sm:$0xf]
    %v1028 = vld [vmem:[%s1026 + $0x4] sm:$0xf]
    %v1029 = vld [vmem:[%s1026 + $0x8] sm:$0xf]
    %v1030 = vld [vmem:[%s1026 + $0xc] sm:$0xf]
    %v1031 = vld [vmem:[%s1026 + $0x10] sm:$0xf]
    %v1032 = vld [vmem:[%s1026 + $0x14] sm:$0xf]
    %v1033 = vld [vmem:[%s1026 + $0x18] sm:$0xf]
    %v1034 = vld [vmem:[%s1026 + $0x1c] sm:$0xf]
    %v1035 = vld [vmem:[%s1026 + $0x20] sm:$0xf]
    %v1036 = vld [vmem:[%s1026 + $0x24] sm:$0xf]
    %v1037 = vld [vmem:[%s1026 + $0x28] sm:$0xf]
    %v1038 = vld [vmem:[%s1026 + $0x2c] sm:$0xf]
    %v1039 = vld [vmem:[%s1026 + $0x30] sm:$0xf]
    %v1040 = vld [vmem:[%s1026 + $0x34] sm:$0xf]
    %v1041 = vld [vmem:[%s1026 + $0x38] sm:$0xf]
    %v1042 = vld [vmem:[%s1026 + $0x3c] sm:$0xf]
    %s1043 = scalar_lea.vmem [#allocation8], 11
    %v1044 = vld [vmem:[%s1043] sm:$0x1]
    %v1046 = vperm.slane %v1044, 0
    %v1064 = vunpack.c.l.b16 %v1027
    %v1065 = vunpack.c.l.b16 %v1028
    %v1066 = vunpack.c.l.b16 %v1029
    %v1067 = vunpack.c.l.b16 %v1030
    %v1068 = vunpack.c.l.b16 %v1031
    %v1069 = vunpack.c.l.b16 %v1032
    %v1070 = vunpack.c.l.b16 %v1033
    %v1071 = vunpack.c.l.b16 %v1034
    %v1072 = vunpack.c.l.b16 %v1035
    %v1073 = vunpack.c.l.b16 %v1036
    %v1074 = vunpack.c.l.b16 %v1037
    %v1075 = vunpack.c.l.b16 %v1038
    %v1076 = vunpack.c.l.b16 %v1039
    %v1077 = vunpack.c.l.b16 %v1040
    %v1078 = vunpack.c.l.b16 %v1041
    %v1079 = vunpack.c.l.b16 %v1042
    %v1080 = vpack.c.b16 %v1065, %v1064
    %v1081 = vpack.c.b16 %v1067, %v1066
    %v1082 = vpack.c.b16 %v1069, %v1068
    %v1083 = vpack.c.b16 %v1071, %v1070
    %v1084 = vpack.c.b16 %v1073, %v1072
    %v1085 = vpack.c.b16 %v1075, %v1074
    %v1086 = vpack.c.b16 %v1077, %v1076
    %v1087 = vpack.c.b16 %v1079, %v1078
    %1096 = vmatpush.bf16.msra.mxu0 %v1087
    %1097 = vmatpush.bf16.msra.mxu0 %v1086
    %1098 = vmatpush.bf16.msra.mxu0 %v1085
    %1099 = vmatpush.bf16.msra.mxu0 %v1084
    %1100 = vmatpush.bf16.msra.mxu0 %v1083
    %1101 = vmatpush.bf16.msra.mxu0 %v1082
    %1102 = vmatpush.bf16.msra.mxu0 %v1081
    %1103 = vmatpush.bf16.msra.mxu0 %v1080
    %1104 = vmatmul.bf16.gmra.mxu0 %v1025
    %v1105 = vpop.f32.mrf.mxu0
    %v1106 = vadd.f32 %v1046, %v1105
    %v1107 = vpop.f32.mrf.mxu0
    %1108 = vdwg.mxu0
    %v1109 = vlaneseq
    %v1110 = vand.u32 %v1109, 127
    %vm1111 = vcmp.ge.s32.totalorder %v1110, 36
    %vm1112 = vcmp.lt.s32.totalorder %v1110, 52
    %vm1113 = vmand %vm1111, %vm1112
    %v1114 = vmax.f32 %v1106, -100.0
    %v1115 = vmin.f32 %v1114, 100.0
    %v1116 = vsel %vm1113, %v1115, %v1106
    %v1117 = vmul.f32 %v1116, 0.5
    %v1118 = vmul.f32 %v1117, 1.442695
    %v1119 = vpow.pop %v1118
    %v1120 = vld [vmem:[#allocation5] sm:$0xff]
    %v1121 = vmul.f32 %v1120, %v1119
    %v1122 = vsel %vm1113, %v1121, %v1106
    %v1123 = vpack.c.bf16 %v1122, %v1122
    %s1124 = scalar_lea.vmem [#allocation7], 768
    %v1125 = vld [vmem:[%s1124] sm:$0xf]
    %v1126 = vld [vmem:[%s1124 + $0x4] sm:$0xf]
    %v1127 = vld [vmem:[%s1124 + $0x8] sm:$0xf]
    %v1128 = vld [vmem:[%s1124 + $0xc] sm:$0xf]
    %v1129 = vld [vmem:[%s1124 + $0x10] sm:$0xf]
    %v1130 = vld [vmem:[%s1124 + $0x14] sm:$0xf]
    %v1131 = vld [vmem:[%s1124 + $0x18] sm:$0xf]
    %v1132 = vld [vmem:[%s1124 + $0x1c] sm:$0xf]
    %v1133 = vld [vmem:[%s1124 + $0x20] sm:$0xf]
    %v1134 = vld [vmem:[%s1124 + $0x24] sm:$0xf]
    %v1135 = vld [vmem:[%s1124 + $0x28] sm:$0xf]
    %v1136 = vld [vmem:[%s1124 + $0x2c] sm:$0xf]
    %v1137 = vld [vmem:[%s1124 + $0x30] sm:$0xf]
    %v1138 = vld [vmem:[%s1124 + $0x34] sm:$0xf]
    %v1139 = vld [vmem:[%s1124 + $0x38] sm:$0xf]
    %v1140 = vld [vmem:[%s1124 + $0x3c] sm:$0xf]
    %s1141 = scalar_lea.vmem [#allocation8], 12
    %v1142 = vld [vmem:[%s1141] sm:$0x1]
    %v1144 = vperm.slane %v1142, 0
    %v1162 = vunpack.c.l.b16 %v1125
    %v1163 = vunpack.c.l.b16 %v1126
    %v1164 = vunpack.c.l.b16 %v1127
    %v1165 = vunpack.c.l.b16 %v1128
    %v1166 = vunpack.c.l.b16 %v1129
    %v1167 = vunpack.c.l.b16 %v1130
    %v1168 = vunpack.c.l.b16 %v1131
    %v1169 = vunpack.c.l.b16 %v1132
    %v1170 = vunpack.c.l.b16 %v1133
    %v1171 = vunpack.c.l.b16 %v1134
    %v1172 = vunpack.c.l.b16 %v1135
    %v1173 = vunpack.c.l.b16 %v1136
    %v1174 = vunpack.c.l.b16 %v1137
    %v1175 = vunpack.c.l.b16 %v1138
    %v1176 = vunpack.c.l.b16 %v1139
    %v1177 = vunpack.c.l.b16 %v1140
    %v1178 = vpack.c.b16 %v1163, %v1162
    %v1179 = vpack.c.b16 %v1165, %v1164
    %v1180 = vpack.c.b16 %v1167, %v1166
    %v1181 = vpack.c.b16 %v1169, %v1168
    %v1182 = vpack.c.b16 %v1171, %v1170
    %v1183 = vpack.c.b16 %v1173, %v1172
    %v1184 = vpack.c.b16 %v1175, %v1174
    %v1185 = vpack.c.b16 %v1177, %v1176
    %1194 = vmatpush.bf16.msra.mxu0 %v1185
    %1195 = vmatpush.bf16.msra.mxu0 %v1184
    %1196 = vmatpush.bf16.msra.mxu0 %v1183
    %1197 = vmatpush.bf16.msra.mxu0 %v1182
    %1198 = vmatpush.bf16.msra.mxu0 %v1181
    %1199 = vmatpush.bf16.msra.mxu0 %v1180
    %1200 = vmatpush.bf16.msra.mxu0 %v1179
    %1201 = vmatpush.bf16.msra.mxu0 %v1178
    %1202 = vmatmul.bf16.gmra.mxu0 %v1123
    %v1203 = vpop.f32.mrf.mxu0
    %v1204 = vadd.f32 %v1144, %v1203
    %v1205 = vpop.f32.mrf.mxu0
    %1206 = vdwg.mxu0
    %vm1207 = vcmp.ge.f32.partialorder %v1204, 0.0
    %v1208 = vmul.f32 %v1204, 0.2
    %v1209 = vsel %vm1207, %v1204, %v1208
    %v1210 = vpack.c.bf16 %v1209, %v1209
    %s1211 = scalar_lea.vmem [#allocation7], 832
    %v1212 = vld [vmem:[%s1211] sm:$0xf]
    %v1213 = vld [vmem:[%s1211 + $0x4] sm:$0xf]
    %v1214 = vld [vmem:[%s1211 + $0x8] sm:$0xf]
    %v1215 = vld [vmem:[%s1211 + $0xc] sm:$0xf]
    %v1216 = vld [vmem:[%s1211 + $0x10] sm:$0xf]
    %v1217 = vld [vmem:[%s1211 + $0x14] sm:$0xf]
    %v1218 = vld [vmem:[%s1211 + $0x18] sm:$0xf]
    %v1219 = vld [vmem:[%s1211 + $0x1c] sm:$0xf]
    %v1220 = vld [vmem:[%s1211 + $0x20] sm:$0xf]
    %v1221 = vld [vmem:[%s1211 + $0x24] sm:$0xf]
    %v1222 = vld [vmem:[%s1211 + $0x28] sm:$0xf]
    %v1223 = vld [vmem:[%s1211 + $0x2c] sm:$0xf]
    %v1224 = vld [vmem:[%s1211 + $0x30] sm:$0xf]
    %v1225 = vld [vmem:[%s1211 + $0x34] sm:$0xf]
    %v1226 = vld [vmem:[%s1211 + $0x38] sm:$0xf]
    %v1227 = vld [vmem:[%s1211 + $0x3c] sm:$0xf]
    %s1228 = scalar_lea.vmem [#allocation8], 13
    %v1229 = vld [vmem:[%s1228] sm:$0x1]
    %v1231 = vperm.slane %v1229, 0
    %v1249 = vunpack.c.l.b16 %v1212
    %v1250 = vunpack.c.l.b16 %v1213
    %v1251 = vunpack.c.l.b16 %v1214
    %v1252 = vunpack.c.l.b16 %v1215
    %v1253 = vunpack.c.l.b16 %v1216
    %v1254 = vunpack.c.l.b16 %v1217
    %v1255 = vunpack.c.l.b16 %v1218
    %v1256 = vunpack.c.l.b16 %v1219
    %v1257 = vunpack.c.l.b16 %v1220
    %v1258 = vunpack.c.l.b16 %v1221
    %v1259 = vunpack.c.l.b16 %v1222
    %v1260 = vunpack.c.l.b16 %v1223
    %v1261 = vunpack.c.l.b16 %v1224
    %v1262 = vunpack.c.l.b16 %v1225
    %v1263 = vunpack.c.l.b16 %v1226
    %v1264 = vunpack.c.l.b16 %v1227
    %v1265 = vpack.c.b16 %v1250, %v1249
    %v1266 = vpack.c.b16 %v1252, %v1251
    %v1267 = vpack.c.b16 %v1254, %v1253
    %v1268 = vpack.c.b16 %v1256, %v1255
    %v1269 = vpack.c.b16 %v1258, %v1257
    %v1270 = vpack.c.b16 %v1260, %v1259
    %v1271 = vpack.c.b16 %v1262, %v1261
    %v1272 = vpack.c.b16 %v1264, %v1263
    %1281 = vmatpush.bf16.msra.mxu0 %v1272
    %1282 = vmatpush.bf16.msra.mxu0 %v1271
    %1283 = vmatpush.bf16.msra.mxu0 %v1270
    %1284 = vmatpush.bf16.msra.mxu0 %v1269
    %1285 = vmatpush.bf16.msra.mxu0 %v1268
    %1286 = vmatpush.bf16.msra.mxu0 %v1267
    %1287 = vmatpush.bf16.msra.mxu0 %v1266
    %1288 = vmatpush.bf16.msra.mxu0 %v1265
    %1289 = vmatmul.bf16.gmra.mxu0 %v1210
    %v1290 = vpop.f32.mrf.mxu0
    %v1291 = vadd.f32 %v1231, %v1290
    %v1292 = vpop.f32.mrf.mxu0
    %1293 = vdwg.mxu0
    %vm1294 = vcmp.ge.f32.partialorder %v1291, 0.0
    %v1295 = vmul.f32 %v1291, 0.2
    %v1296 = vsel %vm1294, %v1291, %v1295
    %v1297 = vpack.c.bf16 %v1296, %v1296
    %s1298 = scalar_lea.vmem [#allocation7], 896
    %v1299 = vld [vmem:[%s1298] sm:$0xf]
    %v1300 = vld [vmem:[%s1298 + $0x4] sm:$0xf]
    %v1301 = vld [vmem:[%s1298 + $0x8] sm:$0xf]
    %v1302 = vld [vmem:[%s1298 + $0xc] sm:$0xf]
    %v1303 = vld [vmem:[%s1298 + $0x10] sm:$0xf]
    %v1304 = vld [vmem:[%s1298 + $0x14] sm:$0xf]
    %v1305 = vld [vmem:[%s1298 + $0x18] sm:$0xf]
    %v1306 = vld [vmem:[%s1298 + $0x1c] sm:$0xf]
    %v1307 = vld [vmem:[%s1298 + $0x20] sm:$0xf]
    %v1308 = vld [vmem:[%s1298 + $0x24] sm:$0xf]
    %v1309 = vld [vmem:[%s1298 + $0x28] sm:$0xf]
    %v1310 = vld [vmem:[%s1298 + $0x2c] sm:$0xf]
    %v1311 = vld [vmem:[%s1298 + $0x30] sm:$0xf]
    %v1312 = vld [vmem:[%s1298 + $0x34] sm:$0xf]
    %v1313 = vld [vmem:[%s1298 + $0x38] sm:$0xf]
    %v1314 = vld [vmem:[%s1298 + $0x3c] sm:$0xf]
    %s1315 = scalar_lea.vmem [#allocation8], 14
    %v1316 = vld [vmem:[%s1315] sm:$0x1]
    %v1318 = vperm.slane %v1316, 0
    %v1336 = vunpack.c.l.b16 %v1299
    %v1337 = vunpack.c.l.b16 %v1300
    %v1338 = vunpack.c.l.b16 %v1301
    %v1339 = vunpack.c.l.b16 %v1302
    %v1340 = vunpack.c.l.b16 %v1303
    %v1341 = vunpack.c.l.b16 %v1304
    %v1342 = vunpack.c.l.b16 %v1305
    %v1343 = vunpack.c.l.b16 %v1306
    %v1344 = vunpack.c.l.b16 %v1307
    %v1345 = vunpack.c.l.b16 %v1308
    %v1346 = vunpack.c.l.b16 %v1309
    %v1347 = vunpack.c.l.b16 %v1310
    %v1348 = vunpack.c.l.b16 %v1311
    %v1349 = vunpack.c.l.b16 %v1312
    %v1350 = vunpack.c.l.b16 %v1313
    %v1351 = vunpack.c.l.b16 %v1314
    %v1352 = vpack.c.b16 %v1337, %v1336
    %v1353 = vpack.c.b16 %v1339, %v1338
    %v1354 = vpack.c.b16 %v1341, %v1340
    %v1355 = vpack.c.b16 %v1343, %v1342
    %v1356 = vpack.c.b16 %v1345, %v1344
    %v1357 = vpack.c.b16 %v1347, %v1346
    %v1358 = vpack.c.b16 %v1349, %v1348
    %v1359 = vpack.c.b16 %v1351, %v1350
    %1368 = vmatpush.bf16.msra.mxu0 %v1359
    %1369 = vmatpush.bf16.msra.mxu0 %v1358
    %1370 = vmatpush.bf16.msra.mxu0 %v1357
    %1371 = vmatpush.bf16.msra.mxu0 %v1356
    %1372 = vmatpush.bf16.msra.mxu0 %v1355
    %1373 = vmatpush.bf16.msra.mxu0 %v1354
    %1374 = vmatpush.bf16.msra.mxu0 %v1353
    %1375 = vmatpush.bf16.msra.mxu0 %v1352
    %1376 = vmatmul.bf16.gmra.mxu0 %v1297
    %v1377 = vpop.f32.mrf.mxu0
    %v1378 = vadd.f32 %v1318, %v1377
    %v1379 = vpop.f32.mrf.mxu0
    %1380 = vdwg.mxu0
    %vm1381 = vcmp.ge.f32.partialorder %v1378, 0.0
    %v1382 = vmul.f32 %v1378, 0.2
    %v1383 = vsel %vm1381, %v1378, %v1382
    %v1384 = vpack.c.bf16 %v1383, %v1383
    %s1385 = scalar_lea.vmem [#allocation7], 960
    %v1386 = vld [vmem:[%s1385] sm:$0xf]
    %v1387 = vld [vmem:[%s1385 + $0x4] sm:$0xf]
    %v1388 = vld [vmem:[%s1385 + $0x8] sm:$0xf]
    %v1389 = vld [vmem:[%s1385 + $0xc] sm:$0xf]
    %v1390 = vld [vmem:[%s1385 + $0x10] sm:$0xf]
    %v1391 = vld [vmem:[%s1385 + $0x14] sm:$0xf]
    %v1392 = vld [vmem:[%s1385 + $0x18] sm:$0xf]
    %v1393 = vld [vmem:[%s1385 + $0x1c] sm:$0xf]
    %v1394 = vld [vmem:[%s1385 + $0x20] sm:$0xf]
    %v1395 = vld [vmem:[%s1385 + $0x24] sm:$0xf]
    %v1396 = vld [vmem:[%s1385 + $0x28] sm:$0xf]
    %v1397 = vld [vmem:[%s1385 + $0x2c] sm:$0xf]
    %v1398 = vld [vmem:[%s1385 + $0x30] sm:$0xf]
    %v1399 = vld [vmem:[%s1385 + $0x34] sm:$0xf]
    %v1400 = vld [vmem:[%s1385 + $0x38] sm:$0xf]
    %v1401 = vld [vmem:[%s1385 + $0x3c] sm:$0xf]
    %s1402 = scalar_lea.vmem [#allocation8], 15
    %v1403 = vld [vmem:[%s1402] sm:$0x1]
    %v1405 = vperm.slane %v1403, 0
    %v1423 = vunpack.c.l.b16 %v1386
    %v1424 = vunpack.c.l.b16 %v1387
    %v1425 = vunpack.c.l.b16 %v1388
    %v1426 = vunpack.c.l.b16 %v1389
    %v1427 = vunpack.c.l.b16 %v1390
    %v1428 = vunpack.c.l.b16 %v1391
    %v1429 = vunpack.c.l.b16 %v1392
    %v1430 = vunpack.c.l.b16 %v1393
    %v1431 = vunpack.c.l.b16 %v1394
    %v1432 = vunpack.c.l.b16 %v1395
    %v1433 = vunpack.c.l.b16 %v1396
    %v1434 = vunpack.c.l.b16 %v1397
    %v1435 = vunpack.c.l.b16 %v1398
    %v1436 = vunpack.c.l.b16 %v1399
    %v1437 = vunpack.c.l.b16 %v1400
    %v1438 = vunpack.c.l.b16 %v1401
    %v1439 = vpack.c.b16 %v1424, %v1423
    %v1440 = vpack.c.b16 %v1426, %v1425
    %v1441 = vpack.c.b16 %v1428, %v1427
    %v1442 = vpack.c.b16 %v1430, %v1429
    %v1443 = vpack.c.b16 %v1432, %v1431
    %v1444 = vpack.c.b16 %v1434, %v1433
    %v1445 = vpack.c.b16 %v1436, %v1435
    %v1446 = vpack.c.b16 %v1438, %v1437
    %1455 = vmatpush.bf16.msra.mxu0 %v1446
    %1456 = vmatpush.bf16.msra.mxu0 %v1445
    %1457 = vmatpush.bf16.msra.mxu0 %v1444
    %1458 = vmatpush.bf16.msra.mxu0 %v1443
    %1459 = vmatpush.bf16.msra.mxu0 %v1442
    %1460 = vmatpush.bf16.msra.mxu0 %v1441
    %1461 = vmatpush.bf16.msra.mxu0 %v1440
    %1462 = vmatpush.bf16.msra.mxu0 %v1439
    %1463 = vmatmul.bf16.gmra.mxu0 %v1384
    %v1464 = vpop.f32.mrf.mxu0
    %v1465 = vadd.f32 %v1405, %v1464
    %v1466 = vpop.f32.mrf.mxu0
    %1467 = vdwg.mxu0
    %v1468 = vadd.f32 %v1296, %v1465
    %v1469 = vpack.c.bf16 %v1468, %v1468
    %s1470 = scalar_lea.vmem [#allocation7], 1024
    %v1471 = vld [vmem:[%s1470] sm:$0xf]
    %v1472 = vld [vmem:[%s1470 + $0x4] sm:$0xf]
    %v1473 = vld [vmem:[%s1470 + $0x8] sm:$0xf]
    %v1474 = vld [vmem:[%s1470 + $0xc] sm:$0xf]
    %v1475 = vld [vmem:[%s1470 + $0x10] sm:$0xf]
    %v1476 = vld [vmem:[%s1470 + $0x14] sm:$0xf]
    %v1477 = vld [vmem:[%s1470 + $0x18] sm:$0xf]
    %v1478 = vld [vmem:[%s1470 + $0x1c] sm:$0xf]
    %v1479 = vld [vmem:[%s1470 + $0x20] sm:$0xf]
    %v1480 = vld [vmem:[%s1470 + $0x24] sm:$0xf]
    %v1481 = vld [vmem:[%s1470 + $0x28] sm:$0xf]
    %v1482 = vld [vmem:[%s1470 + $0x2c] sm:$0xf]
    %v1483 = vld [vmem:[%s1470 + $0x30] sm:$0xf]
    %v1484 = vld [vmem:[%s1470 + $0x34] sm:$0xf]
    %v1485 = vld [vmem:[%s1470 + $0x38] sm:$0xf]
    %v1486 = vld [vmem:[%s1470 + $0x3c] sm:$0xf]
    %s1487 = scalar_lea.vmem [#allocation8], 16
    %v1488 = vld [vmem:[%s1487] sm:$0x1]
    %v1490 = vperm.slane %v1488, 0
    %v1508 = vunpack.c.l.b16 %v1471
    %v1509 = vunpack.c.l.b16 %v1472
    %v1510 = vunpack.c.l.b16 %v1473
    %v1511 = vunpack.c.l.b16 %v1474
    %v1512 = vunpack.c.l.b16 %v1475
    %v1513 = vunpack.c.l.b16 %v1476
    %v1514 = vunpack.c.l.b16 %v1477
    %v1515 = vunpack.c.l.b16 %v1478
    %v1516 = vunpack.c.l.b16 %v1479
    %v1517 = vunpack.c.l.b16 %v1480
    %v1518 = vunpack.c.l.b16 %v1481
    %v1519 = vunpack.c.l.b16 %v1482
    %v1520 = vunpack.c.l.b16 %v1483
    %v1521 = vunpack.c.l.b16 %v1484
    %v1522 = vunpack.c.l.b16 %v1485
    %v1523 = vunpack.c.l.b16 %v1486
    %v1524 = vpack.c.b16 %v1509, %v1508
    %v1525 = vpack.c.b16 %v1511, %v1510
    %v1526 = vpack.c.b16 %v1513, %v1512
    %v1527 = vpack.c.b16 %v1515, %v1514
    %v1528 = vpack.c.b16 %v1517, %v1516
    %v1529 = vpack.c.b16 %v1519, %v1518
    %v1530 = vpack.c.b16 %v1521, %v1520
    %v1531 = vpack.c.b16 %v1523, %v1522
    %1540 = vmatpush.bf16.msra.mxu0 %v1531
    %1541 = vmatpush.bf16.msra.mxu0 %v1530
    %1542 = vmatpush.bf16.msra.mxu0 %v1529
    %1543 = vmatpush.bf16.msra.mxu0 %v1528
    %1544 = vmatpush.bf16.msra.mxu0 %v1527
    %1545 = vmatpush.bf16.msra.mxu0 %v1526
    %1546 = vmatpush.bf16.msra.mxu0 %v1525
    %1547 = vmatpush.bf16.msra.mxu0 %v1524
    %1548 = vmatmul.bf16.gmra.mxu0 %v1469
    %v1549 = vpop.f32.mrf.mxu0
    %v1550 = vadd.f32 %v1490, %v1549
    %v1551 = vpop.f32.mrf.mxu0
    %1552 = vdwg.mxu0
    %vm1553 = vcmp.ge.f32.partialorder %v1550, 0.0
    %v1554 = vmul.f32 %v1550, 0.2
    %v1555 = vsel %vm1553, %v1550, %v1554
    %v1556 = vpack.c.bf16 %v1555, %v1555
    %s1557 = scalar_lea.vmem [#allocation7], 1088
    %v1558 = vld [vmem:[%s1557] sm:$0xf]
    %v1559 = vld [vmem:[%s1557 + $0x4] sm:$0xf]
    %v1560 = vld [vmem:[%s1557 + $0x8] sm:$0xf]
    %v1561 = vld [vmem:[%s1557 + $0xc] sm:$0xf]
    %v1562 = vld [vmem:[%s1557 + $0x10] sm:$0xf]
    %v1563 = vld [vmem:[%s1557 + $0x14] sm:$0xf]
    %v1564 = vld [vmem:[%s1557 + $0x18] sm:$0xf]
    %v1565 = vld [vmem:[%s1557 + $0x1c] sm:$0xf]
    %v1566 = vld [vmem:[%s1557 + $0x20] sm:$0xf]
    %v1567 = vld [vmem:[%s1557 + $0x24] sm:$0xf]
    %v1568 = vld [vmem:[%s1557 + $0x28] sm:$0xf]
    %v1569 = vld [vmem:[%s1557 + $0x2c] sm:$0xf]
    %v1570 = vld [vmem:[%s1557 + $0x30] sm:$0xf]
    %v1571 = vld [vmem:[%s1557 + $0x34] sm:$0xf]
    %v1572 = vld [vmem:[%s1557 + $0x38] sm:$0xf]
    %v1573 = vld [vmem:[%s1557 + $0x3c] sm:$0xf]
    %s1574 = scalar_lea.vmem [#allocation8], 17
    %v1575 = vld [vmem:[%s1574] sm:$0x1]
    %v1577 = vperm.slane %v1575, 0
    %v1595 = vunpack.c.l.b16 %v1558
    %v1596 = vunpack.c.l.b16 %v1559
    %v1597 = vunpack.c.l.b16 %v1560
    %v1598 = vunpack.c.l.b16 %v1561
    %v1599 = vunpack.c.l.b16 %v1562
    %v1600 = vunpack.c.l.b16 %v1563
    %v1601 = vunpack.c.l.b16 %v1564
    %v1602 = vunpack.c.l.b16 %v1565
    %v1603 = vunpack.c.l.b16 %v1566
    %v1604 = vunpack.c.l.b16 %v1567
    %v1605 = vunpack.c.l.b16 %v1568
    %v1606 = vunpack.c.l.b16 %v1569
    %v1607 = vunpack.c.l.b16 %v1570
    %v1608 = vunpack.c.l.b16 %v1571
    %v1609 = vunpack.c.l.b16 %v1572
    %v1610 = vunpack.c.l.b16 %v1573
    %v1611 = vpack.c.b16 %v1596, %v1595
    %v1612 = vpack.c.b16 %v1598, %v1597
    %v1613 = vpack.c.b16 %v1600, %v1599
    %v1614 = vpack.c.b16 %v1602, %v1601
    %v1615 = vpack.c.b16 %v1604, %v1603
    %v1616 = vpack.c.b16 %v1606, %v1605
    %v1617 = vpack.c.b16 %v1608, %v1607
    %v1618 = vpack.c.b16 %v1610, %v1609
    %1627 = vmatpush.bf16.msra.mxu0 %v1618
    %1628 = vmatpush.bf16.msra.mxu0 %v1617
    %1629 = vmatpush.bf16.msra.mxu0 %v1616
    %1630 = vmatpush.bf16.msra.mxu0 %v1615
    %1631 = vmatpush.bf16.msra.mxu0 %v1614
    %1632 = vmatpush.bf16.msra.mxu0 %v1613
    %1633 = vmatpush.bf16.msra.mxu0 %v1612
    %1634 = vmatpush.bf16.msra.mxu0 %v1611
    %1635 = vmatmul.bf16.gmra.mxu0 %v1556
    %v1636 = vpop.f32.mrf.mxu0
    %v1637 = vadd.f32 %v1577, %v1636
    %v1638 = vpop.f32.mrf.mxu0
    %1639 = vdwg.mxu0
    %v1640 = vadd.f32 %v1468, %v1637
    %v1641 = vpack.c.bf16 %v1640, %v1640
    %s1642 = scalar_lea.vmem [#allocation7], 1152
    %v1643 = vld [vmem:[%s1642] sm:$0xf]
    %v1644 = vld [vmem:[%s1642 + $0x4] sm:$0xf]
    %v1645 = vld [vmem:[%s1642 + $0x8] sm:$0xf]
    %v1646 = vld [vmem:[%s1642 + $0xc] sm:$0xf]
    %v1647 = vld [vmem:[%s1642 + $0x10] sm:$0xf]
    %v1648 = vld [vmem:[%s1642 + $0x14] sm:$0xf]
    %v1649 = vld [vmem:[%s1642 + $0x18] sm:$0xf]
    %v1650 = vld [vmem:[%s1642 + $0x1c] sm:$0xf]
    %v1651 = vld [vmem:[%s1642 + $0x20] sm:$0xf]
    %v1652 = vld [vmem:[%s1642 + $0x24] sm:$0xf]
    %v1653 = vld [vmem:[%s1642 + $0x28] sm:$0xf]
    %v1654 = vld [vmem:[%s1642 + $0x2c] sm:$0xf]
    %v1655 = vld [vmem:[%s1642 + $0x30] sm:$0xf]
    %v1656 = vld [vmem:[%s1642 + $0x34] sm:$0xf]
    %v1657 = vld [vmem:[%s1642 + $0x38] sm:$0xf]
    %v1658 = vld [vmem:[%s1642 + $0x3c] sm:$0xf]
    %s1659 = scalar_lea.vmem [#allocation8], 18
    %v1660 = vld [vmem:[%s1659] sm:$0x1]
    %v1662 = vperm.slane %v1660, 0
    %v1680 = vunpack.c.l.b16 %v1643
    %v1681 = vunpack.c.l.b16 %v1644
    %v1682 = vunpack.c.l.b16 %v1645
    %v1683 = vunpack.c.l.b16 %v1646
    %v1684 = vunpack.c.l.b16 %v1647
    %v1685 = vunpack.c.l.b16 %v1648
    %v1686 = vunpack.c.l.b16 %v1649
    %v1687 = vunpack.c.l.b16 %v1650
    %v1688 = vunpack.c.l.b16 %v1651
    %v1689 = vunpack.c.l.b16 %v1652
    %v1690 = vunpack.c.l.b16 %v1653
    %v1691 = vunpack.c.l.b16 %v1654
    %v1692 = vunpack.c.l.b16 %v1655
    %v1693 = vunpack.c.l.b16 %v1656
    %v1694 = vunpack.c.l.b16 %v1657
    %v1695 = vunpack.c.l.b16 %v1658
    %v1696 = vpack.c.b16 %v1681, %v1680
    %v1697 = vpack.c.b16 %v1683, %v1682
    %v1698 = vpack.c.b16 %v1685, %v1684
    %v1699 = vpack.c.b16 %v1687, %v1686
    %v1700 = vpack.c.b16 %v1689, %v1688
    %v1701 = vpack.c.b16 %v1691, %v1690
    %v1702 = vpack.c.b16 %v1693, %v1692
    %v1703 = vpack.c.b16 %v1695, %v1694
    %1712 = vmatpush.bf16.msra.mxu0 %v1703
    %1713 = vmatpush.bf16.msra.mxu0 %v1702
    %1714 = vmatpush.bf16.msra.mxu0 %v1701
    %1715 = vmatpush.bf16.msra.mxu0 %v1700
    %1716 = vmatpush.bf16.msra.mxu0 %v1699
    %1717 = vmatpush.bf16.msra.mxu0 %v1698
    %1718 = vmatpush.bf16.msra.mxu0 %v1697
    %1719 = vmatpush.bf16.msra.mxu0 %v1696
    %1720 = vmatmul.bf16.gmra.mxu0 %v1641
    %v1721 = vpop.f32.mrf.mxu0
    %v1722 = vadd.f32 %v1662, %v1721
    %v1723 = vpop.f32.mrf.mxu0
    %1724 = vdwg.mxu0
    %vm1725 = vcmp.ge.f32.partialorder %v1722, 0.0
    %v1726 = vmul.f32 %v1722, 0.2
    %v1727 = vsel %vm1725, %v1722, %v1726
    %v1728 = vpack.c.bf16 %v1727, %v1727
    %s1729 = scalar_lea.vmem [#allocation7], 1216
    %v1730 = vld [vmem:[%s1729] sm:$0xf]
    %v1731 = vld [vmem:[%s1729 + $0x4] sm:$0xf]
    %v1732 = vld [vmem:[%s1729 + $0x8] sm:$0xf]
    %v1733 = vld [vmem:[%s1729 + $0xc] sm:$0xf]
    %v1734 = vld [vmem:[%s1729 + $0x10] sm:$0xf]
    %v1735 = vld [vmem:[%s1729 + $0x14] sm:$0xf]
    %v1736 = vld [vmem:[%s1729 + $0x18] sm:$0xf]
    %v1737 = vld [vmem:[%s1729 + $0x1c] sm:$0xf]
    %v1738 = vld [vmem:[%s1729 + $0x20] sm:$0xf]
    %v1739 = vld [vmem:[%s1729 + $0x24] sm:$0xf]
    %v1740 = vld [vmem:[%s1729 + $0x28] sm:$0xf]
    %v1741 = vld [vmem:[%s1729 + $0x2c] sm:$0xf]
    %v1742 = vld [vmem:[%s1729 + $0x30] sm:$0xf]
    %v1743 = vld [vmem:[%s1729 + $0x34] sm:$0xf]
    %v1744 = vld [vmem:[%s1729 + $0x38] sm:$0xf]
    %v1745 = vld [vmem:[%s1729 + $0x3c] sm:$0xf]
    %s1746 = scalar_lea.vmem [#allocation8], 19
    %v1747 = vld [vmem:[%s1746] sm:$0x1]
    %v1749 = vperm.slane %v1747, 0
    %v1767 = vunpack.c.l.b16 %v1730
    %v1768 = vunpack.c.l.b16 %v1731
    %v1769 = vunpack.c.l.b16 %v1732
    %v1770 = vunpack.c.l.b16 %v1733
    %v1771 = vunpack.c.l.b16 %v1734
    %v1772 = vunpack.c.l.b16 %v1735
    %v1773 = vunpack.c.l.b16 %v1736
    %v1774 = vunpack.c.l.b16 %v1737
    %v1775 = vunpack.c.l.b16 %v1738
    %v1776 = vunpack.c.l.b16 %v1739
    %v1777 = vunpack.c.l.b16 %v1740
    %v1778 = vunpack.c.l.b16 %v1741
    %v1779 = vunpack.c.l.b16 %v1742
    %v1780 = vunpack.c.l.b16 %v1743
    %v1781 = vunpack.c.l.b16 %v1744
    %v1782 = vunpack.c.l.b16 %v1745
    %v1783 = vpack.c.b16 %v1768, %v1767
    %v1784 = vpack.c.b16 %v1770, %v1769
    %v1785 = vpack.c.b16 %v1772, %v1771
    %v1786 = vpack.c.b16 %v1774, %v1773
    %v1787 = vpack.c.b16 %v1776, %v1775
    %v1788 = vpack.c.b16 %v1778, %v1777
    %v1789 = vpack.c.b16 %v1780, %v1779
    %v1790 = vpack.c.b16 %v1782, %v1781
    %1799 = vmatpush.bf16.msra.mxu0 %v1790
    %1800 = vmatpush.bf16.msra.mxu0 %v1789
    %1801 = vmatpush.bf16.msra.mxu0 %v1788
    %1802 = vmatpush.bf16.msra.mxu0 %v1787
    %1803 = vmatpush.bf16.msra.mxu0 %v1786
    %1804 = vmatpush.bf16.msra.mxu0 %v1785
    %1805 = vmatpush.bf16.msra.mxu0 %v1784
    %1806 = vmatpush.bf16.msra.mxu0 %v1783
    %1807 = vmatmul.bf16.gmra.mxu0 %v1728
    %v1808 = vpop.f32.mrf.mxu0
    %v1809 = vadd.f32 %v1749, %v1808
    %v1810 = vpop.f32.mrf.mxu0
    %1811 = vdwg.mxu0
    %vm1812 = vcmp.ge.f32.partialorder %v1809, 0.0
    %v1813 = vmul.f32 %v1809, 0.2
    %v1814 = vsel %vm1812, %v1809, %v1813
    %v1815 = vpack.c.bf16 %v1814, %v1814
    %s1816 = scalar_lea.vmem [#allocation7], 1280
    %v1817 = vld [vmem:[%s1816] sm:$0xf]
    %v1818 = vld [vmem:[%s1816 + $0x4] sm:$0xf]
    %v1819 = vld [vmem:[%s1816 + $0x8] sm:$0xf]
    %v1820 = vld [vmem:[%s1816 + $0xc] sm:$0xf]
    %v1821 = vld [vmem:[%s1816 + $0x10] sm:$0xf]
    %v1822 = vld [vmem:[%s1816 + $0x14] sm:$0xf]
    %v1823 = vld [vmem:[%s1816 + $0x18] sm:$0xf]
    %v1824 = vld [vmem:[%s1816 + $0x1c] sm:$0xf]
    %v1825 = vld [vmem:[%s1816 + $0x20] sm:$0xf]
    %v1826 = vld [vmem:[%s1816 + $0x24] sm:$0xf]
    %v1827 = vld [vmem:[%s1816 + $0x28] sm:$0xf]
    %v1828 = vld [vmem:[%s1816 + $0x2c] sm:$0xf]
    %v1829 = vld [vmem:[%s1816 + $0x30] sm:$0xf]
    %v1830 = vld [vmem:[%s1816 + $0x34] sm:$0xf]
    %v1831 = vld [vmem:[%s1816 + $0x38] sm:$0xf]
    %v1832 = vld [vmem:[%s1816 + $0x3c] sm:$0xf]
    %s1833 = scalar_lea.vmem [#allocation8], 20
    %v1834 = vld [vmem:[%s1833] sm:$0x1]
    %v1836 = vperm.slane %v1834, 0
    %v1854 = vunpack.c.l.b16 %v1817
    %v1855 = vunpack.c.l.b16 %v1818
    %v1856 = vunpack.c.l.b16 %v1819
    %v1857 = vunpack.c.l.b16 %v1820
    %v1858 = vunpack.c.l.b16 %v1821
    %v1859 = vunpack.c.l.b16 %v1822
    %v1860 = vunpack.c.l.b16 %v1823
    %v1861 = vunpack.c.l.b16 %v1824
    %v1862 = vunpack.c.l.b16 %v1825
    %v1863 = vunpack.c.l.b16 %v1826
    %v1864 = vunpack.c.l.b16 %v1827
    %v1865 = vunpack.c.l.b16 %v1828
    %v1866 = vunpack.c.l.b16 %v1829
    %v1867 = vunpack.c.l.b16 %v1830
    %v1868 = vunpack.c.l.b16 %v1831
    %v1869 = vunpack.c.l.b16 %v1832
    %v1870 = vpack.c.b16 %v1855, %v1854
    %v1871 = vpack.c.b16 %v1857, %v1856
    %v1872 = vpack.c.b16 %v1859, %v1858
    %v1873 = vpack.c.b16 %v1861, %v1860
    %v1874 = vpack.c.b16 %v1863, %v1862
    %v1875 = vpack.c.b16 %v1865, %v1864
    %v1876 = vpack.c.b16 %v1867, %v1866
    %v1877 = vpack.c.b16 %v1869, %v1868
    %1886 = vmatpush.bf16.msra.mxu0 %v1877
    %1887 = vmatpush.bf16.msra.mxu0 %v1876
    %1888 = vmatpush.bf16.msra.mxu0 %v1875
    %1889 = vmatpush.bf16.msra.mxu0 %v1874
    %1890 = vmatpush.bf16.msra.mxu0 %v1873
    %1891 = vmatpush.bf16.msra.mxu0 %v1872
    %1892 = vmatpush.bf16.msra.mxu0 %v1871
    %1893 = vmatpush.bf16.msra.mxu0 %v1870
    %1894 = vmatmul.bf16.gmra.mxu0 %v1815
    %v1895 = vpop.f32.mrf.mxu0
    %v1896 = vadd.f32 %v1836, %v1895
    %v1897 = vpop.f32.mrf.mxu0
    %1898 = vdwg.mxu0
    %v1899 = vadd.f32 %v1727, %v1896
    %v1900 = vpack.c.bf16 %v1899, %v1899
    %s1901 = scalar_lea.vmem [#allocation7], 1344
    %v1902 = vld [vmem:[%s1901] sm:$0xf]
    %v1903 = vld [vmem:[%s1901 + $0x4] sm:$0xf]
    %v1904 = vld [vmem:[%s1901 + $0x8] sm:$0xf]
    %v1905 = vld [vmem:[%s1901 + $0xc] sm:$0xf]
    %v1906 = vld [vmem:[%s1901 + $0x10] sm:$0xf]
    %v1907 = vld [vmem:[%s1901 + $0x14] sm:$0xf]
    %v1908 = vld [vmem:[%s1901 + $0x18] sm:$0xf]
    %v1909 = vld [vmem:[%s1901 + $0x1c] sm:$0xf]
    %v1910 = vld [vmem:[%s1901 + $0x20] sm:$0xf]
    %v1911 = vld [vmem:[%s1901 + $0x24] sm:$0xf]
    %v1912 = vld [vmem:[%s1901 + $0x28] sm:$0xf]
    %v1913 = vld [vmem:[%s1901 + $0x2c] sm:$0xf]
    %v1914 = vld [vmem:[%s1901 + $0x30] sm:$0xf]
    %v1915 = vld [vmem:[%s1901 + $0x34] sm:$0xf]
    %v1916 = vld [vmem:[%s1901 + $0x38] sm:$0xf]
    %v1917 = vld [vmem:[%s1901 + $0x3c] sm:$0xf]
    %s1918 = scalar_lea.vmem [#allocation8], 21
    %v1919 = vld [vmem:[%s1918] sm:$0x1]
    %v1921 = vperm.slane %v1919, 0
    %v1939 = vunpack.c.l.b16 %v1902
    %v1940 = vunpack.c.l.b16 %v1903
    %v1941 = vunpack.c.l.b16 %v1904
    %v1942 = vunpack.c.l.b16 %v1905
    %v1943 = vunpack.c.l.b16 %v1906
    %v1944 = vunpack.c.l.b16 %v1907
    %v1945 = vunpack.c.l.b16 %v1908
    %v1946 = vunpack.c.l.b16 %v1909
    %v1947 = vunpack.c.l.b16 %v1910
    %v1948 = vunpack.c.l.b16 %v1911
    %v1949 = vunpack.c.l.b16 %v1912
    %v1950 = vunpack.c.l.b16 %v1913
    %v1951 = vunpack.c.l.b16 %v1914
    %v1952 = vunpack.c.l.b16 %v1915
    %v1953 = vunpack.c.l.b16 %v1916
    %v1954 = vunpack.c.l.b16 %v1917
    %v1955 = vpack.c.b16 %v1940, %v1939
    %v1956 = vpack.c.b16 %v1942, %v1941
    %v1957 = vpack.c.b16 %v1944, %v1943
    %v1958 = vpack.c.b16 %v1946, %v1945
    %v1959 = vpack.c.b16 %v1948, %v1947
    %v1960 = vpack.c.b16 %v1950, %v1949
    %v1961 = vpack.c.b16 %v1952, %v1951
    %v1962 = vpack.c.b16 %v1954, %v1953
    %1971 = vmatpush.bf16.msra.mxu0 %v1962
    %1972 = vmatpush.bf16.msra.mxu0 %v1961
    %1973 = vmatpush.bf16.msra.mxu0 %v1960
    %1974 = vmatpush.bf16.msra.mxu0 %v1959
    %1975 = vmatpush.bf16.msra.mxu0 %v1958
    %1976 = vmatpush.bf16.msra.mxu0 %v1957
    %1977 = vmatpush.bf16.msra.mxu0 %v1956
    %1978 = vmatpush.bf16.msra.mxu0 %v1955
    %1979 = vmatmul.bf16.gmra.mxu0 %v1900
    %v1980 = vpop.f32.mrf.mxu0
    %v1981 = vadd.f32 %v1921, %v1980
    %v1982 = vpop.f32.mrf.mxu0
    %1983 = vdwg.mxu0
    %vm1984 = vcmp.ge.f32.partialorder %v1981, 0.0
    %v1985 = vmul.f32 %v1981, 0.2
    %v1986 = vsel %vm1984, %v1981, %v1985
    %v1987 = vpack.c.bf16 %v1986, %v1986
    %s1988 = scalar_lea.vmem [#allocation7], 1408
    %v1989 = vld [vmem:[%s1988] sm:$0xf]
    %v1990 = vld [vmem:[%s1988 + $0x4] sm:$0xf]
    %v1991 = vld [vmem:[%s1988 + $0x8] sm:$0xf]
    %v1992 = vld [vmem:[%s1988 + $0xc] sm:$0xf]
    %v1993 = vld [vmem:[%s1988 + $0x10] sm:$0xf]
    %v1994 = vld [vmem:[%s1988 + $0x14] sm:$0xf]
    %v1995 = vld [vmem:[%s1988 + $0x18] sm:$0xf]
    %v1996 = vld [vmem:[%s1988 + $0x1c] sm:$0xf]
    %v1997 = vld [vmem:[%s1988 + $0x20] sm:$0xf]
    %v1998 = vld [vmem:[%s1988 + $0x24] sm:$0xf]
    %v1999 = vld [vmem:[%s1988 + $0x28] sm:$0xf]
    %v2000 = vld [vmem:[%s1988 + $0x2c] sm:$0xf]
    %v2001 = vld [vmem:[%s1988 + $0x30] sm:$0xf]
    %v2002 = vld [vmem:[%s1988 + $0x34] sm:$0xf]
    %v2003 = vld [vmem:[%s1988 + $0x38] sm:$0xf]
    %v2004 = vld [vmem:[%s1988 + $0x3c] sm:$0xf]
    %s2005 = scalar_lea.vmem [#allocation8], 22
    %v2006 = vld [vmem:[%s2005] sm:$0x1]
    %v2008 = vperm.slane %v2006, 0
    %v2026 = vunpack.c.l.b16 %v1989
    %v2027 = vunpack.c.l.b16 %v1990
    %v2028 = vunpack.c.l.b16 %v1991
    %v2029 = vunpack.c.l.b16 %v1992
    %v2030 = vunpack.c.l.b16 %v1993
    %v2031 = vunpack.c.l.b16 %v1994
    %v2032 = vunpack.c.l.b16 %v1995
    %v2033 = vunpack.c.l.b16 %v1996
    %v2034 = vunpack.c.l.b16 %v1997
    %v2035 = vunpack.c.l.b16 %v1998
    %v2036 = vunpack.c.l.b16 %v1999
    %v2037 = vunpack.c.l.b16 %v2000
    %v2038 = vunpack.c.l.b16 %v2001
    %v2039 = vunpack.c.l.b16 %v2002
    %v2040 = vunpack.c.l.b16 %v2003
    %v2041 = vunpack.c.l.b16 %v2004
    %v2042 = vpack.c.b16 %v2027, %v2026
    %v2043 = vpack.c.b16 %v2029, %v2028
    %v2044 = vpack.c.b16 %v2031, %v2030
    %v2045 = vpack.c.b16 %v2033, %v2032
    %v2046 = vpack.c.b16 %v2035, %v2034
    %v2047 = vpack.c.b16 %v2037, %v2036
    %v2048 = vpack.c.b16 %v2039, %v2038
    %v2049 = vpack.c.b16 %v2041, %v2040
    %2058 = vmatpush.bf16.msra.mxu0 %v2049
    %2059 = vmatpush.bf16.msra.mxu0 %v2048
    %2060 = vmatpush.bf16.msra.mxu0 %v2047
    %2061 = vmatpush.bf16.msra.mxu0 %v2046
    %2062 = vmatpush.bf16.msra.mxu0 %v2045
    %2063 = vmatpush.bf16.msra.mxu0 %v2044
    %2064 = vmatpush.bf16.msra.mxu0 %v2043
    %2065 = vmatpush.bf16.msra.mxu0 %v2042
    %2066 = vmatmul.bf16.gmra.mxu0 %v1987
    %v2067 = vpop.f32.mrf.mxu0
    %v2068 = vadd.f32 %v2008, %v2067
    %v2069 = vpop.f32.mrf.mxu0
    %2070 = vdwg.mxu0
    %v2071 = vadd.f32 %v1899, %v2068
    %v2072 = vpack.c.bf16 %v2071, %v2071
    %s2073 = scalar_lea.vmem [#allocation7], 1472
    %v2074 = vld [vmem:[%s2073] sm:$0xf]
    %v2075 = vld [vmem:[%s2073 + $0x4] sm:$0xf]
    %v2076 = vld [vmem:[%s2073 + $0x8] sm:$0xf]
    %v2077 = vld [vmem:[%s2073 + $0xc] sm:$0xf]
    %v2078 = vld [vmem:[%s2073 + $0x10] sm:$0xf]
    %v2079 = vld [vmem:[%s2073 + $0x14] sm:$0xf]
    %v2080 = vld [vmem:[%s2073 + $0x18] sm:$0xf]
    %v2081 = vld [vmem:[%s2073 + $0x1c] sm:$0xf]
    %v2082 = vld [vmem:[%s2073 + $0x20] sm:$0xf]
    %v2083 = vld [vmem:[%s2073 + $0x24] sm:$0xf]
    %v2084 = vld [vmem:[%s2073 + $0x28] sm:$0xf]
    %v2085 = vld [vmem:[%s2073 + $0x2c] sm:$0xf]
    %v2086 = vld [vmem:[%s2073 + $0x30] sm:$0xf]
    %v2087 = vld [vmem:[%s2073 + $0x34] sm:$0xf]
    %v2088 = vld [vmem:[%s2073 + $0x38] sm:$0xf]
    %v2089 = vld [vmem:[%s2073 + $0x3c] sm:$0xf]
    %s2090 = scalar_lea.vmem [#allocation8], 23
    %v2091 = vld [vmem:[%s2090] sm:$0x1]
    %v2093 = vperm.slane %v2091, 0
    %v2111 = vunpack.c.l.b16 %v2074
    %v2112 = vunpack.c.l.b16 %v2075
    %v2113 = vunpack.c.l.b16 %v2076
    %v2114 = vunpack.c.l.b16 %v2077
    %v2115 = vunpack.c.l.b16 %v2078
    %v2116 = vunpack.c.l.b16 %v2079
    %v2117 = vunpack.c.l.b16 %v2080
    %v2118 = vunpack.c.l.b16 %v2081
    %v2119 = vunpack.c.l.b16 %v2082
    %v2120 = vunpack.c.l.b16 %v2083
    %v2121 = vunpack.c.l.b16 %v2084
    %v2122 = vunpack.c.l.b16 %v2085
    %v2123 = vunpack.c.l.b16 %v2086
    %v2124 = vunpack.c.l.b16 %v2087
    %v2125 = vunpack.c.l.b16 %v2088
    %v2126 = vunpack.c.l.b16 %v2089
    %v2127 = vpack.c.b16 %v2112, %v2111
    %v2128 = vpack.c.b16 %v2114, %v2113
    %v2129 = vpack.c.b16 %v2116, %v2115
    %v2130 = vpack.c.b16 %v2118, %v2117
    %v2131 = vpack.c.b16 %v2120, %v2119
    %v2132 = vpack.c.b16 %v2122, %v2121
    %v2133 = vpack.c.b16 %v2124, %v2123
    %v2134 = vpack.c.b16 %v2126, %v2125
    %2143 = vmatpush.bf16.msra.mxu0 %v2134
    %2144 = vmatpush.bf16.msra.mxu0 %v2133
    %2145 = vmatpush.bf16.msra.mxu0 %v2132
    %2146 = vmatpush.bf16.msra.mxu0 %v2131
    %2147 = vmatpush.bf16.msra.mxu0 %v2130
    %2148 = vmatpush.bf16.msra.mxu0 %v2129
    %2149 = vmatpush.bf16.msra.mxu0 %v2128
    %2150 = vmatpush.bf16.msra.mxu0 %v2127
    %2151 = vmatmul.bf16.gmra.mxu0 %v2072
    %v2152 = vpop.f32.mrf.mxu0
    %v2153 = vadd.f32 %v2093, %v2152
    %v2154 = vpop.f32.mrf.mxu0
    %2155 = vdwg.mxu0
    %v2156 = vadd.f32 %v2153, %v1116
    %2157 = vst [vmem:[#allocation10] sm:$0xff] %v2156
    // Predicated region
    $region34: #{tpu_custom_call.1} parent=1 // pred_check
      _
    $region35: #{tpu_custom_call.1} parent=1 // pred_check_branch
      %2159 = sbr.rel (0) target = $region37
    $region36: #{tpu_custom_call.1} parent=1 // pred_region
      %2161 = vsyncadd [#allocation4], 0
      %s2163 = sshll.u32 [#allocation10], 4
      %s2164 = int_to_ptr.vmem [resolvable:$true] %s2163
      %s2165 = sshll.u32 %s4, 4
      %s2166 = int_to_ptr.hbm [resolvable:$true] %s2165
      %2168 = dma.vmem_to_hbm [thread:$0]  %s2164, 128, %s2166, [#allocation4]
    $region37: #{tpu_custom_call.1} parent=1 // pred_fallthru
      _
    // Predicated region
    $region38: #{tpu_custom_call.1} parent=1 // pred_check
      _
    $region39: #{tpu_custom_call.1} parent=1 // pred_check_branch
      %2170 = sbr.rel (0) target = $region41
    $region40: #{tpu_custom_call.1} parent=1 // pred_region
      %2172 = dma.done [#allocation4], 128
    $region41: #{tpu_custom_call.1} parent=1 // pred_fallthru
      _
    %2173 = vsyncpa [#allocation3], 1
    %2174 = vsyncpa [#allocation6], 1
    %2175 = vsyncpa [#allocation9], 1
    %2176 = vsyncpa [#allocation4], 1

// kernel: tpu_custom_call.1
$region0: #{tpu_custom_call.1}
  #allocation0 [shape = 'u32[]', space=smem, size = 0x4, offset = 0x4, fixed_abs, tag = 'smem constant byte address 0x4 - core index']
  #allocation1 [shape = 'u32[72,128]{1,0:T(1,128)}', space=vmem, size = 0x9000, scoped, tag = 'internal scratch']
  %s0 = inlined_call_operand.hbm [shape: f32[8,128], index: 0, kind: input, shape index: {}]
  %s1 = inlined_call_operand.hbm [shape: f32[8,128], index: 1, kind: input, shape index: {}]
  %s2 = inlined_call_operand.hbm [shape: bf16[24,128,128], index: 2, kind: input, shape index: {}]
  %s3 = inlined_call_operand.hbm [shape: f32[24,1,128], index: 3, kind: input, shape index: {}]
  %s4 = inlined_call_operand.hbm [shape: f32[8,128], index: 4, kind: output, shape index: {}]
  %s5 = sld [smem:[#allocation0]]
  $region42: #{tpu_custom_call.1} parent=0
    _
  %s7 = ssub.s32 1, %s5
  %s8 = scalar_select 0, %s7, %s5
  $region1: #{tpu_custom_call.1} parent=0
    #allocation2 [shape = 'u8[4096]{0}', space=vmem, size = 0x1000, scoped, tag = 'input window, operand 0, single buffered']
    #allocation3 [shape = 's32[1]{0}', space=sflag, size = 0x4, scoped, tag = 'scoped memory for tpu_custom_call.1']
    #allocation4 [shape = 's32[1]{0}', space=sflag, size = 0x4, scoped, tag = 'scoped memory for tpu_custom_call.1']
    #allocation5 [shape = 'u8[4096]{0}', space=vmem, size = 0x1000, scoped, tag = 'input window, operand 1, single buffered']
    #allocation6 [shape = 's32[1]{0}', space=sflag, size = 0x4, scoped, tag = 'scoped memory for tpu_custom_call.1']
    #allocation7 [shape = 'u8[786432]{0}', space=vmem, size = 0xc0000, scoped, tag = 'input window, operand 2, single buffered']
    #allocation8 [shape = 'u8[12288]{0}', space=vmem, size = 0x3000, scoped, tag = 'input window, operand 3, single buffered']
    #allocation9 [shape = 's32[1]{0}', space=sflag, size = 0x4, scoped, tag = 'scoped memory for tpu_custom_call.1']
    #allocation10 [shape = 'u8[4096]{0}', space=vmem, size = 0x1000, scoped, tag = 'output window, operand 0, single buffered']
    %9 = vsyncpa [#allocation3], 0
    %10 = vsyncpa [#allocation6], 0
    %11 = vsyncpa [#allocation9], 0
    %12 = vsyncpa [#allocation4], 0
    // Predicated region
    $region2: #{tpu_custom_call.1} parent=1 // pred_check
      _
    $region3: #{tpu_custom_call.1} parent=1 // pred_check_branch
      %14 = sbr.rel (0) target = $region5
    $region4: #{tpu_custom_call.1} parent=1 // pred_region
      %16 = vsyncadd [#allocation3], 0
      %s18 = sshll.u32 %s0, 4
      %s19 = int_to_ptr.hbm [resolvable:$true] %s18
      %s20 = sshll.u32 [#allocation2], 4
      %s21 = int_to_ptr.vmem [resolvable:$true] %s20
      %23 = dma.hbm_to_vmem [thread:$0]  %s19, 128, %s21, [#allocation3]
    $region5: #{tpu_custom_call.1} parent=1 // pred_fallthru
      _
    // Predicated region
    $region6: #{tpu_custom_call.1} parent=1 // pred_check
      _
    $region7: #{tpu_custom_call.1} parent=1 // pred_check_branch
      %25 = sbr.rel (0) target = $region9
    $region8: #{tpu_custom_call.1} parent=1 // pred_region
      %27 = vsyncadd [#allocation6], 0
      %s29 = sshll.u32 %s1, 4
      %s30 = int_to_ptr.hbm [resolvable:$true] %s29
      %s31 = sshll.u32 [#allocation5], 4
      %s32 = int_to_ptr.vmem [resolvable:$true] %s31
      %34 = dma.hbm_to_vmem [thread:$0]  %s30, 128, %s32, [#allocation6]
    $region9: #{tpu_custom_call.1} parent=1 // pred_fallthru
      _
    // Predicated region
    $region10: #{tpu_custom_call.1} parent=1 // pred_check
      _
    $region11: #{tpu_custom_call.1} parent=1 // pred_check_branch
      %36 = sbr.rel (0) target = $region13
    $region12: #{tpu_custom_call.1} parent=1 // pred_region
      %38 = vsyncadd [#allocation6], 0
      %s39 = sshll.u32 %s2, 4
      %s40 = int_to_ptr.hbm [resolvable:$true] %s39
      %s41 = sshll.u32 [#allocation7], 4
      %s42 = int_to_ptr.vmem [resolvable:$true] %s41
      %47 = dma.hbm_to_vmem [thread:$0]  %s40, 24576, %s42, [#allocation6], 64, 64, 4
    $region13: #{tpu_custom_call.1} parent=1 // pred_fallthru
      _
    // Predicated region
    $region14: #{tpu_custom_call.1} parent=1 // pred_check
      _
    $region15: #{tpu_custom_call.1} parent=1 // pred_check_branch
      %49 = sbr.rel (0) target = $region17
    $region16: #{tpu_custom_call.1} parent=1 // pred_region
      %51 = vsyncadd [#allocation9], 0
      %s52 = sshll.u32 %s3, 4
      %s53 = int_to_ptr.hbm [resolvable:$true] %s52
      %s54 = sshll.u32 [#allocation8], 4
      %s55 = int_to_ptr.vmem [resolvable:$true] %s54
      %60 = dma.hbm_to_vmem [thread:$0]  %s53, 384, %s55, [#allocation9], 16, 16, 1
    $region17: #{tpu_custom_call.1} parent=1 // pred_fallthru
      _
    // Predicated region
    $region18: #{tpu_custom_call.1} parent=1 // pred_check
      _
    $region19: #{tpu_custom_call.1} parent=1 // pred_check_branch
      %62 = sbr.rel (0) target = $region21
    $region20: #{tpu_custom_call.1} parent=1 // pred_region
      %64 = dma.done [#allocation3], 128
    $region21: #{tpu_custom_call.1} parent=1 // pred_fallthru
      _
    // Predicated region
    $region22: #{tpu_custom_call.1} parent=1 // pred_check
      _
    $region23: #{tpu_custom_call.1} parent=1 // pred_check_branch
      %66 = sbr.rel (0) target = $region25
    $region24: #{tpu_custom_call.1} parent=1 // pred_region
      %68 = dma.done [#allocation6], 128
    $region25: #{tpu_custom_call.1} parent=1 // pred_fallthru
      _
    // Predicated region
    $region26: #{tpu_custom_call.1} parent=1 // pred_check
      _
    $region27: #{tpu_custom_call.1} parent=1 // pred_check_branch
      %70 = sbr.rel (0) target = $region29
    $region28: #{tpu_custom_call.1} parent=1 // pred_region
      %72 = dma.done [#allocation6], 24576
    $region29: #{tpu_custom_call.1} parent=1 // pred_fallthru
      _
    // Predicated region
    $region30: #{tpu_custom_call.1} parent=1 // pred_check
      _
    $region31: #{tpu_custom_call.1} parent=1 // pred_check_branch
      %74 = sbr.rel (0) target = $region33
    $region32: #{tpu_custom_call.1} parent=1 // pred_region
      %76 = dma.done [#allocation9], 384
    $region33: #{tpu_custom_call.1} parent=1 // pred_fallthru
      _
    %v77 = vld [vmem:[#allocation2] sm:$0xff]
    %v78 = vpack.c.bf16 %v77, %v77
    %v79 = vld [vmem:[#allocation7] sm:$0xf]
    %v80 = vld [vmem:[#allocation7 + $0x4] sm:$0xf]
    %v81 = vld [vmem:[#allocation7 + $0x8] sm:$0xf]
    %v82 = vld [vmem:[#allocation7 + $0xc] sm:$0xf]
    %v83 = vld [vmem:[#allocation7 + $0x10] sm:$0xf]
    %v84 = vld [vmem:[#allocation7 + $0x14] sm:$0xf]
    %v85 = vld [vmem:[#allocation7 + $0x18] sm:$0xf]
    %v86 = vld [vmem:[#allocation7 + $0x1c] sm:$0xf]
    %v87 = vld [vmem:[#allocation7 + $0x20] sm:$0xf]
    %v88 = vld [vmem:[#allocation7 + $0x24] sm:$0xf]
    %v89 = vld [vmem:[#allocation7 + $0x28] sm:$0xf]
    %v90 = vld [vmem:[#allocation7 + $0x2c] sm:$0xf]
    %v91 = vld [vmem:[#allocation7 + $0x30] sm:$0xf]
    %v92 = vld [vmem:[#allocation7 + $0x34] sm:$0xf]
    %v93 = vld [vmem:[#allocation7 + $0x38] sm:$0xf]
    %v94 = vld [vmem:[#allocation7 + $0x3c] sm:$0xf]
    %v95 = vld [vmem:[#allocation8] sm:$0x1]
    %v97 = vperm.slane %v95, 0
    %v115 = vunpack.c.l.b16 %v79
    %v116 = vunpack.c.l.b16 %v80
    %v117 = vunpack.c.l.b16 %v81
    %v118 = vunpack.c.l.b16 %v82
    %v119 = vunpack.c.l.b16 %v83
    %v120 = vunpack.c.l.b16 %v84
    %v121 = vunpack.c.l.b16 %v85
    %v122 = vunpack.c.l.b16 %v86
    %v123 = vunpack.c.l.b16 %v87
    %v124 = vunpack.c.l.b16 %v88
    %v125 = vunpack.c.l.b16 %v89
    %v126 = vunpack.c.l.b16 %v90
    %v127 = vunpack.c.l.b16 %v91
    %v128 = vunpack.c.l.b16 %v92
    %v129 = vunpack.c.l.b16 %v93
    %v130 = vunpack.c.l.b16 %v94
    %v131 = vpack.c.b16 %v116, %v115
    %v132 = vpack.c.b16 %v118, %v117
    %v133 = vpack.c.b16 %v120, %v119
    %v134 = vpack.c.b16 %v122, %v121
    %v135 = vpack.c.b16 %v124, %v123
    %v136 = vpack.c.b16 %v126, %v125
    %v137 = vpack.c.b16 %v128, %v127
    %v138 = vpack.c.b16 %v130, %v129
    %147 = vmatpush.bf16.msra.mxu0 %v138
    %148 = vmatpush.bf16.msra.mxu0 %v137
    %149 = vmatpush.bf16.msra.mxu0 %v136
    %150 = vmatpush.bf16.msra.mxu0 %v135
    %151 = vmatpush.bf16.msra.mxu0 %v134
    %152 = vmatpush.bf16.msra.mxu0 %v133
    %153 = vmatpush.bf16.msra.mxu0 %v132
    %154 = vmatpush.bf16.msra.mxu0 %v131
    %155 = vmatmul.bf16.gmra.mxu0 %v78
    %v156 = vpop.f32.mrf.mxu0
    %v157 = vadd.f32 %v97, %v156
    %v158 = vpop.f32.mrf.mxu0
    %159 = vdwg.mxu0
    %vm160 = vcmp.ge.f32.partialorder %v157, 0.0
    %v161 = vmul.f32 %v157, 0.2
    %v162 = vsel %vm160, %v157, %v161
    %v163 = vpack.c.bf16 %v162, %v162
    %s164 = scalar_lea.vmem [#allocation7], 64
    %v165 = vld [vmem:[%s164] sm:$0xf]
    %v166 = vld [vmem:[%s164 + $0x4] sm:$0xf]
    %v167 = vld [vmem:[%s164 + $0x8] sm:$0xf]
    %v168 = vld [vmem:[%s164 + $0xc] sm:$0xf]
    %v169 = vld [vmem:[%s164 + $0x10] sm:$0xf]
    %v170 = vld [vmem:[%s164 + $0x14] sm:$0xf]
    %v171 = vld [vmem:[%s164 + $0x18] sm:$0xf]
    %v172 = vld [vmem:[%s164 + $0x1c] sm:$0xf]
    %v173 = vld [vmem:[%s164 + $0x20] sm:$0xf]
    %v174 = vld [vmem:[%s164 + $0x24] sm:$0xf]
    %v175 = vld [vmem:[%s164 + $0x28] sm:$0xf]
    %v176 = vld [vmem:[%s164 + $0x2c] sm:$0xf]
    %v177 = vld [vmem:[%s164 + $0x30] sm:$0xf]
    %v178 = vld [vmem:[%s164 + $0x34] sm:$0xf]
    %v179 = vld [vmem:[%s164 + $0x38] sm:$0xf]
    %v180 = vld [vmem:[%s164 + $0x3c] sm:$0xf]
    %s181 = scalar_lea.vmem [#allocation8], 1
    %v182 = vld [vmem:[%s181] sm:$0x1]
    %v184 = vperm.slane %v182, 0
    %v202 = vunpack.c.l.b16 %v165
    %v203 = vunpack.c.l.b16 %v166
    %v204 = vunpack.c.l.b16 %v167
    %v205 = vunpack.c.l.b16 %v168
    %v206 = vunpack.c.l.b16 %v169
    %v207 = vunpack.c.l.b16 %v170
    %v208 = vunpack.c.l.b16 %v171
    %v209 = vunpack.c.l.b16 %v172
    %v210 = vunpack.c.l.b16 %v173
    %v211 = vunpack.c.l.b16 %v174
    %v212 = vunpack.c.l.b16 %v175
    %v213 = vunpack.c.l.b16 %v176
    %v214 = vunpack.c.l.b16 %v177
    %v215 = vunpack.c.l.b16 %v178
    %v216 = vunpack.c.l.b16 %v179
    %v217 = vunpack.c.l.b16 %v180
    %v218 = vpack.c.b16 %v203, %v202
    %v219 = vpack.c.b16 %v205, %v204
    %v220 = vpack.c.b16 %v207, %v206
    %v221 = vpack.c.b16 %v209, %v208
    %v222 = vpack.c.b16 %v211, %v210
    %v223 = vpack.c.b16 %v213, %v212
    %v224 = vpack.c.b16 %v215, %v214
    %v225 = vpack.c.b16 %v217, %v216
    %234 = vmatpush.bf16.msra.mxu0 %v225
    %235 = vmatpush.bf16.msra.mxu0 %v224
    %236 = vmatpush.bf16.msra.mxu0 %v223
    %237 = vmatpush.bf16.msra.mxu0 %v222
    %238 = vmatpush.bf16.msra.mxu0 %v221
    %239 = vmatpush.bf16.msra.mxu0 %v220
    %240 = vmatpush.bf16.msra.mxu0 %v219
    %241 = vmatpush.bf16.msra.mxu0 %v218
    %242 = vmatmul.bf16.gmra.mxu0 %v163
    %v243 = vpop.f32.mrf.mxu0
    %v244 = vadd.f32 %v184, %v243
    %v245 = vpop.f32.mrf.mxu0
    %246 = vdwg.mxu0
    %vm247 = vcmp.ge.f32.partialorder %v244, 0.0
    %v248 = vmul.f32 %v244, 0.2
    %v249 = vsel %vm247, %v244, %v248
    %v250 = vpack.c.bf16 %v249, %v249
    %s251 = scalar_lea.vmem [#allocation7], 128
    %v252 = vld [vmem:[%s251] sm:$0xf]
    %v253 = vld [vmem:[%s251 + $0x4] sm:$0xf]
    %v254 = vld [vmem:[%s251 + $0x8] sm:$0xf]
    %v255 = vld [vmem:[%s251 + $0xc] sm:$0xf]
    %v256 = vld [vmem:[%s251 + $0x10] sm:$0xf]
    %v257 = vld [vmem:[%s251 + $0x14] sm:$0xf]
    %v258 = vld [vmem:[%s251 + $0x18] sm:$0xf]
    %v259 = vld [vmem:[%s251 + $0x1c] sm:$0xf]
    %v260 = vld [vmem:[%s251 + $0x20] sm:$0xf]
    %v261 = vld [vmem:[%s251 + $0x24] sm:$0xf]
    %v262 = vld [vmem:[%s251 + $0x28] sm:$0xf]
    %v263 = vld [vmem:[%s251 + $0x2c] sm:$0xf]
    %v264 = vld [vmem:[%s251 + $0x30] sm:$0xf]
    %v265 = vld [vmem:[%s251 + $0x34] sm:$0xf]
    %v266 = vld [vmem:[%s251 + $0x38] sm:$0xf]
    %v267 = vld [vmem:[%s251 + $0x3c] sm:$0xf]
    %s268 = scalar_lea.vmem [#allocation8], 2
    %v269 = vld [vmem:[%s268] sm:$0x1]
    %v271 = vperm.slane %v269, 0
    %v289 = vunpack.c.l.b16 %v252
    %v290 = vunpack.c.l.b16 %v253
    %v291 = vunpack.c.l.b16 %v254
    %v292 = vunpack.c.l.b16 %v255
    %v293 = vunpack.c.l.b16 %v256
    %v294 = vunpack.c.l.b16 %v257
    %v295 = vunpack.c.l.b16 %v258
    %v296 = vunpack.c.l.b16 %v259
    %v297 = vunpack.c.l.b16 %v260
    %v298 = vunpack.c.l.b16 %v261
    %v299 = vunpack.c.l.b16 %v262
    %v300 = vunpack.c.l.b16 %v263
    %v301 = vunpack.c.l.b16 %v264
    %v302 = vunpack.c.l.b16 %v265
    %v303 = vunpack.c.l.b16 %v266
    %v304 = vunpack.c.l.b16 %v267
    %v305 = vpack.c.b16 %v290, %v289
    %v306 = vpack.c.b16 %v292, %v291
    %v307 = vpack.c.b16 %v294, %v293
    %v308 = vpack.c.b16 %v296, %v295
    %v309 = vpack.c.b16 %v298, %v297
    %v310 = vpack.c.b16 %v300, %v299
    %v311 = vpack.c.b16 %v302, %v301
    %v312 = vpack.c.b16 %v304, %v303
    %321 = vmatpush.bf16.msra.mxu0 %v312
    %322 = vmatpush.bf16.msra.mxu0 %v311
    %323 = vmatpush.bf16.msra.mxu0 %v310
    %324 = vmatpush.bf16.msra.mxu0 %v309
    %325 = vmatpush.bf16.msra.mxu0 %v308
    %326 = vmatpush.bf16.msra.mxu0 %v307
    %327 = vmatpush.bf16.msra.mxu0 %v306
    %328 = vmatpush.bf16.msra.mxu0 %v305
    %329 = vmatmul.bf16.gmra.mxu0 %v250
    %v330 = vpop.f32.mrf.mxu0
    %v331 = vadd.f32 %v271, %v330
    %v332 = vpop.f32.mrf.mxu0
    %333 = vdwg.mxu0
    %vm334 = vcmp.ge.f32.partialorder %v331, 0.0
    %v335 = vmul.f32 %v331, 0.2
    %v336 = vsel %vm334, %v331, %v335
    %v337 = vpack.c.bf16 %v336, %v336
    %s338 = scalar_lea.vmem [#allocation7], 192
    %v339 = vld [vmem:[%s338] sm:$0xf]
    %v340 = vld [vmem:[%s338 + $0x4] sm:$0xf]
    %v341 = vld [vmem:[%s338 + $0x8] sm:$0xf]
    %v342 = vld [vmem:[%s338 + $0xc] sm:$0xf]
    %v343 = vld [vmem:[%s338 + $0x10] sm:$0xf]
    %v344 = vld [vmem:[%s338 + $0x14] sm:$0xf]
    %v345 = vld [vmem:[%s338 + $0x18] sm:$0xf]
    %v346 = vld [vmem:[%s338 + $0x1c] sm:$0xf]
    %v347 = vld [vmem:[%s338 + $0x20] sm:$0xf]
    %v348 = vld [vmem:[%s338 + $0x24] sm:$0xf]
    %v349 = vld [vmem:[%s338 + $0x28] sm:$0xf]
    %v350 = vld [vmem:[%s338 + $0x2c] sm:$0xf]
    %v351 = vld [vmem:[%s338 + $0x30] sm:$0xf]
    %v352 = vld [vmem:[%s338 + $0x34] sm:$0xf]
    %v353 = vld [vmem:[%s338 + $0x38] sm:$0xf]
    %v354 = vld [vmem:[%s338 + $0x3c] sm:$0xf]
    %s355 = scalar_lea.vmem [#allocation8], 3
    %v356 = vld [vmem:[%s355] sm:$0x1]
    %v358 = vperm.slane %v356, 0
    %v376 = vunpack.c.l.b16 %v339
    %v377 = vunpack.c.l.b16 %v340
    %v378 = vunpack.c.l.b16 %v341
    %v379 = vunpack.c.l.b16 %v342
    %v380 = vunpack.c.l.b16 %v343
    %v381 = vunpack.c.l.b16 %v344
    %v382 = vunpack.c.l.b16 %v345
    %v383 = vunpack.c.l.b16 %v346
    %v384 = vunpack.c.l.b16 %v347
    %v385 = vunpack.c.l.b16 %v348
    %v386 = vunpack.c.l.b16 %v349
    %v387 = vunpack.c.l.b16 %v350
    %v388 = vunpack.c.l.b16 %v351
    %v389 = vunpack.c.l.b16 %v352
    %v390 = vunpack.c.l.b16 %v353
    %v391 = vunpack.c.l.b16 %v354
    %v392 = vpack.c.b16 %v377, %v376
    %v393 = vpack.c.b16 %v379, %v378
    %v394 = vpack.c.b16 %v381, %v380
    %v395 = vpack.c.b16 %v383, %v382
    %v396 = vpack.c.b16 %v385, %v384
    %v397 = vpack.c.b16 %v387, %v386
    %v398 = vpack.c.b16 %v389, %v388
    %v399 = vpack.c.b16 %v391, %v390
    %408 = vmatpush.bf16.msra.mxu0 %v399
    %409 = vmatpush.bf16.msra.mxu0 %v398
    %410 = vmatpush.bf16.msra.mxu0 %v397
    %411 = vmatpush.bf16.msra.mxu0 %v396
    %412 = vmatpush.bf16.msra.mxu0 %v395
    %413 = vmatpush.bf16.msra.mxu0 %v394
    %414 = vmatpush.bf16.msra.mxu0 %v393
    %415 = vmatpush.bf16.msra.mxu0 %v392
    %416 = vmatmul.bf16.gmra.mxu0 %v337
    %v417 = vpop.f32.mrf.mxu0
    %v418 = vadd.f32 %v358, %v417
    %v419 = vpop.f32.mrf.mxu0
    %420 = vdwg.mxu0
    %v421 = vadd.f32 %v249, %v418
    %v422 = vpack.c.bf16 %v421, %v421
    %s423 = scalar_lea.vmem [#allocation7], 256
    %v424 = vld [vmem:[%s423] sm:$0xf]
    %v425 = vld [vmem:[%s423 + $0x4] sm:$0xf]
    %v426 = vld [vmem:[%s423 + $0x8] sm:$0xf]
    %v427 = vld [vmem:[%s423 + $0xc] sm:$0xf]
    %v428 = vld [vmem:[%s423 + $0x10] sm:$0xf]
    %v429 = vld [vmem:[%s423 + $0x14] sm:$0xf]
    %v430 = vld [vmem:[%s423 + $0x18] sm:$0xf]
    %v431 = vld [vmem:[%s423 + $0x1c] sm:$0xf]
    %v432 = vld [vmem:[%s423 + $0x20] sm:$0xf]
    %v433 = vld [vmem:[%s423 + $0x24] sm:$0xf]
    %v434 = vld [vmem:[%s423 + $0x28] sm:$0xf]
    %v435 = vld [vmem:[%s423 + $0x2c] sm:$0xf]
    %v436 = vld [vmem:[%s423 + $0x30] sm:$0xf]
    %v437 = vld [vmem:[%s423 + $0x34] sm:$0xf]
    %v438 = vld [vmem:[%s423 + $0x38] sm:$0xf]
    %v439 = vld [vmem:[%s423 + $0x3c] sm:$0xf]
    %s440 = scalar_lea.vmem [#allocation8], 4
    %v441 = vld [vmem:[%s440] sm:$0x1]
    %v443 = vperm.slane %v441, 0
    %v461 = vunpack.c.l.b16 %v424
    %v462 = vunpack.c.l.b16 %v425
    %v463 = vunpack.c.l.b16 %v426
    %v464 = vunpack.c.l.b16 %v427
    %v465 = vunpack.c.l.b16 %v428
    %v466 = vunpack.c.l.b16 %v429
    %v467 = vunpack.c.l.b16 %v430
    %v468 = vunpack.c.l.b16 %v431
    %v469 = vunpack.c.l.b16 %v432
    %v470 = vunpack.c.l.b16 %v433
    %v471 = vunpack.c.l.b16 %v434
    %v472 = vunpack.c.l.b16 %v435
    %v473 = vunpack.c.l.b16 %v436
    %v474 = vunpack.c.l.b16 %v437
    %v475 = vunpack.c.l.b16 %v438
    %v476 = vunpack.c.l.b16 %v439
    %v477 = vpack.c.b16 %v462, %v461
    %v478 = vpack.c.b16 %v464, %v463
    %v479 = vpack.c.b16 %v466, %v465
    %v480 = vpack.c.b16 %v468, %v467
    %v481 = vpack.c.b16 %v470, %v469
    %v482 = vpack.c.b16 %v472, %v471
    %v483 = vpack.c.b16 %v474, %v473
    %v484 = vpack.c.b16 %v476, %v475
    %493 = vmatpush.bf16.msra.mxu0 %v484
    %494 = vmatpush.bf16.msra.mxu0 %v483
    %495 = vmatpush.bf16.msra.mxu0 %v482
    %496 = vmatpush.bf16.msra.mxu0 %v481
    %497 = vmatpush.bf16.msra.mxu0 %v480
    %498 = vmatpush.bf16.msra.mxu0 %v479
    %499 = vmatpush.bf16.msra.mxu0 %v478
    %500 = vmatpush.bf16.msra.mxu0 %v477
    %501 = vmatmul.bf16.gmra.mxu0 %v422
    %v502 = vpop.f32.mrf.mxu0
    %v503 = vadd.f32 %v443, %v502
    %v504 = vpop.f32.mrf.mxu0
    %505 = vdwg.mxu0
    %vm506 = vcmp.ge.f32.partialorder %v503, 0.0
    %v507 = vmul.f32 %v503, 0.2
    %v508 = vsel %vm506, %v503, %v507
    %v509 = vpack.c.bf16 %v508, %v508
    %s510 = scalar_lea.vmem [#allocation7], 320
    %v511 = vld [vmem:[%s510] sm:$0xf]
    %v512 = vld [vmem:[%s510 + $0x4] sm:$0xf]
    %v513 = vld [vmem:[%s510 + $0x8] sm:$0xf]
    %v514 = vld [vmem:[%s510 + $0xc] sm:$0xf]
    %v515 = vld [vmem:[%s510 + $0x10] sm:$0xf]
    %v516 = vld [vmem:[%s510 + $0x14] sm:$0xf]
    %v517 = vld [vmem:[%s510 + $0x18] sm:$0xf]
    %v518 = vld [vmem:[%s510 + $0x1c] sm:$0xf]
    %v519 = vld [vmem:[%s510 + $0x20] sm:$0xf]
    %v520 = vld [vmem:[%s510 + $0x24] sm:$0xf]
    %v521 = vld [vmem:[%s510 + $0x28] sm:$0xf]
    %v522 = vld [vmem:[%s510 + $0x2c] sm:$0xf]
    %v523 = vld [vmem:[%s510 + $0x30] sm:$0xf]
    %v524 = vld [vmem:[%s510 + $0x34] sm:$0xf]
    %v525 = vld [vmem:[%s510 + $0x38] sm:$0xf]
    %v526 = vld [vmem:[%s510 + $0x3c] sm:$0xf]
    %s527 = scalar_lea.vmem [#allocation8], 5
    %v528 = vld [vmem:[%s527] sm:$0x1]
    %v530 = vperm.slane %v528, 0
    %v548 = vunpack.c.l.b16 %v511
    %v549 = vunpack.c.l.b16 %v512
    %v550 = vunpack.c.l.b16 %v513
    %v551 = vunpack.c.l.b16 %v514
    %v552 = vunpack.c.l.b16 %v515
    %v553 = vunpack.c.l.b16 %v516
    %v554 = vunpack.c.l.b16 %v517
    %v555 = vunpack.c.l.b16 %v518
    %v556 = vunpack.c.l.b16 %v519
    %v557 = vunpack.c.l.b16 %v520
    %v558 = vunpack.c.l.b16 %v521
    %v559 = vunpack.c.l.b16 %v522
    %v560 = vunpack.c.l.b16 %v523
    %v561 = vunpack.c.l.b16 %v524
    %v562 = vunpack.c.l.b16 %v525
    %v563 = vunpack.c.l.b16 %v526
    %v564 = vpack.c.b16 %v549, %v548
    %v565 = vpack.c.b16 %v551, %v550
    %v566 = vpack.c.b16 %v553, %v552
    %v567 = vpack.c.b16 %v555, %v554
    %v568 = vpack.c.b16 %v557, %v556
    %v569 = vpack.c.b16 %v559, %v558
    %v570 = vpack.c.b16 %v561, %v560
    %v571 = vpack.c.b16 %v563, %v562
    %580 = vmatpush.bf16.msra.mxu0 %v571
    %581 = vmatpush.bf16.msra.mxu0 %v570
    %582 = vmatpush.bf16.msra.mxu0 %v569
    %583 = vmatpush.bf16.msra.mxu0 %v568
    %584 = vmatpush.bf16.msra.mxu0 %v567
    %585 = vmatpush.bf16.msra.mxu0 %v566
    %586 = vmatpush.bf16.msra.mxu0 %v565
    %587 = vmatpush.bf16.msra.mxu0 %v564
    %588 = vmatmul.bf16.gmra.mxu0 %v509
    %v589 = vpop.f32.mrf.mxu0
    %v590 = vadd.f32 %v530, %v589
    %v591 = vpop.f32.mrf.mxu0
    %592 = vdwg.mxu0
    %v593 = vadd.f32 %v421, %v590
    %v594 = vpack.c.bf16 %v593, %v593
    %s595 = scalar_lea.vmem [#allocation7], 384
    %v596 = vld [vmem:[%s595] sm:$0xf]
    %v597 = vld [vmem:[%s595 + $0x4] sm:$0xf]
    %v598 = vld [vmem:[%s595 + $0x8] sm:$0xf]
    %v599 = vld [vmem:[%s595 + $0xc] sm:$0xf]
    %v600 = vld [vmem:[%s595 + $0x10] sm:$0xf]
    %v601 = vld [vmem:[%s595 + $0x14] sm:$0xf]
    %v602 = vld [vmem:[%s595 + $0x18] sm:$0xf]
    %v603 = vld [vmem:[%s595 + $0x1c] sm:$0xf]
    %v604 = vld [vmem:[%s595 + $0x20] sm:$0xf]
    %v605 = vld [vmem:[%s595 + $0x24] sm:$0xf]
    %v606 = vld [vmem:[%s595 + $0x28] sm:$0xf]
    %v607 = vld [vmem:[%s595 + $0x2c] sm:$0xf]
    %v608 = vld [vmem:[%s595 + $0x30] sm:$0xf]
    %v609 = vld [vmem:[%s595 + $0x34] sm:$0xf]
    %v610 = vld [vmem:[%s595 + $0x38] sm:$0xf]
    %v611 = vld [vmem:[%s595 + $0x3c] sm:$0xf]
    %s612 = scalar_lea.vmem [#allocation8], 6
    %v613 = vld [vmem:[%s612] sm:$0x1]
    %v615 = vperm.slane %v613, 0
    %v633 = vunpack.c.l.b16 %v596
    %v634 = vunpack.c.l.b16 %v597
    %v635 = vunpack.c.l.b16 %v598
    %v636 = vunpack.c.l.b16 %v599
    %v637 = vunpack.c.l.b16 %v600
    %v638 = vunpack.c.l.b16 %v601
    %v639 = vunpack.c.l.b16 %v602
    %v640 = vunpack.c.l.b16 %v603
    %v641 = vunpack.c.l.b16 %v604
    %v642 = vunpack.c.l.b16 %v605
    %v643 = vunpack.c.l.b16 %v606
    %v644 = vunpack.c.l.b16 %v607
    %v645 = vunpack.c.l.b16 %v608
    %v646 = vunpack.c.l.b16 %v609
    %v647 = vunpack.c.l.b16 %v610
    %v648 = vunpack.c.l.b16 %v611
    %v649 = vpack.c.b16 %v634, %v633
    %v650 = vpack.c.b16 %v636, %v635
    %v651 = vpack.c.b16 %v638, %v637
    %v652 = vpack.c.b16 %v640, %v639
    %v653 = vpack.c.b16 %v642, %v641
    %v654 = vpack.c.b16 %v644, %v643
    %v655 = vpack.c.b16 %v646, %v645
    %v656 = vpack.c.b16 %v648, %v647
    %665 = vmatpush.bf16.msra.mxu0 %v656
    %666 = vmatpush.bf16.msra.mxu0 %v655
    %667 = vmatpush.bf16.msra.mxu0 %v654
    %668 = vmatpush.bf16.msra.mxu0 %v653
    %669 = vmatpush.bf16.msra.mxu0 %v652
    %670 = vmatpush.bf16.msra.mxu0 %v651
    %671 = vmatpush.bf16.msra.mxu0 %v650
    %672 = vmatpush.bf16.msra.mxu0 %v649
    %673 = vmatmul.bf16.gmra.mxu0 %v594
    %v674 = vpop.f32.mrf.mxu0
    %v675 = vadd.f32 %v615, %v674
    %v676 = vpop.f32.mrf.mxu0
    %677 = vdwg.mxu0
    %vm678 = vcmp.ge.f32.partialorder %v675, 0.0
    %v679 = vmul.f32 %v675, 0.2
    %v680 = vsel %vm678, %v675, %v679
    %v681 = vpack.c.bf16 %v680, %v680
    %s682 = scalar_lea.vmem [#allocation7], 448
    %v683 = vld [vmem:[%s682] sm:$0xf]
    %v684 = vld [vmem:[%s682 + $0x4] sm:$0xf]
    %v685 = vld [vmem:[%s682 + $0x8] sm:$0xf]
    %v686 = vld [vmem:[%s682 + $0xc] sm:$0xf]
    %v687 = vld [vmem:[%s682 + $0x10] sm:$0xf]
    %v688 = vld [vmem:[%s682 + $0x14] sm:$0xf]
    %v689 = vld [vmem:[%s682 + $0x18] sm:$0xf]
    %v690 = vld [vmem:[%s682 + $0x1c] sm:$0xf]
    %v691 = vld [vmem:[%s682 + $0x20] sm:$0xf]
    %v692 = vld [vmem:[%s682 + $0x24] sm:$0xf]
    %v693 = vld [vmem:[%s682 + $0x28] sm:$0xf]
    %v694 = vld [vmem:[%s682 + $0x2c] sm:$0xf]
    %v695 = vld [vmem:[%s682 + $0x30] sm:$0xf]
    %v696 = vld [vmem:[%s682 + $0x34] sm:$0xf]
    %v697 = vld [vmem:[%s682 + $0x38] sm:$0xf]
    %v698 = vld [vmem:[%s682 + $0x3c] sm:$0xf]
    %s699 = scalar_lea.vmem [#allocation8], 7
    %v700 = vld [vmem:[%s699] sm:$0x1]
    %v702 = vperm.slane %v700, 0
    %v720 = vunpack.c.l.b16 %v683
    %v721 = vunpack.c.l.b16 %v684
    %v722 = vunpack.c.l.b16 %v685
    %v723 = vunpack.c.l.b16 %v686
    %v724 = vunpack.c.l.b16 %v687
    %v725 = vunpack.c.l.b16 %v688
    %v726 = vunpack.c.l.b16 %v689
    %v727 = vunpack.c.l.b16 %v690
    %v728 = vunpack.c.l.b16 %v691
    %v729 = vunpack.c.l.b16 %v692
    %v730 = vunpack.c.l.b16 %v693
    %v731 = vunpack.c.l.b16 %v694
    %v732 = vunpack.c.l.b16 %v695
    %v733 = vunpack.c.l.b16 %v696
    %v734 = vunpack.c.l.b16 %v697
    %v735 = vunpack.c.l.b16 %v698
    %v736 = vpack.c.b16 %v721, %v720
    %v737 = vpack.c.b16 %v723, %v722
    %v738 = vpack.c.b16 %v725, %v724
    %v739 = vpack.c.b16 %v727, %v726
    %v740 = vpack.c.b16 %v729, %v728
    %v741 = vpack.c.b16 %v731, %v730
    %v742 = vpack.c.b16 %v733, %v732
    %v743 = vpack.c.b16 %v735, %v734
    %752 = vmatpush.bf16.msra.mxu0 %v743
    %753 = vmatpush.bf16.msra.mxu0 %v742
    %754 = vmatpush.bf16.msra.mxu0 %v741
    %755 = vmatpush.bf16.msra.mxu0 %v740
    %756 = vmatpush.bf16.msra.mxu0 %v739
    %757 = vmatpush.bf16.msra.mxu0 %v738
    %758 = vmatpush.bf16.msra.mxu0 %v737
    %759 = vmatpush.bf16.msra.mxu0 %v736
    %760 = vmatmul.bf16.gmra.mxu0 %v681
    %v761 = vpop.f32.mrf.mxu0
    %v762 = vadd.f32 %v702, %v761
    %v763 = vpop.f32.mrf.mxu0
    %764 = vdwg.mxu0
    %vm765 = vcmp.ge.f32.partialorder %v762, 0.0
    %v766 = vmul.f32 %v762, 0.2
    %v767 = vsel %vm765, %v762, %v766
    %v768 = vpack.c.bf16 %v767, %v767
    %s769 = scalar_lea.vmem [#allocation7], 512
    %v770 = vld [vmem:[%s769] sm:$0xf]
    %v771 = vld [vmem:[%s769 + $0x4] sm:$0xf]
    %v772 = vld [vmem:[%s769 + $0x8] sm:$0xf]
    %v773 = vld [vmem:[%s769 + $0xc] sm:$0xf]
    %v774 = vld [vmem:[%s769 + $0x10] sm:$0xf]
    %v775 = vld [vmem:[%s769 + $0x14] sm:$0xf]
    %v776 = vld [vmem:[%s769 + $0x18] sm:$0xf]
    %v777 = vld [vmem:[%s769 + $0x1c] sm:$0xf]
    %v778 = vld [vmem:[%s769 + $0x20] sm:$0xf]
    %v779 = vld [vmem:[%s769 + $0x24] sm:$0xf]
    %v780 = vld [vmem:[%s769 + $0x28] sm:$0xf]
    %v781 = vld [vmem:[%s769 + $0x2c] sm:$0xf]
    %v782 = vld [vmem:[%s769 + $0x30] sm:$0xf]
    %v783 = vld [vmem:[%s769 + $0x34] sm:$0xf]
    %v784 = vld [vmem:[%s769 + $0x38] sm:$0xf]
    %v785 = vld [vmem:[%s769 + $0x3c] sm:$0xf]
    %s786 = scalar_lea.vmem [#allocation8], 8
    %v787 = vld [vmem:[%s786] sm:$0x1]
    %v789 = vperm.slane %v787, 0
    %v807 = vunpack.c.l.b16 %v770
    %v808 = vunpack.c.l.b16 %v771
    %v809 = vunpack.c.l.b16 %v772
    %v810 = vunpack.c.l.b16 %v773
    %v811 = vunpack.c.l.b16 %v774
    %v812 = vunpack.c.l.b16 %v775
    %v813 = vunpack.c.l.b16 %v776
    %v814 = vunpack.c.l.b16 %v777
    %v815 = vunpack.c.l.b16 %v778
    %v816 = vunpack.c.l.b16 %v779
    %v817 = vunpack.c.l.b16 %v780
    %v818 = vunpack.c.l.b16 %v781
    %v819 = vunpack.c.l.b16 %v782
    %v820 = vunpack.c.l.b16 %v783
    %v821 = vunpack.c.l.b16 %v784
    %v822 = vunpack.c.l.b16 %v785
    %v823 = vpack.c.b16 %v808, %v807
    %v824 = vpack.c.b16 %v810, %v809
    %v825 = vpack.c.b16 %v812, %v811
    %v826 = vpack.c.b16 %v814, %v813
    %v827 = vpack.c.b16 %v816, %v815
    %v828 = vpack.c.b16 %v818, %v817
    %v829 = vpack.c.b16 %v820, %v819
    %v830 = vpack.c.b16 %v822, %v821
    %839 = vmatpush.bf16.msra.mxu0 %v830
    %840 = vmatpush.bf16.msra.mxu0 %v829
    %841 = vmatpush.bf16.msra.mxu0 %v828
    %842 = vmatpush.bf16.msra.mxu0 %v827
    %843 = vmatpush.bf16.msra.mxu0 %v826
    %844 = vmatpush.bf16.msra.mxu0 %v825
    %845 = vmatpush.bf16.msra.mxu0 %v824
    %846 = vmatpush.bf16.msra.mxu0 %v823
    %847 = vmatmul.bf16.gmra.mxu0 %v768
    %v848 = vpop.f32.mrf.mxu0
    %v849 = vadd.f32 %v789, %v848
    %v850 = vpop.f32.mrf.mxu0
    %851 = vdwg.mxu0
    %v852 = vadd.f32 %v680, %v849
    %v853 = vpack.c.bf16 %v852, %v852
    %s854 = scalar_lea.vmem [#allocation7], 576
    %v855 = vld [vmem:[%s854] sm:$0xf]
    %v856 = vld [vmem:[%s854 + $0x4] sm:$0xf]
    %v857 = vld [vmem:[%s854 + $0x8] sm:$0xf]
    %v858 = vld [vmem:[%s854 + $0xc] sm:$0xf]
    %v859 = vld [vmem:[%s854 + $0x10] sm:$0xf]
    %v860 = vld [vmem:[%s854 + $0x14] sm:$0xf]
    %v861 = vld [vmem:[%s854 + $0x18] sm:$0xf]
    %v862 = vld [vmem:[%s854 + $0x1c] sm:$0xf]
    %v863 = vld [vmem:[%s854 + $0x20] sm:$0xf]
    %v864 = vld [vmem:[%s854 + $0x24] sm:$0xf]
    %v865 = vld [vmem:[%s854 + $0x28] sm:$0xf]
    %v866 = vld [vmem:[%s854 + $0x2c] sm:$0xf]
    %v867 = vld [vmem:[%s854 + $0x30] sm:$0xf]
    %v868 = vld [vmem:[%s854 + $0x34] sm:$0xf]
    %v869 = vld [vmem:[%s854 + $0x38] sm:$0xf]
    %v870 = vld [vmem:[%s854 + $0x3c] sm:$0xf]
    %s871 = scalar_lea.vmem [#allocation8], 9
    %v872 = vld [vmem:[%s871] sm:$0x1]
    %v874 = vperm.slane %v872, 0
    %v892 = vunpack.c.l.b16 %v855
    %v893 = vunpack.c.l.b16 %v856
    %v894 = vunpack.c.l.b16 %v857
    %v895 = vunpack.c.l.b16 %v858
    %v896 = vunpack.c.l.b16 %v859
    %v897 = vunpack.c.l.b16 %v860
    %v898 = vunpack.c.l.b16 %v861
    %v899 = vunpack.c.l.b16 %v862
    %v900 = vunpack.c.l.b16 %v863
    %v901 = vunpack.c.l.b16 %v864
    %v902 = vunpack.c.l.b16 %v865
    %v903 = vunpack.c.l.b16 %v866
    %v904 = vunpack.c.l.b16 %v867
    %v905 = vunpack.c.l.b16 %v868
    %v906 = vunpack.c.l.b16 %v869
    %v907 = vunpack.c.l.b16 %v870
    %v908 = vpack.c.b16 %v893, %v892
    %v909 = vpack.c.b16 %v895, %v894
    %v910 = vpack.c.b16 %v897, %v896
    %v911 = vpack.c.b16 %v899, %v898
    %v912 = vpack.c.b16 %v901, %v900
    %v913 = vpack.c.b16 %v903, %v902
    %v914 = vpack.c.b16 %v905, %v904
    %v915 = vpack.c.b16 %v907, %v906
    %924 = vmatpush.bf16.msra.mxu0 %v915
    %925 = vmatpush.bf16.msra.mxu0 %v914
    %926 = vmatpush.bf16.msra.mxu0 %v913
    %927 = vmatpush.bf16.msra.mxu0 %v912
    %928 = vmatpush.bf16.msra.mxu0 %v911
    %929 = vmatpush.bf16.msra.mxu0 %v910
    %930 = vmatpush.bf16.msra.mxu0 %v909
    %931 = vmatpush.bf16.msra.mxu0 %v908
    %932 = vmatmul.bf16.gmra.mxu0 %v853
    %v933 = vpop.f32.mrf.mxu0
    %v934 = vadd.f32 %v874, %v933
    %v935 = vpop.f32.mrf.mxu0
    %936 = vdwg.mxu0
    %vm937 = vcmp.ge.f32.partialorder %v934, 0.0
    %v938 = vmul.f32 %v934, 0.2
    %v939 = vsel %vm937, %v934, %v938
    %v940 = vpack.c.bf16 %v939, %v939
    %s941 = scalar_lea.vmem [#allocation7], 640
    %v942 = vld [vmem:[%s941] sm:$0xf]
    %v943 = vld [vmem:[%s941 + $0x4] sm:$0xf]
    %v944 = vld [vmem:[%s941 + $0x8] sm:$0xf]
    %v945 = vld [vmem:[%s941 + $0xc] sm:$0xf]
    %v946 = vld [vmem:[%s941 + $0x10] sm:$0xf]
    %v947 = vld [vmem:[%s941 + $0x14] sm:$0xf]
    %v948 = vld [vmem:[%s941 + $0x18] sm:$0xf]
    %v949 = vld [vmem:[%s941 + $0x1c] sm:$0xf]
    %v950 = vld [vmem:[%s941 + $0x20] sm:$0xf]
    %v951 = vld [vmem:[%s941 + $0x24] sm:$0xf]
    %v952 = vld [vmem:[%s941 + $0x28] sm:$0xf]
    %v953 = vld [vmem:[%s941 + $0x2c] sm:$0xf]
    %v954 = vld [vmem:[%s941 + $0x30] sm:$0xf]
    %v955 = vld [vmem:[%s941 + $0x34] sm:$0xf]
    %v956 = vld [vmem:[%s941 + $0x38] sm:$0xf]
    %v957 = vld [vmem:[%s941 + $0x3c] sm:$0xf]
    %s958 = scalar_lea.vmem [#allocation8], 10
    %v959 = vld [vmem:[%s958] sm:$0x1]
    %v961 = vperm.slane %v959, 0
    %v979 = vunpack.c.l.b16 %v942
    %v980 = vunpack.c.l.b16 %v943
    %v981 = vunpack.c.l.b16 %v944
    %v982 = vunpack.c.l.b16 %v945
    %v983 = vunpack.c.l.b16 %v946
    %v984 = vunpack.c.l.b16 %v947
    %v985 = vunpack.c.l.b16 %v948
    %v986 = vunpack.c.l.b16 %v949
    %v987 = vunpack.c.l.b16 %v950
    %v988 = vunpack.c.l.b16 %v951
    %v989 = vunpack.c.l.b16 %v952
    %v990 = vunpack.c.l.b16 %v953
    %v991 = vunpack.c.l.b16 %v954
    %v992 = vunpack.c.l.b16 %v955
    %v993 = vunpack.c.l.b16 %v956
    %v994 = vunpack.c.l.b16 %v957
    %v995 = vpack.c.b16 %v980, %v979
    %v996 = vpack.c.b16 %v982, %v981
    %v997 = vpack.c.b16 %v984, %v983
    %v998 = vpack.c.b16 %v986, %v985
    %v999 = vpack.c.b16 %v988, %v987
    %v1000 = vpack.c.b16 %v990, %v989
    %v1001 = vpack.c.b16 %v992, %v991
    %v1002 = vpack.c.b16 %v994, %v993
    %1011 = vmatpush.bf16.msra.mxu0 %v1002
    %1012 = vmatpush.bf16.msra.mxu0 %v1001
    %1013 = vmatpush.bf16.msra.mxu0 %v1000
    %1014 = vmatpush.bf16.msra.mxu0 %v999
    %1015 = vmatpush.bf16.msra.mxu0 %v998
    %1016 = vmatpush.bf16.msra.mxu0 %v997
    %1017 = vmatpush.bf16.msra.mxu0 %v996
    %1018 = vmatpush.bf16.msra.mxu0 %v995
    %1019 = vmatmul.bf16.gmra.mxu0 %v940
    %v1020 = vpop.f32.mrf.mxu0
    %v1021 = vadd.f32 %v961, %v1020
    %v1022 = vpop.f32.mrf.mxu0
    %1023 = vdwg.mxu0
    %v1024 = vadd.f32 %v852, %v1021
    %v1025 = vpack.c.bf16 %v1024, %v1024
    %s1026 = scalar_lea.vmem [#allocation7], 704
    %v1027 = vld [vmem:[%s1026] sm:$0xf]
    %v1028 = vld [vmem:[%s1026 + $0x4] sm:$0xf]
    %v1029 = vld [vmem:[%s1026 + $0x8] sm:$0xf]
    %v1030 = vld [vmem:[%s1026 + $0xc] sm:$0xf]
    %v1031 = vld [vmem:[%s1026 + $0x10] sm:$0xf]
    %v1032 = vld [vmem:[%s1026 + $0x14] sm:$0xf]
    %v1033 = vld [vmem:[%s1026 + $0x18] sm:$0xf]
    %v1034 = vld [vmem:[%s1026 + $0x1c] sm:$0xf]
    %v1035 = vld [vmem:[%s1026 + $0x20] sm:$0xf]
    %v1036 = vld [vmem:[%s1026 + $0x24] sm:$0xf]
    %v1037 = vld [vmem:[%s1026 + $0x28] sm:$0xf]
    %v1038 = vld [vmem:[%s1026 + $0x2c] sm:$0xf]
    %v1039 = vld [vmem:[%s1026 + $0x30] sm:$0xf]
    %v1040 = vld [vmem:[%s1026 + $0x34] sm:$0xf]
    %v1041 = vld [vmem:[%s1026 + $0x38] sm:$0xf]
    %v1042 = vld [vmem:[%s1026 + $0x3c] sm:$0xf]
    %s1043 = scalar_lea.vmem [#allocation8], 11
    %v1044 = vld [vmem:[%s1043] sm:$0x1]
    %v1046 = vperm.slane %v1044, 0
    %v1064 = vunpack.c.l.b16 %v1027
    %v1065 = vunpack.c.l.b16 %v1028
    %v1066 = vunpack.c.l.b16 %v1029
    %v1067 = vunpack.c.l.b16 %v1030
    %v1068 = vunpack.c.l.b16 %v1031
    %v1069 = vunpack.c.l.b16 %v1032
    %v1070 = vunpack.c.l.b16 %v1033
    %v1071 = vunpack.c.l.b16 %v1034
    %v1072 = vunpack.c.l.b16 %v1035
    %v1073 = vunpack.c.l.b16 %v1036
    %v1074 = vunpack.c.l.b16 %v1037
    %v1075 = vunpack.c.l.b16 %v1038
    %v1076 = vunpack.c.l.b16 %v1039
    %v1077 = vunpack.c.l.b16 %v1040
    %v1078 = vunpack.c.l.b16 %v1041
    %v1079 = vunpack.c.l.b16 %v1042
    %v1080 = vpack.c.b16 %v1065, %v1064
    %v1081 = vpack.c.b16 %v1067, %v1066
    %v1082 = vpack.c.b16 %v1069, %v1068
    %v1083 = vpack.c.b16 %v1071, %v1070
    %v1084 = vpack.c.b16 %v1073, %v1072
    %v1085 = vpack.c.b16 %v1075, %v1074
    %v1086 = vpack.c.b16 %v1077, %v1076
    %v1087 = vpack.c.b16 %v1079, %v1078
    %1096 = vmatpush.bf16.msra.mxu0 %v1087
    %1097 = vmatpush.bf16.msra.mxu0 %v1086
    %1098 = vmatpush.bf16.msra.mxu0 %v1085
    %1099 = vmatpush.bf16.msra.mxu0 %v1084
    %1100 = vmatpush.bf16.msra.mxu0 %v1083
    %1101 = vmatpush.bf16.msra.mxu0 %v1082
    %1102 = vmatpush.bf16.msra.mxu0 %v1081
    %1103 = vmatpush.bf16.msra.mxu0 %v1080
    %1104 = vmatmul.bf16.gmra.mxu0 %v1025
    %v1105 = vpop.f32.mrf.mxu0
    %v1106 = vadd.f32 %v1046, %v1105
    %v1107 = vpop.f32.mrf.mxu0
    %1108 = vdwg.mxu0
    %v1109 = vlaneseq
    %v1110 = vand.u32 %v1109, 127
    %vm1111 = vcmp.ge.s32.totalorder %v1110, 36
    %vm1112 = vcmp.lt.s32.totalorder %v1110, 52
    %vm1113 = vmand %vm1111, %vm1112
    %v1114 = vmax.f32 %v1106, -100.0
    %v1115 = vmin.f32 %v1114, 100.0
    %v1116 = vsel %vm1113, %v1115, %v1106
    %v1117 = vmul.f32 %v1116, 0.5
    %v1118 = vmul.f32 %v1117, 1.442695
    %v1119 = vpow.pop %v1118
    %v1120 = vld [vmem:[#allocation5] sm:$0xff]
    %v1121 = vmul.f32 %v1120, %v1119
    %v1122 = vsel %vm1113, %v1121, %v1106
    %v1123 = vpack.c.bf16 %v1122, %v1122
    %s1124 = scalar_lea.vmem [#allocation7], 768
    %v1125 = vld [vmem:[%s1124] sm:$0xf]
    %v1126 = vld [vmem:[%s1124 + $0x4] sm:$0xf]
    %v1127 = vld [vmem:[%s1124 + $0x8] sm:$0xf]
    %v1128 = vld [vmem:[%s1124 + $0xc] sm:$0xf]
    %v1129 = vld [vmem:[%s1124 + $0x10] sm:$0xf]
    %v1130 = vld [vmem:[%s1124 + $0x14] sm:$0xf]
    %v1131 = vld [vmem:[%s1124 + $0x18] sm:$0xf]
    %v1132 = vld [vmem:[%s1124 + $0x1c] sm:$0xf]
    %v1133 = vld [vmem:[%s1124 + $0x20] sm:$0xf]
    %v1134 = vld [vmem:[%s1124 + $0x24] sm:$0xf]
    %v1135 = vld [vmem:[%s1124 + $0x28] sm:$0xf]
    %v1136 = vld [vmem:[%s1124 + $0x2c] sm:$0xf]
    %v1137 = vld [vmem:[%s1124 + $0x30] sm:$0xf]
    %v1138 = vld [vmem:[%s1124 + $0x34] sm:$0xf]
    %v1139 = vld [vmem:[%s1124 + $0x38] sm:$0xf]
    %v1140 = vld [vmem:[%s1124 + $0x3c] sm:$0xf]
    %s1141 = scalar_lea.vmem [#allocation8], 12
    %v1142 = vld [vmem:[%s1141] sm:$0x1]
    %v1144 = vperm.slane %v1142, 0
    %v1162 = vunpack.c.l.b16 %v1125
    %v1163 = vunpack.c.l.b16 %v1126
    %v1164 = vunpack.c.l.b16 %v1127
    %v1165 = vunpack.c.l.b16 %v1128
    %v1166 = vunpack.c.l.b16 %v1129
    %v1167 = vunpack.c.l.b16 %v1130
    %v1168 = vunpack.c.l.b16 %v1131
    %v1169 = vunpack.c.l.b16 %v1132
    %v1170 = vunpack.c.l.b16 %v1133
    %v1171 = vunpack.c.l.b16 %v1134
    %v1172 = vunpack.c.l.b16 %v1135
    %v1173 = vunpack.c.l.b16 %v1136
    %v1174 = vunpack.c.l.b16 %v1137
    %v1175 = vunpack.c.l.b16 %v1138
    %v1176 = vunpack.c.l.b16 %v1139
    %v1177 = vunpack.c.l.b16 %v1140
    %v1178 = vpack.c.b16 %v1163, %v1162
    %v1179 = vpack.c.b16 %v1165, %v1164
    %v1180 = vpack.c.b16 %v1167, %v1166
    %v1181 = vpack.c.b16 %v1169, %v1168
    %v1182 = vpack.c.b16 %v1171, %v1170
    %v1183 = vpack.c.b16 %v1173, %v1172
    %v1184 = vpack.c.b16 %v1175, %v1174
    %v1185 = vpack.c.b16 %v1177, %v1176
    %1194 = vmatpush.bf16.msra.mxu0 %v1185
    %1195 = vmatpush.bf16.msra.mxu0 %v1184
    %1196 = vmatpush.bf16.msra.mxu0 %v1183
    %1197 = vmatpush.bf16.msra.mxu0 %v1182
    %1198 = vmatpush.bf16.msra.mxu0 %v1181
    %1199 = vmatpush.bf16.msra.mxu0 %v1180
    %1200 = vmatpush.bf16.msra.mxu0 %v1179
    %1201 = vmatpush.bf16.msra.mxu0 %v1178
    %1202 = vmatmul.bf16.gmra.mxu0 %v1123
    %v1203 = vpop.f32.mrf.mxu0
    %v1204 = vadd.f32 %v1144, %v1203
    %v1205 = vpop.f32.mrf.mxu0
    %1206 = vdwg.mxu0
    %vm1207 = vcmp.ge.f32.partialorder %v1204, 0.0
    %v1208 = vmul.f32 %v1204, 0.2
    %v1209 = vsel %vm1207, %v1204, %v1208
    %v1210 = vpack.c.bf16 %v1209, %v1209
    %s1211 = scalar_lea.vmem [#allocation7], 832
    %v1212 = vld [vmem:[%s1211] sm:$0xf]
    %v1213 = vld [vmem:[%s1211 + $0x4] sm:$0xf]
    %v1214 = vld [vmem:[%s1211 + $0x8] sm:$0xf]
    %v1215 = vld [vmem:[%s1211 + $0xc] sm:$0xf]
    %v1216 = vld [vmem:[%s1211 + $0x10] sm:$0xf]
    %v1217 = vld [vmem:[%s1211 + $0x14] sm:$0xf]
    %v1218 = vld [vmem:[%s1211 + $0x18] sm:$0xf]
    %v1219 = vld [vmem:[%s1211 + $0x1c] sm:$0xf]
    %v1220 = vld [vmem:[%s1211 + $0x20] sm:$0xf]
    %v1221 = vld [vmem:[%s1211 + $0x24] sm:$0xf]
    %v1222 = vld [vmem:[%s1211 + $0x28] sm:$0xf]
    %v1223 = vld [vmem:[%s1211 + $0x2c] sm:$0xf]
    %v1224 = vld [vmem:[%s1211 + $0x30] sm:$0xf]
    %v1225 = vld [vmem:[%s1211 + $0x34] sm:$0xf]
    %v1226 = vld [vmem:[%s1211 + $0x38] sm:$0xf]
    %v1227 = vld [vmem:[%s1211 + $0x3c] sm:$0xf]
    %s1228 = scalar_lea.vmem [#allocation8], 13
    %v1229 = vld [vmem:[%s1228] sm:$0x1]
    %v1231 = vperm.slane %v1229, 0
    %v1249 = vunpack.c.l.b16 %v1212
    %v1250 = vunpack.c.l.b16 %v1213
    %v1251 = vunpack.c.l.b16 %v1214
    %v1252 = vunpack.c.l.b16 %v1215
    %v1253 = vunpack.c.l.b16 %v1216
    %v1254 = vunpack.c.l.b16 %v1217
    %v1255 = vunpack.c.l.b16 %v1218
    %v1256 = vunpack.c.l.b16 %v1219
    %v1257 = vunpack.c.l.b16 %v1220
    %v1258 = vunpack.c.l.b16 %v1221
    %v1259 = vunpack.c.l.b16 %v1222
    %v1260 = vunpack.c.l.b16 %v1223
    %v1261 = vunpack.c.l.b16 %v1224
    %v1262 = vunpack.c.l.b16 %v1225
    %v1263 = vunpack.c.l.b16 %v1226
    %v1264 = vunpack.c.l.b16 %v1227
    %v1265 = vpack.c.b16 %v1250, %v1249
    %v1266 = vpack.c.b16 %v1252, %v1251
    %v1267 = vpack.c.b16 %v1254, %v1253
    %v1268 = vpack.c.b16 %v1256, %v1255
    %v1269 = vpack.c.b16 %v1258, %v1257
    %v1270 = vpack.c.b16 %v1260, %v1259
    %v1271 = vpack.c.b16 %v1262, %v1261
    %v1272 = vpack.c.b16 %v1264, %v1263
    %1281 = vmatpush.bf16.msra.mxu0 %v1272
    %1282 = vmatpush.bf16.msra.mxu0 %v1271
    %1283 = vmatpush.bf16.msra.mxu0 %v1270
    %1284 = vmatpush.bf16.msra.mxu0 %v1269
    %1285 = vmatpush.bf16.msra.mxu0 %v1268
    %1286 = vmatpush.bf16.msra.mxu0 %v1267
    %1287 = vmatpush.bf16.msra.mxu0 %v1266
    %1288 = vmatpush.bf16.msra.mxu0 %v1265
    %1289 = vmatmul.bf16.gmra.mxu0 %v1210
    %v1290 = vpop.f32.mrf.mxu0
    %v1291 = vadd.f32 %v1231, %v1290
    %v1292 = vpop.f32.mrf.mxu0
    %1293 = vdwg.mxu0
    %vm1294 = vcmp.ge.f32.partialorder %v1291, 0.0
    %v1295 = vmul.f32 %v1291, 0.2
    %v1296 = vsel %vm1294, %v1291, %v1295
    %v1297 = vpack.c.bf16 %v1296, %v1296
    %s1298 = scalar_lea.vmem [#allocation7], 896
    %v1299 = vld [vmem:[%s1298] sm:$0xf]
    %v1300 = vld [vmem:[%s1298 + $0x4] sm:$0xf]
    %v1301 = vld [vmem:[%s1298 + $0x8] sm:$0xf]
    %v1302 = vld [vmem:[%s1298 + $0xc] sm:$0xf]
    %v1303 = vld [vmem:[%s1298 + $0x10] sm:$0xf]
    %v1304 = vld [vmem:[%s1298 + $0x14] sm:$0xf]
    %v1305 = vld [vmem:[%s1298 + $0x18] sm:$0xf]
    %v1306 = vld [vmem:[%s1298 + $0x1c] sm:$0xf]
    %v1307 = vld [vmem:[%s1298 + $0x20] sm:$0xf]
    %v1308 = vld [vmem:[%s1298 + $0x24] sm:$0xf]
    %v1309 = vld [vmem:[%s1298 + $0x28] sm:$0xf]
    %v1310 = vld [vmem:[%s1298 + $0x2c] sm:$0xf]
    %v1311 = vld [vmem:[%s1298 + $0x30] sm:$0xf]
    %v1312 = vld [vmem:[%s1298 + $0x34] sm:$0xf]
    %v1313 = vld [vmem:[%s1298 + $0x38] sm:$0xf]
    %v1314 = vld [vmem:[%s1298 + $0x3c] sm:$0xf]
    %s1315 = scalar_lea.vmem [#allocation8], 14
    %v1316 = vld [vmem:[%s1315] sm:$0x1]
    %v1318 = vperm.slane %v1316, 0
    %v1336 = vunpack.c.l.b16 %v1299
    %v1337 = vunpack.c.l.b16 %v1300
    %v1338 = vunpack.c.l.b16 %v1301
    %v1339 = vunpack.c.l.b16 %v1302
    %v1340 = vunpack.c.l.b16 %v1303
    %v1341 = vunpack.c.l.b16 %v1304
    %v1342 = vunpack.c.l.b16 %v1305
    %v1343 = vunpack.c.l.b16 %v1306
    %v1344 = vunpack.c.l.b16 %v1307
    %v1345 = vunpack.c.l.b16 %v1308
    %v1346 = vunpack.c.l.b16 %v1309
    %v1347 = vunpack.c.l.b16 %v1310
    %v1348 = vunpack.c.l.b16 %v1311
    %v1349 = vunpack.c.l.b16 %v1312
    %v1350 = vunpack.c.l.b16 %v1313
    %v1351 = vunpack.c.l.b16 %v1314
    %v1352 = vpack.c.b16 %v1337, %v1336
    %v1353 = vpack.c.b16 %v1339, %v1338
    %v1354 = vpack.c.b16 %v1341, %v1340
    %v1355 = vpack.c.b16 %v1343, %v1342
    %v1356 = vpack.c.b16 %v1345, %v1344
    %v1357 = vpack.c.b16 %v1347, %v1346
    %v1358 = vpack.c.b16 %v1349, %v1348
    %v1359 = vpack.c.b16 %v1351, %v1350
    %1368 = vmatpush.bf16.msra.mxu0 %v1359
    %1369 = vmatpush.bf16.msra.mxu0 %v1358
    %1370 = vmatpush.bf16.msra.mxu0 %v1357
    %1371 = vmatpush.bf16.msra.mxu0 %v1356
    %1372 = vmatpush.bf16.msra.mxu0 %v1355
    %1373 = vmatpush.bf16.msra.mxu0 %v1354
    %1374 = vmatpush.bf16.msra.mxu0 %v1353
    %1375 = vmatpush.bf16.msra.mxu0 %v1352
    %1376 = vmatmul.bf16.gmra.mxu0 %v1297
    %v1377 = vpop.f32.mrf.mxu0
    %v1378 = vadd.f32 %v1318, %v1377
    %v1379 = vpop.f32.mrf.mxu0
    %1380 = vdwg.mxu0
    %vm1381 = vcmp.ge.f32.partialorder %v1378, 0.0
    %v1382 = vmul.f32 %v1378, 0.2
    %v1383 = vsel %vm1381, %v1378, %v1382
    %v1384 = vpack.c.bf16 %v1383, %v1383
    %s1385 = scalar_lea.vmem [#allocation7], 960
    %v1386 = vld [vmem:[%s1385] sm:$0xf]
    %v1387 = vld [vmem:[%s1385 + $0x4] sm:$0xf]
    %v1388 = vld [vmem:[%s1385 + $0x8] sm:$0xf]
    %v1389 = vld [vmem:[%s1385 + $0xc] sm:$0xf]
    %v1390 = vld [vmem:[%s1385 + $0x10] sm:$0xf]
    %v1391 = vld [vmem:[%s1385 + $0x14] sm:$0xf]
    %v1392 = vld [vmem:[%s1385 + $0x18] sm:$0xf]
    %v1393 = vld [vmem:[%s1385 + $0x1c] sm:$0xf]
    %v1394 = vld [vmem:[%s1385 + $0x20] sm:$0xf]
    %v1395 = vld [vmem:[%s1385 + $0x24] sm:$0xf]
    %v1396 = vld [vmem:[%s1385 + $0x28] sm:$0xf]
    %v1397 = vld [vmem:[%s1385 + $0x2c] sm:$0xf]
    %v1398 = vld [vmem:[%s1385 + $0x30] sm:$0xf]
    %v1399 = vld [vmem:[%s1385 + $0x34] sm:$0xf]
    %v1400 = vld [vmem:[%s1385 + $0x38] sm:$0xf]
    %v1401 = vld [vmem:[%s1385 + $0x3c] sm:$0xf]
    %s1402 = scalar_lea.vmem [#allocation8], 15
    %v1403 = vld [vmem:[%s1402] sm:$0x1]
    %v1405 = vperm.slane %v1403, 0
    %v1423 = vunpack.c.l.b16 %v1386
    %v1424 = vunpack.c.l.b16 %v1387
    %v1425 = vunpack.c.l.b16 %v1388
    %v1426 = vunpack.c.l.b16 %v1389
    %v1427 = vunpack.c.l.b16 %v1390
    %v1428 = vunpack.c.l.b16 %v1391
    %v1429 = vunpack.c.l.b16 %v1392
    %v1430 = vunpack.c.l.b16 %v1393
    %v1431 = vunpack.c.l.b16 %v1394
    %v1432 = vunpack.c.l.b16 %v1395
    %v1433 = vunpack.c.l.b16 %v1396
    %v1434 = vunpack.c.l.b16 %v1397
    %v1435 = vunpack.c.l.b16 %v1398
    %v1436 = vunpack.c.l.b16 %v1399
    %v1437 = vunpack.c.l.b16 %v1400
    %v1438 = vunpack.c.l.b16 %v1401
    %v1439 = vpack.c.b16 %v1424, %v1423
    %v1440 = vpack.c.b16 %v1426, %v1425
    %v1441 = vpack.c.b16 %v1428, %v1427
    %v1442 = vpack.c.b16 %v1430, %v1429
    %v1443 = vpack.c.b16 %v1432, %v1431
    %v1444 = vpack.c.b16 %v1434, %v1433
    %v1445 = vpack.c.b16 %v1436, %v1435
    %v1446 = vpack.c.b16 %v1438, %v1437
    %1455 = vmatpush.bf16.msra.mxu0 %v1446
    %1456 = vmatpush.bf16.msra.mxu0 %v1445
    %1457 = vmatpush.bf16.msra.mxu0 %v1444
    %1458 = vmatpush.bf16.msra.mxu0 %v1443
    %1459 = vmatpush.bf16.msra.mxu0 %v1442
    %1460 = vmatpush.bf16.msra.mxu0 %v1441
    %1461 = vmatpush.bf16.msra.mxu0 %v1440
    %1462 = vmatpush.bf16.msra.mxu0 %v1439
    %1463 = vmatmul.bf16.gmra.mxu0 %v1384
    %v1464 = vpop.f32.mrf.mxu0
    %v1465 = vadd.f32 %v1405, %v1464
    %v1466 = vpop.f32.mrf.mxu0
    %1467 = vdwg.mxu0
    %v1468 = vadd.f32 %v1296, %v1465
    %v1469 = vpack.c.bf16 %v1468, %v1468
    %s1470 = scalar_lea.vmem [#allocation7], 1024
    %v1471 = vld [vmem:[%s1470] sm:$0xf]
    %v1472 = vld [vmem:[%s1470 + $0x4] sm:$0xf]
    %v1473 = vld [vmem:[%s1470 + $0x8] sm:$0xf]
    %v1474 = vld [vmem:[%s1470 + $0xc] sm:$0xf]
    %v1475 = vld [vmem:[%s1470 + $0x10] sm:$0xf]
    %v1476 = vld [vmem:[%s1470 + $0x14] sm:$0xf]
    %v1477 = vld [vmem:[%s1470 + $0x18] sm:$0xf]
    %v1478 = vld [vmem:[%s1470 + $0x1c] sm:$0xf]
    %v1479 = vld [vmem:[%s1470 + $0x20] sm:$0xf]
    %v1480 = vld [vmem:[%s1470 + $0x24] sm:$0xf]
    %v1481 = vld [vmem:[%s1470 + $0x28] sm:$0xf]
    %v1482 = vld [vmem:[%s1470 + $0x2c] sm:$0xf]
    %v1483 = vld [vmem:[%s1470 + $0x30] sm:$0xf]
    %v1484 = vld [vmem:[%s1470 + $0x34] sm:$0xf]
    %v1485 = vld [vmem:[%s1470 + $0x38] sm:$0xf]
    %v1486 = vld [vmem:[%s1470 + $0x3c] sm:$0xf]
    %s1487 = scalar_lea.vmem [#allocation8], 16
    %v1488 = vld [vmem:[%s1487] sm:$0x1]
    %v1490 = vperm.slane %v1488, 0
    %v1508 = vunpack.c.l.b16 %v1471
    %v1509 = vunpack.c.l.b16 %v1472
    %v1510 = vunpack.c.l.b16 %v1473
    %v1511 = vunpack.c.l.b16 %v1474
    %v1512 = vunpack.c.l.b16 %v1475
    %v1513 = vunpack.c.l.b16 %v1476
    %v1514 = vunpack.c.l.b16 %v1477
    %v1515 = vunpack.c.l.b16 %v1478
    %v1516 = vunpack.c.l.b16 %v1479
    %v1517 = vunpack.c.l.b16 %v1480
    %v1518 = vunpack.c.l.b16 %v1481
    %v1519 = vunpack.c.l.b16 %v1482
    %v1520 = vunpack.c.l.b16 %v1483
    %v1521 = vunpack.c.l.b16 %v1484
    %v1522 = vunpack.c.l.b16 %v1485
    %v1523 = vunpack.c.l.b16 %v1486
    %v1524 = vpack.c.b16 %v1509, %v1508
    %v1525 = vpack.c.b16 %v1511, %v1510
    %v1526 = vpack.c.b16 %v1513, %v1512
    %v1527 = vpack.c.b16 %v1515, %v1514
    %v1528 = vpack.c.b16 %v1517, %v1516
    %v1529 = vpack.c.b16 %v1519, %v1518
    %v1530 = vpack.c.b16 %v1521, %v1520
    %v1531 = vpack.c.b16 %v1523, %v1522
    %1540 = vmatpush.bf16.msra.mxu0 %v1531
    %1541 = vmatpush.bf16.msra.mxu0 %v1530
    %1542 = vmatpush.bf16.msra.mxu0 %v1529
    %1543 = vmatpush.bf16.msra.mxu0 %v1528
    %1544 = vmatpush.bf16.msra.mxu0 %v1527
    %1545 = vmatpush.bf16.msra.mxu0 %v1526
    %1546 = vmatpush.bf16.msra.mxu0 %v1525
    %1547 = vmatpush.bf16.msra.mxu0 %v1524
    %1548 = vmatmul.bf16.gmra.mxu0 %v1469
    %v1549 = vpop.f32.mrf.mxu0
    %v1550 = vadd.f32 %v1490, %v1549
    %v1551 = vpop.f32.mrf.mxu0
    %1552 = vdwg.mxu0
    %vm1553 = vcmp.ge.f32.partialorder %v1550, 0.0
    %v1554 = vmul.f32 %v1550, 0.2
    %v1555 = vsel %vm1553, %v1550, %v1554
    %v1556 = vpack.c.bf16 %v1555, %v1555
    %s1557 = scalar_lea.vmem [#allocation7], 1088
    %v1558 = vld [vmem:[%s1557] sm:$0xf]
    %v1559 = vld [vmem:[%s1557 + $0x4] sm:$0xf]
    %v1560 = vld [vmem:[%s1557 + $0x8] sm:$0xf]
    %v1561 = vld [vmem:[%s1557 + $0xc] sm:$0xf]
    %v1562 = vld [vmem:[%s1557 + $0x10] sm:$0xf]
    %v1563 = vld [vmem:[%s1557 + $0x14] sm:$0xf]
    %v1564 = vld [vmem:[%s1557 + $0x18] sm:$0xf]
    %v1565 = vld [vmem:[%s1557 + $0x1c] sm:$0xf]
    %v1566 = vld [vmem:[%s1557 + $0x20] sm:$0xf]
    %v1567 = vld [vmem:[%s1557 + $0x24] sm:$0xf]
    %v1568 = vld [vmem:[%s1557 + $0x28] sm:$0xf]
    %v1569 = vld [vmem:[%s1557 + $0x2c] sm:$0xf]
    %v1570 = vld [vmem:[%s1557 + $0x30] sm:$0xf]
    %v1571 = vld [vmem:[%s1557 + $0x34] sm:$0xf]
    %v1572 = vld [vmem:[%s1557 + $0x38] sm:$0xf]
    %v1573 = vld [vmem:[%s1557 + $0x3c] sm:$0xf]
    %s1574 = scalar_lea.vmem [#allocation8], 17
    %v1575 = vld [vmem:[%s1574] sm:$0x1]
    %v1577 = vperm.slane %v1575, 0
    %v1595 = vunpack.c.l.b16 %v1558
    %v1596 = vunpack.c.l.b16 %v1559
    %v1597 = vunpack.c.l.b16 %v1560
    %v1598 = vunpack.c.l.b16 %v1561
    %v1599 = vunpack.c.l.b16 %v1562
    %v1600 = vunpack.c.l.b16 %v1563
    %v1601 = vunpack.c.l.b16 %v1564
    %v1602 = vunpack.c.l.b16 %v1565
    %v1603 = vunpack.c.l.b16 %v1566
    %v1604 = vunpack.c.l.b16 %v1567
    %v1605 = vunpack.c.l.b16 %v1568
    %v1606 = vunpack.c.l.b16 %v1569
    %v1607 = vunpack.c.l.b16 %v1570
    %v1608 = vunpack.c.l.b16 %v1571
    %v1609 = vunpack.c.l.b16 %v1572
    %v1610 = vunpack.c.l.b16 %v1573
    %v1611 = vpack.c.b16 %v1596, %v1595
    %v1612 = vpack.c.b16 %v1598, %v1597
    %v1613 = vpack.c.b16 %v1600, %v1599
    %v1614 = vpack.c.b16 %v1602, %v1601
    %v1615 = vpack.c.b16 %v1604, %v1603
    %v1616 = vpack.c.b16 %v1606, %v1605
    %v1617 = vpack.c.b16 %v1608, %v1607
    %v1618 = vpack.c.b16 %v1610, %v1609
    %1627 = vmatpush.bf16.msra.mxu0 %v1618
    %1628 = vmatpush.bf16.msra.mxu0 %v1617
    %1629 = vmatpush.bf16.msra.mxu0 %v1616
    %1630 = vmatpush.bf16.msra.mxu0 %v1615
    %1631 = vmatpush.bf16.msra.mxu0 %v1614
    %1632 = vmatpush.bf16.msra.mxu0 %v1613
    %1633 = vmatpush.bf16.msra.mxu0 %v1612
    %1634 = vmatpush.bf16.msra.mxu0 %v1611
    %1635 = vmatmul.bf16.gmra.mxu0 %v1556
    %v1636 = vpop.f32.mrf.mxu0
    %v1637 = vadd.f32 %v1577, %v1636
    %v1638 = vpop.f32.mrf.mxu0
    %1639 = vdwg.mxu0
    %v1640 = vadd.f32 %v1468, %v1637
    %v1641 = vpack.c.bf16 %v1640, %v1640
    %s1642 = scalar_lea.vmem [#allocation7], 1152
    %v1643 = vld [vmem:[%s1642] sm:$0xf]
    %v1644 = vld [vmem:[%s1642 + $0x4] sm:$0xf]
    %v1645 = vld [vmem:[%s1642 + $0x8] sm:$0xf]
    %v1646 = vld [vmem:[%s1642 + $0xc] sm:$0xf]
    %v1647 = vld [vmem:[%s1642 + $0x10] sm:$0xf]
    %v1648 = vld [vmem:[%s1642 + $0x14] sm:$0xf]
    %v1649 = vld [vmem:[%s1642 + $0x18] sm:$0xf]
    %v1650 = vld [vmem:[%s1642 + $0x1c] sm:$0xf]
    %v1651 = vld [vmem:[%s1642 + $0x20] sm:$0xf]
    %v1652 = vld [vmem:[%s1642 + $0x24] sm:$0xf]
    %v1653 = vld [vmem:[%s1642 + $0x28] sm:$0xf]
    %v1654 = vld [vmem:[%s1642 + $0x2c] sm:$0xf]
    %v1655 = vld [vmem:[%s1642 + $0x30] sm:$0xf]
    %v1656 = vld [vmem:[%s1642 + $0x34] sm:$0xf]
    %v1657 = vld [vmem:[%s1642 + $0x38] sm:$0xf]
    %v1658 = vld [vmem:[%s1642 + $0x3c] sm:$0xf]
    %s1659 = scalar_lea.vmem [#allocation8], 18
    %v1660 = vld [vmem:[%s1659] sm:$0x1]
    %v1662 = vperm.slane %v1660, 0
    %v1680 = vunpack.c.l.b16 %v1643
    %v1681 = vunpack.c.l.b16 %v1644
    %v1682 = vunpack.c.l.b16 %v1645
    %v1683 = vunpack.c.l.b16 %v1646
    %v1684 = vunpack.c.l.b16 %v1647
    %v1685 = vunpack.c.l.b16 %v1648
    %v1686 = vunpack.c.l.b16 %v1649
    %v1687 = vunpack.c.l.b16 %v1650
    %v1688 = vunpack.c.l.b16 %v1651
    %v1689 = vunpack.c.l.b16 %v1652
    %v1690 = vunpack.c.l.b16 %v1653
    %v1691 = vunpack.c.l.b16 %v1654
    %v1692 = vunpack.c.l.b16 %v1655
    %v1693 = vunpack.c.l.b16 %v1656
    %v1694 = vunpack.c.l.b16 %v1657
    %v1695 = vunpack.c.l.b16 %v1658
    %v1696 = vpack.c.b16 %v1681, %v1680
    %v1697 = vpack.c.b16 %v1683, %v1682
    %v1698 = vpack.c.b16 %v1685, %v1684
    %v1699 = vpack.c.b16 %v1687, %v1686
    %v1700 = vpack.c.b16 %v1689, %v1688
    %v1701 = vpack.c.b16 %v1691, %v1690
    %v1702 = vpack.c.b16 %v1693, %v1692
    %v1703 = vpack.c.b16 %v1695, %v1694
    %1712 = vmatpush.bf16.msra.mxu0 %v1703
    %1713 = vmatpush.bf16.msra.mxu0 %v1702
    %1714 = vmatpush.bf16.msra.mxu0 %v1701
    %1715 = vmatpush.bf16.msra.mxu0 %v1700
    %1716 = vmatpush.bf16.msra.mxu0 %v1699
    %1717 = vmatpush.bf16.msra.mxu0 %v1698
    %1718 = vmatpush.bf16.msra.mxu0 %v1697
    %1719 = vmatpush.bf16.msra.mxu0 %v1696
    %1720 = vmatmul.bf16.gmra.mxu0 %v1641
    %v1721 = vpop.f32.mrf.mxu0
    %v1722 = vadd.f32 %v1662, %v1721
    %v1723 = vpop.f32.mrf.mxu0
    %1724 = vdwg.mxu0
    %vm1725 = vcmp.ge.f32.partialorder %v1722, 0.0
    %v1726 = vmul.f32 %v1722, 0.2
    %v1727 = vsel %vm1725, %v1722, %v1726
    %v1728 = vpack.c.bf16 %v1727, %v1727
    %s1729 = scalar_lea.vmem [#allocation7], 1216
    %v1730 = vld [vmem:[%s1729] sm:$0xf]
    %v1731 = vld [vmem:[%s1729 + $0x4] sm:$0xf]
    %v1732 = vld [vmem:[%s1729 + $0x8] sm:$0xf]
    %v1733 = vld [vmem:[%s1729 + $0xc] sm:$0xf]
    %v1734 = vld [vmem:[%s1729 + $0x10] sm:$0xf]
    %v1735 = vld [vmem:[%s1729 + $0x14] sm:$0xf]
    %v1736 = vld [vmem:[%s1729 + $0x18] sm:$0xf]
    %v1737 = vld [vmem:[%s1729 + $0x1c] sm:$0xf]
    %v1738 = vld [vmem:[%s1729 + $0x20] sm:$0xf]
    %v1739 = vld [vmem:[%s1729 + $0x24] sm:$0xf]
    %v1740 = vld [vmem:[%s1729 + $0x28] sm:$0xf]
    %v1741 = vld [vmem:[%s1729 + $0x2c] sm:$0xf]
    %v1742 = vld [vmem:[%s1729 + $0x30] sm:$0xf]
    %v1743 = vld [vmem:[%s1729 + $0x34] sm:$0xf]
    %v1744 = vld [vmem:[%s1729 + $0x38] sm:$0xf]
    %v1745 = vld [vmem:[%s1729 + $0x3c] sm:$0xf]
    %s1746 = scalar_lea.vmem [#allocation8], 19
    %v1747 = vld [vmem:[%s1746] sm:$0x1]
    %v1749 = vperm.slane %v1747, 0
    %v1767 = vunpack.c.l.b16 %v1730
    %v1768 = vunpack.c.l.b16 %v1731
    %v1769 = vunpack.c.l.b16 %v1732
    %v1770 = vunpack.c.l.b16 %v1733
    %v1771 = vunpack.c.l.b16 %v1734
    %v1772 = vunpack.c.l.b16 %v1735
    %v1773 = vunpack.c.l.b16 %v1736
    %v1774 = vunpack.c.l.b16 %v1737
    %v1775 = vunpack.c.l.b16 %v1738
    %v1776 = vunpack.c.l.b16 %v1739
    %v1777 = vunpack.c.l.b16 %v1740
    %v1778 = vunpack.c.l.b16 %v1741
    %v1779 = vunpack.c.l.b16 %v1742
    %v1780 = vunpack.c.l.b16 %v1743
    %v1781 = vunpack.c.l.b16 %v1744
    %v1782 = vunpack.c.l.b16 %v1745
    %v1783 = vpack.c.b16 %v1768, %v1767
    %v1784 = vpack.c.b16 %v1770, %v1769
    %v1785 = vpack.c.b16 %v1772, %v1771
    %v1786 = vpack.c.b16 %v1774, %v1773
    %v1787 = vpack.c.b16 %v1776, %v1775
    %v1788 = vpack.c.b16 %v1778, %v1777
    %v1789 = vpack.c.b16 %v1780, %v1779
    %v1790 = vpack.c.b16 %v1782, %v1781
    %1799 = vmatpush.bf16.msra.mxu0 %v1790
    %1800 = vmatpush.bf16.msra.mxu0 %v1789
    %1801 = vmatpush.bf16.msra.mxu0 %v1788
    %1802 = vmatpush.bf16.msra.mxu0 %v1787
    %1803 = vmatpush.bf16.msra.mxu0 %v1786
    %1804 = vmatpush.bf16.msra.mxu0 %v1785
    %1805 = vmatpush.bf16.msra.mxu0 %v1784
    %1806 = vmatpush.bf16.msra.mxu0 %v1783
    %1807 = vmatmul.bf16.gmra.mxu0 %v1728
    %v1808 = vpop.f32.mrf.mxu0
    %v1809 = vadd.f32 %v1749, %v1808
    %v1810 = vpop.f32.mrf.mxu0
    %1811 = vdwg.mxu0
    %vm1812 = vcmp.ge.f32.partialorder %v1809, 0.0
    %v1813 = vmul.f32 %v1809, 0.2
    %v1814 = vsel %vm1812, %v1809, %v1813
    %v1815 = vpack.c.bf16 %v1814, %v1814
    %s1816 = scalar_lea.vmem [#allocation7], 1280
    %v1817 = vld [vmem:[%s1816] sm:$0xf]
    %v1818 = vld [vmem:[%s1816 + $0x4] sm:$0xf]
    %v1819 = vld [vmem:[%s1816 + $0x8] sm:$0xf]
    %v1820 = vld [vmem:[%s1816 + $0xc] sm:$0xf]
    %v1821 = vld [vmem:[%s1816 + $0x10] sm:$0xf]
    %v1822 = vld [vmem:[%s1816 + $0x14] sm:$0xf]
    %v1823 = vld [vmem:[%s1816 + $0x18] sm:$0xf]
    %v1824 = vld [vmem:[%s1816 + $0x1c] sm:$0xf]
    %v1825 = vld [vmem:[%s1816 + $0x20] sm:$0xf]
    %v1826 = vld [vmem:[%s1816 + $0x24] sm:$0xf]
    %v1827 = vld [vmem:[%s1816 + $0x28] sm:$0xf]
    %v1828 = vld [vmem:[%s1816 + $0x2c] sm:$0xf]
    %v1829 = vld [vmem:[%s1816 + $0x30] sm:$0xf]
    %v1830 = vld [vmem:[%s1816 + $0x34] sm:$0xf]
    %v1831 = vld [vmem:[%s1816 + $0x38] sm:$0xf]
    %v1832 = vld [vmem:[%s1816 + $0x3c] sm:$0xf]
    %s1833 = scalar_lea.vmem [#allocation8], 20
    %v1834 = vld [vmem:[%s1833] sm:$0x1]
    %v1836 = vperm.slane %v1834, 0
    %v1854 = vunpack.c.l.b16 %v1817
    %v1855 = vunpack.c.l.b16 %v1818
    %v1856 = vunpack.c.l.b16 %v1819
    %v1857 = vunpack.c.l.b16 %v1820
    %v1858 = vunpack.c.l.b16 %v1821
    %v1859 = vunpack.c.l.b16 %v1822
    %v1860 = vunpack.c.l.b16 %v1823
    %v1861 = vunpack.c.l.b16 %v1824
    %v1862 = vunpack.c.l.b16 %v1825
    %v1863 = vunpack.c.l.b16 %v1826
    %v1864 = vunpack.c.l.b16 %v1827
    %v1865 = vunpack.c.l.b16 %v1828
    %v1866 = vunpack.c.l.b16 %v1829
    %v1867 = vunpack.c.l.b16 %v1830
    %v1868 = vunpack.c.l.b16 %v1831
    %v1869 = vunpack.c.l.b16 %v1832
    %v1870 = vpack.c.b16 %v1855, %v1854
    %v1871 = vpack.c.b16 %v1857, %v1856
    %v1872 = vpack.c.b16 %v1859, %v1858
    %v1873 = vpack.c.b16 %v1861, %v1860
    %v1874 = vpack.c.b16 %v1863, %v1862
    %v1875 = vpack.c.b16 %v1865, %v1864
    %v1876 = vpack.c.b16 %v1867, %v1866
    %v1877 = vpack.c.b16 %v1869, %v1868
    %1886 = vmatpush.bf16.msra.mxu0 %v1877
    %1887 = vmatpush.bf16.msra.mxu0 %v1876
    %1888 = vmatpush.bf16.msra.mxu0 %v1875
    %1889 = vmatpush.bf16.msra.mxu0 %v1874
    %1890 = vmatpush.bf16.msra.mxu0 %v1873
    %1891 = vmatpush.bf16.msra.mxu0 %v1872
    %1892 = vmatpush.bf16.msra.mxu0 %v1871
    %1893 = vmatpush.bf16.msra.mxu0 %v1870
    %1894 = vmatmul.bf16.gmra.mxu0 %v1815
    %v1895 = vpop.f32.mrf.mxu0
    %v1896 = vadd.f32 %v1836, %v1895
    %v1897 = vpop.f32.mrf.mxu0
    %1898 = vdwg.mxu0
    %v1899 = vadd.f32 %v1727, %v1896
    %v1900 = vpack.c.bf16 %v1899, %v1899
    %s1901 = scalar_lea.vmem [#allocation7], 1344
    %v1902 = vld [vmem:[%s1901] sm:$0xf]
    %v1903 = vld [vmem:[%s1901 + $0x4] sm:$0xf]
    %v1904 = vld [vmem:[%s1901 + $0x8] sm:$0xf]
    %v1905 = vld [vmem:[%s1901 + $0xc] sm:$0xf]
    %v1906 = vld [vmem:[%s1901 + $0x10] sm:$0xf]
    %v1907 = vld [vmem:[%s1901 + $0x14] sm:$0xf]
    %v1908 = vld [vmem:[%s1901 + $0x18] sm:$0xf]
    %v1909 = vld [vmem:[%s1901 + $0x1c] sm:$0xf]
    %v1910 = vld [vmem:[%s1901 + $0x20] sm:$0xf]
    %v1911 = vld [vmem:[%s1901 + $0x24] sm:$0xf]
    %v1912 = vld [vmem:[%s1901 + $0x28] sm:$0xf]
    %v1913 = vld [vmem:[%s1901 + $0x2c] sm:$0xf]
    %v1914 = vld [vmem:[%s1901 + $0x30] sm:$0xf]
    %v1915 = vld [vmem:[%s1901 + $0x34] sm:$0xf]
    %v1916 = vld [vmem:[%s1901 + $0x38] sm:$0xf]
    %v1917 = vld [vmem:[%s1901 + $0x3c] sm:$0xf]
    %s1918 = scalar_lea.vmem [#allocation8], 21
    %v1919 = vld [vmem:[%s1918] sm:$0x1]
    %v1921 = vperm.slane %v1919, 0
    %v1939 = vunpack.c.l.b16 %v1902
    %v1940 = vunpack.c.l.b16 %v1903
    %v1941 = vunpack.c.l.b16 %v1904
    %v1942 = vunpack.c.l.b16 %v1905
    %v1943 = vunpack.c.l.b16 %v1906
    %v1944 = vunpack.c.l.b16 %v1907
    %v1945 = vunpack.c.l.b16 %v1908
    %v1946 = vunpack.c.l.b16 %v1909
    %v1947 = vunpack.c.l.b16 %v1910
    %v1948 = vunpack.c.l.b16 %v1911
    %v1949 = vunpack.c.l.b16 %v1912
    %v1950 = vunpack.c.l.b16 %v1913
    %v1951 = vunpack.c.l.b16 %v1914
    %v1952 = vunpack.c.l.b16 %v1915
    %v1953 = vunpack.c.l.b16 %v1916
    %v1954 = vunpack.c.l.b16 %v1917
    %v1955 = vpack.c.b16 %v1940, %v1939
    %v1956 = vpack.c.b16 %v1942, %v1941
    %v1957 = vpack.c.b16 %v1944, %v1943
    %v1958 = vpack.c.b16 %v1946, %v1945
    %v1959 = vpack.c.b16 %v1948, %v1947
    %v1960 = vpack.c.b16 %v1950, %v1949
    %v1961 = vpack.c.b16 %v1952, %v1951
    %v1962 = vpack.c.b16 %v1954, %v1953
    %1971 = vmatpush.bf16.msra.mxu0 %v1962
    %1972 = vmatpush.bf16.msra.mxu0 %v1961
    %1973 = vmatpush.bf16.msra.mxu0 %v1960
    %1974 = vmatpush.bf16.msra.mxu0 %v1959
    %1975 = vmatpush.bf16.msra.mxu0 %v1958
    %1976 = vmatpush.bf16.msra.mxu0 %v1957
    %1977 = vmatpush.bf16.msra.mxu0 %v1956
    %1978 = vmatpush.bf16.msra.mxu0 %v1955
    %1979 = vmatmul.bf16.gmra.mxu0 %v1900
    %v1980 = vpop.f32.mrf.mxu0
    %v1981 = vadd.f32 %v1921, %v1980
    %v1982 = vpop.f32.mrf.mxu0
    %1983 = vdwg.mxu0
    %vm1984 = vcmp.ge.f32.partialorder %v1981, 0.0
    %v1985 = vmul.f32 %v1981, 0.2
    %v1986 = vsel %vm1984, %v1981, %v1985
    %v1987 = vpack.c.bf16 %v1986, %v1986
    %s1988 = scalar_lea.vmem [#allocation7], 1408
    %v1989 = vld [vmem:[%s1988] sm:$0xf]
    %v1990 = vld [vmem:[%s1988 + $0x4] sm:$0xf]
    %v1991 = vld [vmem:[%s1988 + $0x8] sm:$0xf]
    %v1992 = vld [vmem:[%s1988 + $0xc] sm:$0xf]
    %v1993 = vld [vmem:[%s1988 + $0x10] sm:$0xf]
    %v1994 = vld [vmem:[%s1988 + $0x14] sm:$0xf]
    %v1995 = vld [vmem:[%s1988 + $0x18] sm:$0xf]
    %v1996 = vld [vmem:[%s1988 + $0x1c] sm:$0xf]
    %v1997 = vld [vmem:[%s1988 + $0x20] sm:$0xf]
    %v1998 = vld [vmem:[%s1988 + $0x24] sm:$0xf]
    %v1999 = vld [vmem:[%s1988 + $0x28] sm:$0xf]
    %v2000 = vld [vmem:[%s1988 + $0x2c] sm:$0xf]
    %v2001 = vld [vmem:[%s1988 + $0x30] sm:$0xf]
    %v2002 = vld [vmem:[%s1988 + $0x34] sm:$0xf]
    %v2003 = vld [vmem:[%s1988 + $0x38] sm:$0xf]
    %v2004 = vld [vmem:[%s1988 + $0x3c] sm:$0xf]
    %s2005 = scalar_lea.vmem [#allocation8], 22
    %v2006 = vld [vmem:[%s2005] sm:$0x1]
    %v2008 = vperm.slane %v2006, 0
    %v2026 = vunpack.c.l.b16 %v1989
    %v2027 = vunpack.c.l.b16 %v1990
    %v2028 = vunpack.c.l.b16 %v1991
    %v2029 = vunpack.c.l.b16 %v1992
    %v2030 = vunpack.c.l.b16 %v1993
    %v2031 = vunpack.c.l.b16 %v1994
    %v2032 = vunpack.c.l.b16 %v1995
    %v2033 = vunpack.c.l.b16 %v1996
    %v2034 = vunpack.c.l.b16 %v1997
    %v2035 = vunpack.c.l.b16 %v1998
    %v2036 = vunpack.c.l.b16 %v1999
    %v2037 = vunpack.c.l.b16 %v2000
    %v2038 = vunpack.c.l.b16 %v2001
    %v2039 = vunpack.c.l.b16 %v2002
    %v2040 = vunpack.c.l.b16 %v2003
    %v2041 = vunpack.c.l.b16 %v2004
    %v2042 = vpack.c.b16 %v2027, %v2026
    %v2043 = vpack.c.b16 %v2029, %v2028
    %v2044 = vpack.c.b16 %v2031, %v2030
    %v2045 = vpack.c.b16 %v2033, %v2032
    %v2046 = vpack.c.b16 %v2035, %v2034
    %v2047 = vpack.c.b16 %v2037, %v2036
    %v2048 = vpack.c.b16 %v2039, %v2038
    %v2049 = vpack.c.b16 %v2041, %v2040
    %2058 = vmatpush.bf16.msra.mxu0 %v2049
    %2059 = vmatpush.bf16.msra.mxu0 %v2048
    %2060 = vmatpush.bf16.msra.mxu0 %v2047
    %2061 = vmatpush.bf16.msra.mxu0 %v2046
    %2062 = vmatpush.bf16.msra.mxu0 %v2045
    %2063 = vmatpush.bf16.msra.mxu0 %v2044
    %2064 = vmatpush.bf16.msra.mxu0 %v2043
    %2065 = vmatpush.bf16.msra.mxu0 %v2042
    %2066 = vmatmul.bf16.gmra.mxu0 %v1987
    %v2067 = vpop.f32.mrf.mxu0
    %v2068 = vadd.f32 %v2008, %v2067
    %v2069 = vpop.f32.mrf.mxu0
    %2070 = vdwg.mxu0
    %v2071 = vadd.f32 %v1899, %v2068
    %v2072 = vpack.c.bf16 %v2071, %v2071
    %s2073 = scalar_lea.vmem [#allocation7], 1472
    %v2074 = vld [vmem:[%s2073] sm:$0xf]
    %v2075 = vld [vmem:[%s2073 + $0x4] sm:$0xf]
    %v2076 = vld [vmem:[%s2073 + $0x8] sm:$0xf]
    %v2077 = vld [vmem:[%s2073 + $0xc] sm:$0xf]
    %v2078 = vld [vmem:[%s2073 + $0x10] sm:$0xf]
    %v2079 = vld [vmem:[%s2073 + $0x14] sm:$0xf]
    %v2080 = vld [vmem:[%s2073 + $0x18] sm:$0xf]
    %v2081 = vld [vmem:[%s2073 + $0x1c] sm:$0xf]
    %v2082 = vld [vmem:[%s2073 + $0x20] sm:$0xf]
    %v2083 = vld [vmem:[%s2073 + $0x24] sm:$0xf]
    %v2084 = vld [vmem:[%s2073 + $0x28] sm:$0xf]
    %v2085 = vld [vmem:[%s2073 + $0x2c] sm:$0xf]
    %v2086 = vld [vmem:[%s2073 + $0x30] sm:$0xf]
    %v2087 = vld [vmem:[%s2073 + $0x34] sm:$0xf]
    %v2088 = vld [vmem:[%s2073 + $0x38] sm:$0xf]
    %v2089 = vld [vmem:[%s2073 + $0x3c] sm:$0xf]
    %s2090 = scalar_lea.vmem [#allocation8], 23
    %v2091 = vld [vmem:[%s2090] sm:$0x1]
    %v2093 = vperm.slane %v2091, 0
    %v2111 = vunpack.c.l.b16 %v2074
    %v2112 = vunpack.c.l.b16 %v2075
    %v2113 = vunpack.c.l.b16 %v2076
    %v2114 = vunpack.c.l.b16 %v2077
    %v2115 = vunpack.c.l.b16 %v2078
    %v2116 = vunpack.c.l.b16 %v2079
    %v2117 = vunpack.c.l.b16 %v2080
    %v2118 = vunpack.c.l.b16 %v2081
    %v2119 = vunpack.c.l.b16 %v2082
    %v2120 = vunpack.c.l.b16 %v2083
    %v2121 = vunpack.c.l.b16 %v2084
    %v2122 = vunpack.c.l.b16 %v2085
    %v2123 = vunpack.c.l.b16 %v2086
    %v2124 = vunpack.c.l.b16 %v2087
    %v2125 = vunpack.c.l.b16 %v2088
    %v2126 = vunpack.c.l.b16 %v2089
    %v2127 = vpack.c.b16 %v2112, %v2111
    %v2128 = vpack.c.b16 %v2114, %v2113
    %v2129 = vpack.c.b16 %v2116, %v2115
    %v2130 = vpack.c.b16 %v2118, %v2117
    %v2131 = vpack.c.b16 %v2120, %v2119
    %v2132 = vpack.c.b16 %v2122, %v2121
    %v2133 = vpack.c.b16 %v2124, %v2123
    %v2134 = vpack.c.b16 %v2126, %v2125
    %2143 = vmatpush.bf16.msra.mxu0 %v2134
    %2144 = vmatpush.bf16.msra.mxu0 %v2133
    %2145 = vmatpush.bf16.msra.mxu0 %v2132
    %2146 = vmatpush.bf16.msra.mxu0 %v2131
    %2147 = vmatpush.bf16.msra.mxu0 %v2130
    %2148 = vmatpush.bf16.msra.mxu0 %v2129
    %2149 = vmatpush.bf16.msra.mxu0 %v2128
    %2150 = vmatpush.bf16.msra.mxu0 %v2127
    %2151 = vmatmul.bf16.gmra.mxu0 %v2072
    %v2152 = vpop.f32.mrf.mxu0
    %v2153 = vadd.f32 %v2093, %v2152
    %v2154 = vpop.f32.mrf.mxu0
    %2155 = vdwg.mxu0
    %v2156 = vadd.f32 %v2153, %v1116
    %2157 = vst [vmem:[#allocation10] sm:$0xff] %v2156
    // Predicated region
    $region34: #{tpu_custom_call.1} parent=1 // pred_check
      _
    $region35: #{tpu_custom_call.1} parent=1 // pred_check_branch
      %2159 = sbr.rel (0) target = $region37
    $region36: #{tpu_custom_call.1} parent=1 // pred_region
      %2161 = vsyncadd [#allocation4], 0
      %s2163 = sshll.u32 [#allocation10], 4
      %s2164 = int_to_ptr.vmem [resolvable:$true] %s2163
      %s2165 = sshll.u32 %s4, 4
      %s2166 = int_to_ptr.hbm [resolvable:$true] %s2165
      %2168 = dma.vmem_to_hbm [thread:$0]  %s2164, 128, %s2166, [#allocation4]
    $region37: #{tpu_custom_call.1} parent=1 // pred_fallthru
      _
    // Predicated region
    $region38: #{tpu_custom_call.1} parent=1 // pred_check
      _
    $region39: #{tpu_custom_call.1} parent=1 // pred_check_branch
      %2170 = sbr.rel (0) target = $region41
    $region40: #{tpu_custom_call.1} parent=1 // pred_region
      %2172 = dma.done [#allocation4], 128
    $region41: #{tpu_custom_call.1} parent=1 // pred_fallthru
      _
    %2173 = vsyncpa [#allocation3], 1
    %2174 = vsyncpa [#allocation6], 1
    %2175 = vsyncpa [#allocation9], 1
    %2176 = vsyncpa [#allocation4], 1

</llo_original>
